<compile_context>
chip_gen: v5e
topology: v5e:2x2
jax: 0.10.0
libtpu: 0.0.40
codegen_flags: <defaults>
</compile_context>

<pallas_src>
import jax
import jax.numpy as jnp
from jax.experimental import pallas as pl
from jax.experimental.pallas import tpu as pltpu

# ---- model hyper-parameters (from Net.__init__ defaults) -------------------
IN_DIM = 33
HID_DIM = 64
OUT_DIM = 2
NUM_LAYERS = 10          # -> 9 GIN layers, 10 prediction heads
NUM_MLP_LAYERS = 5
NUM_GIN = NUM_LAYERS - 1
BN_EPS = 1e-5

_VMEM = pltpu.MemorySpace.VMEM
_SMEM = pltpu.MemorySpace.SMEM


# =============================== fused kernel ===============================

def _gin_fused_kernel(eps_ref,     # SMEM (9,)                f32  learnable eps per GIN layer
                      adj_ref,     # VMEM (N, N)              bf16 dense adjacency
                      feat_ref,    # VMEM (N, 64)             f32  zero-padded input features
                      w_ref,       # VMEM (9, 5, 64, 64)      bf16 MLP weights (x @ W layout)
                      b_ref,       # VMEM (9, 5, 1, 64)       f32  MLP biases
                      s_ref,       # VMEM (9, 6, 1, 64)       f32  BN scales (4 MLP, apply, net)
                      t_ref,       # VMEM (9, 6, 1, 64)       f32  BN shifts
                      pw_ref,      # VMEM (10, 64, 2)         bf16 prediction-head weights
                      pb_ref,      # VMEM (1, 2)              f32  sum of prediction-head biases
                      score_ref):  # VMEM (N, 2)              f32  output
    adj = adj_ref[...]                                   # (N, N) bf16
    h = feat_ref[...]                                    # (N, 64) f32

    # prediction head 0 on the raw (padded) input features; accumulate in f32.
    score = jnp.dot(h.astype(jnp.bfloat16), pw_ref[0],
                    preferred_element_type=jnp.float32)  # (N, 2)

    for i in range(NUM_GIN):
        eps = eps_ref[i]                                 # scalar from SMEM
        # --- GINConv sum aggregation fused with the (1+eps) self term -------
        x = jnp.dot(adj, h.astype(jnp.bfloat16),
                    preferred_element_type=jnp.float32)
        x = x + (1.0 + eps) * h                          # (N, 64) f32

        # --- MLP hidden layers: Linear -> BN(eval) -> ReLU -------------------
        for l in range(NUM_MLP_LAYERS - 1):
            y = jnp.dot(x.astype(jnp.bfloat16), w_ref[i, l],
                        preferred_element_type=jnp.float32) + b_ref[i, l]
            x = jnp.maximum(y * s_ref[i, l] + t_ref[i, l], 0.0)

        # --- MLP output Linear, ApplyNodeFunc BN->ReLU, Net BN->ReLU ---------
        y = jnp.dot(x.astype(jnp.bfloat16), w_ref[i, NUM_MLP_LAYERS - 1],
                    preferred_element_type=jnp.float32) + b_ref[i, NUM_MLP_LAYERS - 1]
        y = jnp.maximum(y * s_ref[i, 4] + t_ref[i, 4], 0.0)   # ApplyNodeFunc.bn + relu
        h = jnp.maximum(y * s_ref[i, 5] + t_ref[i, 5], 0.0)   # Net.batch_norms[i] + relu

        # --- prediction head i+1 (dropout = identity in eval) ----------------
        score = score + jnp.dot(h.astype(jnp.bfloat16), pw_ref[i + 1],
                                preferred_element_type=jnp.float32)

    score_ref[...] = score + pb_ref[...]


# ============================ pallas wrapper ================================

def _nbytes(*arrays):
    return sum(int(a.size) * a.dtype.itemsize for a in arrays)


@jax.jit
def gin_forward(adj, feat, packed):
    """Full Net forward (eval mode). Returns (score_over_layer, info)."""
    eps, w, b, s, t, pw, pb = packed
    n = feat.shape[0]

    feat_pad = jnp.pad(feat.astype(jnp.float32),
                       ((0, 0), (0, HID_DIM - IN_DIM)))     # (N, 64)
    adj_bf = adj.astype(jnp.bfloat16)                       # 0/1 -> exact in bf16

    flops = (NUM_GIN * (2 * n * n * HID_DIM
                        + NUM_MLP_LAYERS * 2 * n * HID_DIM * HID_DIM)
             + NUM_LAYERS * 2 * n * HID_DIM * OUT_DIM)
    bytes_accessed = (_nbytes(eps, adj_bf, feat_pad, w, b, s, t, pw, pb)
                      + n * OUT_DIM * 4)

    score = pl.pallas_call(
        _gin_fused_kernel,
        out_shape=jax.ShapeDtypeStruct((n, OUT_DIM), jnp.float32),
        in_specs=[pl.BlockSpec(memory_space=_SMEM)]          # eps -> scalar path
                 + [pl.BlockSpec(memory_space=_VMEM)] * 8,   # everything else resident
        out_specs=pl.BlockSpec(memory_space=_VMEM),
        cost_estimate=pl.CostEstimate(flops=flops, transcendentals=0,
                                      bytes_accessed=bytes_accessed),
    )(eps, adj_bf, feat_pad, w, b, s, t, pw, pb)

    info = dict()
    return score, info


# ============================ parameter setup ===============================

def _linear_init(key, fan_in, fan_out):
    """PyTorch nn.Linear default init (uniform +/- 1/sqrt(fan_in))."""
    kw, kb = jax.random.split(key)
    bound = 1.0 / (fan_in ** 0.5)
    w = jax.random.uniform(kw, (fan_in, fan_out), minval=-bound, maxval=bound,
                           dtype=jnp.float32)
    b = jax.random.uniform(kb, (fan_out,), minval=-bound, maxval=bound,
                           dtype=jnp.float32)
    return w, b


def _bn_init(dim):
    """Eval-mode BatchNorm1d folded to scale/shift with default init params."""
    gamma = jnp.ones((dim,), jnp.float32)
    beta = jnp.zeros((dim,), jnp.float32)
    running_mean = jnp.zeros((dim,), jnp.float32)
    running_var = jnp.ones((dim,), jnp.float32)
    scale = gamma / jnp.sqrt(running_var + BN_EPS)
    shift = beta - running_mean * scale
    return scale, shift


def init_params(key):
    params = {"mlp": [], "apply_bn": [], "net_bn": [], "eps": [], "pred": []}
    for layer in range(NUM_GIN):
        in_dim = IN_DIM if layer == 0 else HID_DIM
        linears, bns = [], []
        dims = [in_dim] + [HID_DIM] * (NUM_MLP_LAYERS - 1) + [HID_DIM]
        for l in range(NUM_MLP_LAYERS):
            key, sub = jax.random.split(key)
            linears.append(_linear_init(sub, dims[l], dims[l + 1]))
        for _ in range(NUM_MLP_LAYERS - 1):
            bns.append(_bn_init(HID_DIM))
        params["mlp"].append({"linears": linears, "bns": bns})
        params["apply_bn"].append(_bn_init(HID_DIM))          # ApplyNodeFunc.bn
        params["net_bn"].append(_bn_init(HID_DIM))            # Net.batch_norms[i]
        params["eps"].append(jnp.zeros((), jnp.float32))      # GINConv learnable eps
    for layer in range(NUM_LAYERS):
        in_dim = IN_DIM if layer == 0 else HID_DIM
        key, sub = jax.random.split(key)
        params["pred"].append(_linear_init(sub, in_dim, OUT_DIM))
    return params


def pack_params(params):
    """Stack / pad parameters into the fused-kernel layout."""
    w_all, b_all, s_all, t_all = [], [], [], []
    for i in range(NUM_GIN):
        ws, bs = [], []
        for l in range(NUM_MLP_LAYERS):
            w, b = params["mlp"][i]["linears"][l]
            if w.shape[0] != HID_DIM:                      # layer-0 linear-0: (33,64)
                w = jnp.pad(w, ((0, HID_DIM - w.shape[0]), (0, 0)))
            ws.append(w)
            bs.append(b)
        w_all.append(jnp.stack(ws))                        # (5, 64, 64)
        b_all.append(jnp.stack(bs))                        # (5, 64)
        scales = [params["mlp"][i]["bns"][l][0] for l in range(NUM_MLP_LAYERS - 1)]
        shifts = [params["mlp"][i]["bns"][l][1] for l in range(NUM_MLP_LAYERS - 1)]
        scales += [params["apply_bn"][i][0], params["net_bn"][i][0]]
        shifts += [params["apply_bn"][i][1], params["net_bn"][i][1]]
        s_all.append(jnp.stack(scales))                    # (6, 64)
        t_all.append(jnp.stack(shifts))                    # (6, 64)

    w = jnp.stack(w_all).astype(jnp.bfloat16)                              # (9,5,64,64)
    b = jnp.stack(b_all).reshape(NUM_GIN, NUM_MLP_LAYERS, 1, HID_DIM)      # (9,5,1,64)
    s = jnp.stack(s_all).reshape(NUM_GIN, NUM_MLP_LAYERS + 1, 1, HID_DIM)  # (9,6,1,64)
    t = jnp.stack(t_all).reshape(NUM_GIN, NUM_MLP_LAYERS + 1, 1, HID_DIM)  # (9,6,1,64)
    eps = jnp.stack(params["eps"]).astype(jnp.float32)                     # (9,)

    pw_list, pb_list = [], []
    for i in range(NUM_LAYERS):
        pw_i, pb_i = params["pred"][i]
        if pw_i.shape[0] != HID_DIM:                       # head 0: (33, 2)
            pw_i = jnp.pad(pw_i, ((0, HID_DIM - pw_i.shape[0]), (0, 0)))
        pw_list.append(pw_i)
        pb_list.append(pb_i)
    pw = jnp.stack(pw_list).astype(jnp.bfloat16)           # (10, 64, 2)
    pb = sum(pb_list).reshape(1, OUT_DIM).astype(jnp.float32)  # bias sum, added once

    return eps, w, b, s, t, pw, pb


# ================================= main =====================================

if __name__ == "__main__":
    key = jax.random.PRNGKey(0)
    num_nodes = 16

    key, k_adj, k_feat, k_params = jax.random.split(key, 4)
    # deterministic small graph: symmetric random adjacency, no self loops
    adj = (jax.random.uniform(k_adj, (num_nodes, num_nodes)) < 0.3).astype(jnp.float32)
    adj = adj * (1.0 - jnp.eye(num_nodes, dtype=jnp.float32))
    adj = jnp.maximum(adj, adj.T)
    # node features: g.ndata['feat'] with input_dim = 33
    feat = jax.random.normal(k_feat, (num_nodes, IN_DIM), dtype=jnp.float32)

    params = init_params(k_params)
    packed = pack_params(params)

    score, info = gin_forward(adj, feat, packed)
    jax.block_until_ready(score)

    assert score.shape == (num_nodes, OUT_DIM)
    assert bool(jnp.all(jnp.isfinite(score)))
    print("KERNEL_OK")
</pallas_src>

<mosaic_0001>
module attributes {stable_mosaic.version = 11 : i64} {
  func.func @_gin_fused_kernel(%arg0: memref<9xf32, #tpu.memory_space<smem>>, %arg1: memref<16x16xbf16, #tpu.memory_space<vmem>>, %arg2: memref<16x64xf32, #tpu.memory_space<vmem>>, %arg3: memref<9x5x64x64xbf16, #tpu.memory_space<vmem>>, %arg4: memref<9x5x1x64xf32, #tpu.memory_space<vmem>>, %arg5: memref<9x6x1x64xf32, #tpu.memory_space<vmem>>, %arg6: memref<9x6x1x64xf32, #tpu.memory_space<vmem>>, %arg7: memref<10x64x2xbf16, #tpu.memory_space<vmem>>, %arg8: memref<1x2xf32, #tpu.memory_space<vmem>>, %arg9: memref<16x2xf32, #tpu.memory_space<vmem>>) attributes {dimension_semantics = [], scalar_prefetch = 0 : i64, scratch_operands = 0 : i64, tpu.core_type = #tpu.core_type<tc>} {
    %c0 = arith.constant 0 : index
    %c0_0 = arith.constant 0 : index
    %0 = vector.load %arg1[%c0, %c0_0] : memref<16x16xbf16, #tpu.memory_space<vmem>>, vector<16x16xbf16>
    %c0_1 = arith.constant 0 : index
    %c0_2 = arith.constant 0 : index
    %1 = vector.load %arg2[%c0_1, %c0_2] : memref<16x64xf32, #tpu.memory_space<vmem>>, vector<16x64xf32>
    %2 = arith.truncf %1 : vector<16x64xf32> to vector<16x64xbf16>
    %c0_3 = arith.constant 0 : index
    %c0_4 = arith.constant 0 : index
    %c0_5 = arith.constant 0 : index
    %3 = vector.load %arg7[%c0_3, %c0_4, %c0_5] : memref<10x64x2xbf16, #tpu.memory_space<vmem>>, vector<1x64x2xbf16>
    %4 = vector.shape_cast %3 : vector<1x64x2xbf16> to vector<64x2xbf16>
    %cst = arith.constant dense<0.000000e+00> : vector<16x2xf32>
    %5 = tpu.matmul %2, %4, %cst {dimension_numbers = #tpu.dot_dimension_numbers<[1], [0], [0], [1], [0, 0, 1, 1], [], []>} : vector<16x64xbf16>, vector<64x2xbf16>, vector<16x2xf32> -> vector<16x2xf32>
    %c0_6 = arith.constant 0 : index
    %6 = memref.load %arg0[%c0_6] : memref<9xf32, #tpu.memory_space<smem>>
    %7 = arith.truncf %1 : vector<16x64xf32> to vector<16x64xbf16>
    %cst_7 = arith.constant dense<0.000000e+00> : vector<16x64xf32>
    %8 = tpu.matmul %0, %7, %cst_7 {dimension_numbers = #tpu.dot_dimension_numbers<[1], [0], [0], [1], [0, 0, 1, 1], [], []>} : vector<16x16xbf16>, vector<16x64xbf16>, vector<16x64xf32> -> vector<16x64xf32>
    %cst_8 = arith.constant 1.000000e+00 : f32
    %9 = arith.addf %cst_8, %6 : f32
    %10 = vector.broadcast %9 : f32 to vector<16x64xf32>
    %11 = arith.mulf %10, %1 : vector<16x64xf32>
    %12 = arith.addf %8, %11 : vector<16x64xf32>
    %13 = arith.truncf %12 : vector<16x64xf32> to vector<16x64xbf16>
    %c0_9 = arith.constant 0 : index
    %c0_10 = arith.constant 0 : index
    %c0_11 = arith.constant 0 : index
    %c0_12 = arith.constant 0 : index
    %14 = vector.load %arg3[%c0_9, %c0_10, %c0_11, %c0_12] : memref<9x5x64x64xbf16, #tpu.memory_space<vmem>>, vector<1x1x64x64xbf16>
    %15 = vector.shape_cast %14 : vector<1x1x64x64xbf16> to vector<64x64xbf16>
    %cst_13 = arith.constant dense<0.000000e+00> : vector<16x64xf32>
    %16 = tpu.matmul %13, %15, %cst_13 {dimension_numbers = #tpu.dot_dimension_numbers<[1], [0], [0], [1], [0, 0, 1, 1], [], []>} : vector<16x64xbf16>, vector<64x64xbf16>, vector<16x64xf32> -> vector<16x64xf32>
    %c0_14 = arith.constant 0 : index
    %c0_15 = arith.constant 0 : index
    %c0_16 = arith.constant 0 : index
    %c0_17 = arith.constant 0 : index
    %17 = vector.load %arg4[%c0_14, %c0_15, %c0_16, %c0_17] : memref<9x5x1x64xf32, #tpu.memory_space<vmem>>, vector<1x1x1x64xf32>
    %18 = vector.shape_cast %17 : vector<1x1x1x64xf32> to vector<1x64xf32>
    %19 = vector.broadcast %18 : vector<1x64xf32> to vector<16x64xf32>
    %20 = arith.addf %16, %19 : vector<16x64xf32>
    %c0_18 = arith.constant 0 : index
    %c0_19 = arith.constant 0 : index
    %c0_20 = arith.constant 0 : index
    %c0_21 = arith.constant 0 : index
    %21 = vector.load %arg5[%c0_18, %c0_19, %c0_20, %c0_21] : memref<9x6x1x64xf32, #tpu.memory_space<vmem>>, vector<1x1x1x64xf32>
    %22 = vector.shape_cast %21 : vector<1x1x1x64xf32> to vector<1x64xf32>
    %23 = vector.broadcast %22 : vector<1x64xf32> to vector<16x64xf32>
    %24 = arith.mulf %20, %23 : vector<16x64xf32>
    %c0_22 = arith.constant 0 : index
    %c0_23 = arith.constant 0 : index
    %c0_24 = arith.constant 0 : index
    %c0_25 = arith.constant 0 : index
    %25 = vector.load %arg6[%c0_22, %c0_23, %c0_24, %c0_25] : memref<9x6x1x64xf32, #tpu.memory_space<vmem>>, vector<1x1x1x64xf32>
    %26 = vector.shape_cast %25 : vector<1x1x1x64xf32> to vector<1x64xf32>
    %27 = vector.broadcast %26 : vector<1x64xf32> to vector<16x64xf32>
    %28 = arith.addf %24, %27 : vector<16x64xf32>
    %cst_26 = arith.constant 0.000000e+00 : f32
    %29 = vector.broadcast %cst_26 : f32 to vector<16x64xf32>
    %30 = arith.maximumf %28, %29 : vector<16x64xf32>
    %31 = arith.truncf %30 : vector<16x64xf32> to vector<16x64xbf16>
    %c0_27 = arith.constant 0 : index
    %c1 = arith.constant 1 : index
    %c0_28 = arith.constant 0 : index
    %c0_29 = arith.constant 0 : index
    %32 = vector.load %arg3[%c0_27, %c1, %c0_28, %c0_29] : memref<9x5x64x64xbf16, #tpu.memory_space<vmem>>, vector<1x1x64x64xbf16>
    %33 = vector.shape_cast %32 : vector<1x1x64x64xbf16> to vector<64x64xbf16>
    %cst_30 = arith.constant dense<0.000000e+00> : vector<16x64xf32>
    %34 = tpu.matmul %31, %33, %cst_30 {dimension_numbers = #tpu.dot_dimension_numbers<[1], [0], [0], [1], [0, 0, 1, 1], [], []>} : vector<16x64xbf16>, vector<64x64xbf16>, vector<16x64xf32> -> vector<16x64xf32>
    %c0_31 = arith.constant 0 : index
    %c1_32 = arith.constant 1 : index
    %c0_33 = arith.constant 0 : index
    %c0_34 = arith.constant 0 : index
    %35 = vector.load %arg4[%c0_31, %c1_32, %c0_33, %c0_34] : memref<9x5x1x64xf32, #tpu.memory_space<vmem>>, vector<1x1x1x64xf32>
    %36 = vector.shape_cast %35 : vector<1x1x1x64xf32> to vector<1x64xf32>
    %37 = vector.broadcast %36 : vector<1x64xf32> to vector<16x64xf32>
    %38 = arith.addf %34, %37 : vector<16x64xf32>
    %c0_35 = arith.constant 0 : index
    %c1_36 = arith.constant 1 : index
    %c0_37 = arith.constant 0 : index
    %c0_38 = arith.constant 0 : index
    %39 = vector.load %arg5[%c0_35, %c1_36, %c0_37, %c0_38] : memref<9x6x1x64xf32, #tpu.memory_space<vmem>>, vector<1x1x1x64xf32>
    %40 = vector.shape_cast %39 : vector<1x1x1x64xf32> to vector<1x64xf32>
    %41 = vector.broadcast %40 : vector<1x64xf32> to vector<16x64xf32>
    %42 = arith.mulf %38, %41 : vector<16x64xf32>
    %c0_39 = arith.constant 0 : index
    %c1_40 = arith.constant 1 : index
    %c0_41 = arith.constant 0 : index
    %c0_42 = arith.constant 0 : index
    %43 = vector.load %arg6[%c0_39, %c1_40, %c0_41, %c0_42] : memref<9x6x1x64xf32, #tpu.memory_space<vmem>>, vector<1x1x1x64xf32>
    %44 = vector.shape_cast %43 : vector<1x1x1x64xf32> to vector<1x64xf32>
    %45 = vector.broadcast %44 : vector<1x64xf32> to vector<16x64xf32>
    %46 = arith.addf %42, %45 : vector<16x64xf32>
    %cst_43 = arith.constant 0.000000e+00 : f32
    %47 = vector.broadcast %cst_43 : f32 to vector<16x64xf32>
    %48 = arith.maximumf %46, %47 : vector<16x64xf32>
    %49 = arith.truncf %48 : vector<16x64xf32> to vector<16x64xbf16>
    %c0_44 = arith.constant 0 : index
    %c2 = arith.constant 2 : index
    %c0_45 = arith.constant 0 : index
    %c0_46 = arith.constant 0 : index
    %50 = vector.load %arg3[%c0_44, %c2, %c0_45, %c0_46] : memref<9x5x64x64xbf16, #tpu.memory_space<vmem>>, vector<1x1x64x64xbf16>
    %51 = vector.shape_cast %50 : vector<1x1x64x64xbf16> to vector<64x64xbf16>
    %cst_47 = arith.constant dense<0.000000e+00> : vector<16x64xf32>
    %52 = tpu.matmul %49, %51, %cst_47 {dimension_numbers = #tpu.dot_dimension_numbers<[1], [0], [0], [1], [0, 0, 1, 1], [], []>} : vector<16x64xbf16>, vector<64x64xbf16>, vector<16x64xf32> -> vector<16x64xf32>
    %c0_48 = arith.constant 0 : index
    %c2_49 = arith.constant 2 : index
    %c0_50 = arith.constant 0 : index
    %c0_51 = arith.constant 0 : index
    %53 = vector.load %arg4[%c0_48, %c2_49, %c0_50, %c0_51] : memref<9x5x1x64xf32, #tpu.memory_space<vmem>>, vector<1x1x1x64xf32>
    %54 = vector.shape_cast %53 : vector<1x1x1x64xf32> to vector<1x64xf32>
    %55 = vector.broadcast %54 : vector<1x64xf32> to vector<16x64xf32>
    %56 = arith.addf %52, %55 : vector<16x64xf32>
    %c0_52 = arith.constant 0 : index
    %c2_53 = arith.constant 2 : index
    %c0_54 = arith.constant 0 : index
    %c0_55 = arith.constant 0 : index
    %57 = vector.load %arg5[%c0_52, %c2_53, %c0_54, %c0_55] : memref<9x6x1x64xf32, #tpu.memory_space<vmem>>, vector<1x1x1x64xf32>
    %58 = vector.shape_cast %57 : vector<1x1x1x64xf32> to vector<1x64xf32>
    %59 = vector.broadcast %58 : vector<1x64xf32> to vector<16x64xf32>
    %60 = arith.mulf %56, %59 : vector<16x64xf32>
    %c0_56 = arith.constant 0 : index
    %c2_57 = arith.constant 2 : index
    %c0_58 = arith.constant 0 : index
    %c0_59 = arith.constant 0 : index
    %61 = vector.load %arg6[%c0_56, %c2_57, %c0_58, %c0_59] : memref<9x6x1x64xf32, #tpu.memory_space<vmem>>, vector<1x1x1x64xf32>
    %62 = vector.shape_cast %61 : vector<1x1x1x64xf32> to vector<1x64xf32>
    %63 = vector.broadcast %62 : vector<1x64xf32> to vector<16x64xf32>
    %64 = arith.addf %60, %63 : vector<16x64xf32>
    %cst_60 = arith.constant 0.000000e+00 : f32
    %65 = vector.broadcast %cst_60 : f32 to vector<16x64xf32>
    %66 = arith.maximumf %64, %65 : vector<16x64xf32>
    %67 = arith.truncf %66 : vector<16x64xf32> to vector<16x64xbf16>
    %c0_61 = arith.constant 0 : index
    %c3 = arith.constant 3 : index
    %c0_62 = arith.constant 0 : index
    %c0_63 = arith.constant 0 : index
    %68 = vector.load %arg3[%c0_61, %c3, %c0_62, %c0_63] : memref<9x5x64x64xbf16, #tpu.memory_space<vmem>>, vector<1x1x64x64xbf16>
    %69 = vector.shape_cast %68 : vector<1x1x64x64xbf16> to vector<64x64xbf16>
    %cst_64 = arith.constant dense<0.000000e+00> : vector<16x64xf32>
    %70 = tpu.matmul %67, %69, %cst_64 {dimension_numbers = #tpu.dot_dimension_numbers<[1], [0], [0], [1], [0, 0, 1, 1], [], []>} : vector<16x64xbf16>, vector<64x64xbf16>, vector<16x64xf32> -> vector<16x64xf32>
    %c0_65 = arith.constant 0 : index
    %c3_66 = arith.constant 3 : index
    %c0_67 = arith.constant 0 : index
    %c0_68 = arith.constant 0 : index
    %71 = vector.load %arg4[%c0_65, %c3_66, %c0_67, %c0_68] : memref<9x5x1x64xf32, #tpu.memory_space<vmem>>, vector<1x1x1x64xf32>
    %72 = vector.shape_cast %71 : vector<1x1x1x64xf32> to vector<1x64xf32>
    %73 = vector.broadcast %72 : vector<1x64xf32> to vector<16x64xf32>
    %74 = arith.addf %70, %73 : vector<16x64xf32>
    %c0_69 = arith.constant 0 : index
    %c3_70 = arith.constant 3 : index
    %c0_71 = arith.constant 0 : index
    %c0_72 = arith.constant 0 : index
    %75 = vector.load %arg5[%c0_69, %c3_70, %c0_71, %c0_72] : memref<9x6x1x64xf32, #tpu.memory_space<vmem>>, vector<1x1x1x64xf32>
    %76 = vector.shape_cast %75 : vector<1x1x1x64xf32> to vector<1x64xf32>
    %77 = vector.broadcast %76 : vector<1x64xf32> to vector<16x64xf32>
    %78 = arith.mulf %74, %77 : vector<16x64xf32>
    %c0_73 = arith.constant 0 : index
    %c3_74 = arith.constant 3 : index
    %c0_75 = arith.constant 0 : index
    %c0_76 = arith.constant 0 : index
    %79 = vector.load %arg6[%c0_73, %c3_74, %c0_75, %c0_76] : memref<9x6x1x64xf32, #tpu.memory_space<vmem>>, vector<1x1x1x64xf32>
    %80 = vector.shape_cast %79 : vector<1x1x1x64xf32> to vector<1x64xf32>
    %81 = vector.broadcast %80 : vector<1x64xf32> to vector<16x64xf32>
    %82 = arith.addf %78, %81 : vector<16x64xf32>
    %cst_77 = arith.constant 0.000000e+00 : f32
    %83 = vector.broadcast %cst_77 : f32 to vector<16x64xf32>
    %84 = arith.maximumf %82, %83 : vector<16x64xf32>
    %85 = arith.truncf %84 : vector<16x64xf32> to vector<16x64xbf16>
    %c0_78 = arith.constant 0 : index
    %c4 = arith.constant 4 : index
    %c0_79 = arith.constant 0 : index
    %c0_80 = arith.constant 0 : index
    %86 = vector.load %arg3[%c0_78, %c4, %c0_79, %c0_80] : memref<9x5x64x64xbf16, #tpu.memory_space<vmem>>, vector<1x1x64x64xbf16>
    %87 = vector.shape_cast %86 : vector<1x1x64x64xbf16> to vector<64x64xbf16>
    %cst_81 = arith.constant dense<0.000000e+00> : vector<16x64xf32>
    %88 = tpu.matmul %85, %87, %cst_81 {dimension_numbers = #tpu.dot_dimension_numbers<[1], [0], [0], [1], [0, 0, 1, 1], [], []>} : vector<16x64xbf16>, vector<64x64xbf16>, vector<16x64xf32> -> vector<16x64xf32>
    %c0_82 = arith.constant 0 : index
    %c4_83 = arith.constant 4 : index
    %c0_84 = arith.constant 0 : index
    %c0_85 = arith.constant 0 : index
    %89 = vector.load %arg4[%c0_82, %c4_83, %c0_84, %c0_85] : memref<9x5x1x64xf32, #tpu.memory_space<vmem>>, vector<1x1x1x64xf32>
    %90 = vector.shape_cast %89 : vector<1x1x1x64xf32> to vector<1x64xf32>
    %91 = vector.broadcast %90 : vector<1x64xf32> to vector<16x64xf32>
    %92 = arith.addf %88, %91 : vector<16x64xf32>
    %c0_86 = arith.constant 0 : index
    %c4_87 = arith.constant 4 : index
    %c0_88 = arith.constant 0 : index
    %c0_89 = arith.constant 0 : index
    %93 = vector.load %arg5[%c0_86, %c4_87, %c0_88, %c0_89] : memref<9x6x1x64xf32, #tpu.memory_space<vmem>>, vector<1x1x1x64xf32>
    %94 = vector.shape_cast %93 : vector<1x1x1x64xf32> to vector<1x64xf32>
    %95 = vector.broadcast %94 : vector<1x64xf32> to vector<16x64xf32>
    %96 = arith.mulf %92, %95 : vector<16x64xf32>
    %c0_90 = arith.constant 0 : index
    %c4_91 = arith.constant 4 : index
    %c0_92 = arith.constant 0 : index
    %c0_93 = arith.constant 0 : index
    %97 = vector.load %arg6[%c0_90, %c4_91, %c0_92, %c0_93] : memref<9x6x1x64xf32, #tpu.memory_space<vmem>>, vector<1x1x1x64xf32>
    %98 = vector.shape_cast %97 : vector<1x1x1x64xf32> to vector<1x64xf32>
    %99 = vector.broadcast %98 : vector<1x64xf32> to vector<16x64xf32>
    %100 = arith.addf %96, %99 : vector<16x64xf32>
    %cst_94 = arith.constant 0.000000e+00 : f32
    %101 = vector.broadcast %cst_94 : f32 to vector<16x64xf32>
    %102 = arith.maximumf %100, %101 : vector<16x64xf32>
    %c0_95 = arith.constant 0 : index
    %c5 = arith.constant 5 : index
    %c0_96 = arith.constant 0 : index
    %c0_97 = arith.constant 0 : index
    %103 = vector.load %arg5[%c0_95, %c5, %c0_96, %c0_97] : memref<9x6x1x64xf32, #tpu.memory_space<vmem>>, vector<1x1x1x64xf32>
    %104 = vector.shape_cast %103 : vector<1x1x1x64xf32> to vector<1x64xf32>
    %105 = vector.broadcast %104 : vector<1x64xf32> to vector<16x64xf32>
    %106 = arith.mulf %102, %105 : vector<16x64xf32>
    %c0_98 = arith.constant 0 : index
    %c5_99 = arith.constant 5 : index
    %c0_100 = arith.constant 0 : index
    %c0_101 = arith.constant 0 : index
    %107 = vector.load %arg6[%c0_98, %c5_99, %c0_100, %c0_101] : memref<9x6x1x64xf32, #tpu.memory_space<vmem>>, vector<1x1x1x64xf32>
    %108 = vector.shape_cast %107 : vector<1x1x1x64xf32> to vector<1x64xf32>
    %109 = vector.broadcast %108 : vector<1x64xf32> to vector<16x64xf32>
    %110 = arith.addf %106, %109 : vector<16x64xf32>
    %cst_102 = arith.constant 0.000000e+00 : f32
    %111 = vector.broadcast %cst_102 : f32 to vector<16x64xf32>
    %112 = arith.maximumf %110, %111 : vector<16x64xf32>
    %113 = arith.truncf %112 : vector<16x64xf32> to vector<16x64xbf16>
    %c1_103 = arith.constant 1 : index
    %c0_104 = arith.constant 0 : index
    %c0_105 = arith.constant 0 : index
    %114 = vector.load %arg7[%c1_103, %c0_104, %c0_105] : memref<10x64x2xbf16, #tpu.memory_space<vmem>>, vector<1x64x2xbf16>
    %115 = vector.shape_cast %114 : vector<1x64x2xbf16> to vector<64x2xbf16>
    %cst_106 = arith.constant dense<0.000000e+00> : vector<16x2xf32>
    %116 = tpu.matmul %113, %115, %cst_106 {dimension_numbers = #tpu.dot_dimension_numbers<[1], [0], [0], [1], [0, 0, 1, 1], [], []>} : vector<16x64xbf16>, vector<64x2xbf16>, vector<16x2xf32> -> vector<16x2xf32>
    %117 = arith.addf %5, %116 : vector<16x2xf32>
    %c1_107 = arith.constant 1 : index
    %118 = memref.load %arg0[%c1_107] : memref<9xf32, #tpu.memory_space<smem>>
    %119 = arith.truncf %112 : vector<16x64xf32> to vector<16x64xbf16>
    %cst_108 = arith.constant dense<0.000000e+00> : vector<16x64xf32>
    %120 = tpu.matmul %0, %119, %cst_108 {dimension_numbers = #tpu.dot_dimension_numbers<[1], [0], [0], [1], [0, 0, 1, 1], [], []>} : vector<16x16xbf16>, vector<16x64xbf16>, vector<16x64xf32> -> vector<16x64xf32>
    %cst_109 = arith.constant 1.000000e+00 : f32
    %121 = arith.addf %cst_109, %118 : f32
    %122 = vector.broadcast %121 : f32 to vector<16x64xf32>
    %123 = arith.mulf %122, %112 : vector<16x64xf32>
    %124 = arith.addf %120, %123 : vector<16x64xf32>
    %125 = arith.truncf %124 : vector<16x64xf32> to vector<16x64xbf16>
    %c1_110 = arith.constant 1 : index
    %c0_111 = arith.constant 0 : index
    %c0_112 = arith.constant 0 : index
    %c0_113 = arith.constant 0 : index
    %126 = vector.load %arg3[%c1_110, %c0_111, %c0_112, %c0_113] : memref<9x5x64x64xbf16, #tpu.memory_space<vmem>>, vector<1x1x64x64xbf16>
    %127 = vector.shape_cast %126 : vector<1x1x64x64xbf16> to vector<64x64xbf16>
    %cst_114 = arith.constant dense<0.000000e+00> : vector<16x64xf32>
    %128 = tpu.matmul %125, %127, %cst_114 {dimension_numbers = #tpu.dot_dimension_numbers<[1], [0], [0], [1], [0, 0, 1, 1], [], []>} : vector<16x64xbf16>, vector<64x64xbf16>, vector<16x64xf32> -> vector<16x64xf32>
    %c1_115 = arith.constant 1 : index
    %c0_116 = arith.constant 0 : index
    %c0_117 = arith.constant 0 : index
    %c0_118 = arith.constant 0 : index
    %129 = vector.load %arg4[%c1_115, %c0_116, %c0_117, %c0_118] : memref<9x5x1x64xf32, #tpu.memory_space<vmem>>, vector<1x1x1x64xf32>
    %130 = vector.shape_cast %129 : vector<1x1x1x64xf32> to vector<1x64xf32>
    %131 = vector.broadcast %130 : vector<1x64xf32> to vector<16x64xf32>
    %132 = arith.addf %128, %131 : vector<16x64xf32>
    %c1_119 = arith.constant 1 : index
    %c0_120 = arith.constant 0 : index
    %c0_121 = arith.constant 0 : index
    %c0_122 = arith.constant 0 : index
    %133 = vector.load %arg5[%c1_119, %c0_120, %c0_121, %c0_122] : memref<9x6x1x64xf32, #tpu.memory_space<vmem>>, vector<1x1x1x64xf32>
    %134 = vector.shape_cast %133 : vector<1x1x1x64xf32> to vector<1x64xf32>
    %135 = vector.broadcast %134 : vector<1x64xf32> to vector<16x64xf32>
    %136 = arith.mulf %132, %135 : vector<16x64xf32>
    %c1_123 = arith.constant 1 : index
    %c0_124 = arith.constant 0 : index
    %c0_125 = arith.constant 0 : index
    %c0_126 = arith.constant 0 : index
    %137 = vector.load %arg6[%c1_123, %c0_124, %c0_125, %c0_126] : memref<9x6x1x64xf32, #tpu.memory_space<vmem>>, vector<1x1x1x64xf32>
    %138 = vector.shape_cast %137 : vector<1x1x1x64xf32> to vector<1x64xf32>
    %139 = vector.broadcast %138 : vector<1x64xf32> to vector<16x64xf32>
    %140 = arith.addf %136, %139 : vector<16x64xf32>
    %cst_127 = arith.constant 0.000000e+00 : f32
    %141 = vector.broadcast %cst_127 : f32 to vector<16x64xf32>
    %142 = arith.maximumf %140, %141 : vector<16x64xf32>
    %143 = arith.truncf %142 : vector<16x64xf32> to vector<16x64xbf16>
    %c1_128 = arith.constant 1 : index
    %c1_129 = arith.constant 1 : index
    %c0_130 = arith.constant 0 : index
    %c0_131 = arith.constant 0 : index
    %144 = vector.load %arg3[%c1_128, %c1_129, %c0_130, %c0_131] : memref<9x5x64x64xbf16, #tpu.memory_space<vmem>>, vector<1x1x64x64xbf16>
    %145 = vector.shape_cast %144 : vector<1x1x64x64xbf16> to vector<64x64xbf16>
    %cst_132 = arith.constant dense<0.000000e+00> : vector<16x64xf32>
    %146 = tpu.matmul %143, %145, %cst_132 {dimension_numbers = #tpu.dot_dimension_numbers<[1], [0], [0], [1], [0, 0, 1, 1], [], []>} : vector<16x64xbf16>, vector<64x64xbf16>, vector<16x64xf32> -> vector<16x64xf32>
    %c1_133 = arith.constant 1 : index
    %c1_134 = arith.constant 1 : index
    %c0_135 = arith.constant 0 : index
    %c0_136 = arith.constant 0 : index
    %147 = vector.load %arg4[%c1_133, %c1_134, %c0_135, %c0_136] : memref<9x5x1x64xf32, #tpu.memory_space<vmem>>, vector<1x1x1x64xf32>
    %148 = vector.shape_cast %147 : vector<1x1x1x64xf32> to vector<1x64xf32>
    %149 = vector.broadcast %148 : vector<1x64xf32> to vector<16x64xf32>
    %150 = arith.addf %146, %149 : vector<16x64xf32>
    %c1_137 = arith.constant 1 : index
    %c1_138 = arith.constant 1 : index
    %c0_139 = arith.constant 0 : index
    %c0_140 = arith.constant 0 : index
    %151 = vector.load %arg5[%c1_137, %c1_138, %c0_139, %c0_140] : memref<9x6x1x64xf32, #tpu.memory_space<vmem>>, vector<1x1x1x64xf32>
    %152 = vector.shape_cast %151 : vector<1x1x1x64xf32> to vector<1x64xf32>
    %153 = vector.broadcast %152 : vector<1x64xf32> to vector<16x64xf32>
    %154 = arith.mulf %150, %153 : vector<16x64xf32>
    %c1_141 = arith.constant 1 : index
    %c1_142 = arith.constant 1 : index
    %c0_143 = arith.constant 0 : index
    %c0_144 = arith.constant 0 : index
    %155 = vector.load %arg6[%c1_141, %c1_142, %c0_143, %c0_144] : memref<9x6x1x64xf32, #tpu.memory_space<vmem>>, vector<1x1x1x64xf32>
    %156 = vector.shape_cast %155 : vector<1x1x1x64xf32> to vector<1x64xf32>
    %157 = vector.broadcast %156 : vector<1x64xf32> to vector<16x64xf32>
    %158 = arith.addf %154, %157 : vector<16x64xf32>
    %cst_145 = arith.constant 0.000000e+00 : f32
    %159 = vector.broadcast %cst_145 : f32 to vector<16x64xf32>
    %160 = arith.maximumf %158, %159 : vector<16x64xf32>
    %161 = arith.truncf %160 : vector<16x64xf32> to vector<16x64xbf16>
    %c1_146 = arith.constant 1 : index
    %c2_147 = arith.constant 2 : index
    %c0_148 = arith.constant 0 : index
    %c0_149 = arith.constant 0 : index
    %162 = vector.load %arg3[%c1_146, %c2_147, %c0_148, %c0_149] : memref<9x5x64x64xbf16, #tpu.memory_space<vmem>>, vector<1x1x64x64xbf16>
    %163 = vector.shape_cast %162 : vector<1x1x64x64xbf16> to vector<64x64xbf16>
    %cst_150 = arith.constant dense<0.000000e+00> : vector<16x64xf32>
    %164 = tpu.matmul %161, %163, %cst_150 {dimension_numbers = #tpu.dot_dimension_numbers<[1], [0], [0], [1], [0, 0, 1, 1], [], []>} : vector<16x64xbf16>, vector<64x64xbf16>, vector<16x64xf32> -> vector<16x64xf32>
    %c1_151 = arith.constant 1 : index
    %c2_152 = arith.constant 2 : index
    %c0_153 = arith.constant 0 : index
    %c0_154 = arith.constant 0 : index
    %165 = vector.load %arg4[%c1_151, %c2_152, %c0_153, %c0_154] : memref<9x5x1x64xf32, #tpu.memory_space<vmem>>, vector<1x1x1x64xf32>
    %166 = vector.shape_cast %165 : vector<1x1x1x64xf32> to vector<1x64xf32>
    %167 = vector.broadcast %166 : vector<1x64xf32> to vector<16x64xf32>
    %168 = arith.addf %164, %167 : vector<16x64xf32>
    %c1_155 = arith.constant 1 : index
    %c2_156 = arith.constant 2 : index
    %c0_157 = arith.constant 0 : index
    %c0_158 = arith.constant 0 : index
    %169 = vector.load %arg5[%c1_155, %c2_156, %c0_157, %c0_158] : memref<9x6x1x64xf32, #tpu.memory_space<vmem>>, vector<1x1x1x64xf32>
    %170 = vector.shape_cast %169 : vector<1x1x1x64xf32> to vector<1x64xf32>
    %171 = vector.broadcast %170 : vector<1x64xf32> to vector<16x64xf32>
    %172 = arith.mulf %168, %171 : vector<16x64xf32>
    %c1_159 = arith.constant 1 : index
    %c2_160 = arith.constant 2 : index
    %c0_161 = arith.constant 0 : index
    %c0_162 = arith.constant 0 : index
    %173 = vector.load %arg6[%c1_159, %c2_160, %c0_161, %c0_162] : memref<9x6x1x64xf32, #tpu.memory_space<vmem>>, vector<1x1x1x64xf32>
    %174 = vector.shape_cast %173 : vector<1x1x1x64xf32> to vector<1x64xf32>
    %175 = vector.broadcast %174 : vector<1x64xf32> to vector<16x64xf32>
    %176 = arith.addf %172, %175 : vector<16x64xf32>
    %cst_163 = arith.constant 0.000000e+00 : f32
    %177 = vector.broadcast %cst_163 : f32 to vector<16x64xf32>
    %178 = arith.maximumf %176, %177 : vector<16x64xf32>
    %179 = arith.truncf %178 : vector<16x64xf32> to vector<16x64xbf16>
    %c1_164 = arith.constant 1 : index
    %c3_165 = arith.constant 3 : index
    %c0_166 = arith.constant 0 : index
    %c0_167 = arith.constant 0 : index
    %180 = vector.load %arg3[%c1_164, %c3_165, %c0_166, %c0_167] : memref<9x5x64x64xbf16, #tpu.memory_space<vmem>>, vector<1x1x64x64xbf16>
    %181 = vector.shape_cast %180 : vector<1x1x64x64xbf16> to vector<64x64xbf16>
    %cst_168 = arith.constant dense<0.000000e+00> : vector<16x64xf32>
    %182 = tpu.matmul %179, %181, %cst_168 {dimension_numbers = #tpu.dot_dimension_numbers<[1], [0], [0], [1], [0, 0, 1, 1], [], []>} : vector<16x64xbf16>, vector<64x64xbf16>, vector<16x64xf32> -> vector<16x64xf32>
    %c1_169 = arith.constant 1 : index
    %c3_170 = arith.constant 3 : index
    %c0_171 = arith.constant 0 : index
    %c0_172 = arith.constant 0 : index
    %183 = vector.load %arg4[%c1_169, %c3_170, %c0_171, %c0_172] : memref<9x5x1x64xf32, #tpu.memory_space<vmem>>, vector<1x1x1x64xf32>
    %184 = vector.shape_cast %183 : vector<1x1x1x64xf32> to vector<1x64xf32>
    %185 = vector.broadcast %184 : vector<1x64xf32> to vector<16x64xf32>
    %186 = arith.addf %182, %185 : vector<16x64xf32>
    %c1_173 = arith.constant 1 : index
    %c3_174 = arith.constant 3 : index
    %c0_175 = arith.constant 0 : index
    %c0_176 = arith.constant 0 : index
    %187 = vector.load %arg5[%c1_173, %c3_174, %c0_175, %c0_176] : memref<9x6x1x64xf32, #tpu.memory_space<vmem>>, vector<1x1x1x64xf32>
    %188 = vector.shape_cast %187 : vector<1x1x1x64xf32> to vector<1x64xf32>
    %189 = vector.broadcast %188 : vector<1x64xf32> to vector<16x64xf32>
    %190 = arith.mulf %186, %189 : vector<16x64xf32>
    %c1_177 = arith.constant 1 : index
    %c3_178 = arith.constant 3 : index
    %c0_179 = arith.constant 0 : index
    %c0_180 = arith.constant 0 : index
    %191 = vector.load %arg6[%c1_177, %c3_178, %c0_179, %c0_180] : memref<9x6x1x64xf32, #tpu.memory_space<vmem>>, vector<1x1x1x64xf32>
    %192 = vector.shape_cast %191 : vector<1x1x1x64xf32> to vector<1x64xf32>
    %193 = vector.broadcast %192 : vector<1x64xf32> to vector<16x64xf32>
    %194 = arith.addf %190, %193 : vector<16x64xf32>
    %cst_181 = arith.constant 0.000000e+00 : f32
    %195 = vector.broadcast %cst_181 : f32 to vector<16x64xf32>
    %196 = arith.maximumf %194, %195 : vector<16x64xf32>
    %197 = arith.truncf %196 : vector<16x64xf32> to vector<16x64xbf16>
    %c1_182 = arith.constant 1 : index
    %c4_183 = arith.constant 4 : index
    %c0_184 = arith.constant 0 : index
    %c0_185 = arith.constant 0 : index
    %198 = vector.load %arg3[%c1_182, %c4_183, %c0_184, %c0_185] : memref<9x5x64x64xbf16, #tpu.memory_space<vmem>>, vector<1x1x64x64xbf16>
    %199 = vector.shape_cast %198 : vector<1x1x64x64xbf16> to vector<64x64xbf16>
    %cst_186 = arith.constant dense<0.000000e+00> : vector<16x64xf32>
    %200 = tpu.matmul %197, %199, %cst_186 {dimension_numbers = #tpu.dot_dimension_numbers<[1], [0], [0], [1], [0, 0, 1, 1], [], []>} : vector<16x64xbf16>, vector<64x64xbf16>, vector<16x64xf32> -> vector<16x64xf32>
    %c1_187 = arith.constant 1 : index
    %c4_188 = arith.constant 4 : index
    %c0_189 = arith.constant 0 : index
    %c0_190 = arith.constant 0 : index
    %201 = vector.load %arg4[%c1_187, %c4_188, %c0_189, %c0_190] : memref<9x5x1x64xf32, #tpu.memory_space<vmem>>, vector<1x1x1x64xf32>
    %202 = vector.shape_cast %201 : vector<1x1x1x64xf32> to vector<1x64xf32>
    %203 = vector.broadcast %202 : vector<1x64xf32> to vector<16x64xf32>
    %204 = arith.addf %200, %203 : vector<16x64xf32>
    %c1_191 = arith.constant 1 : index
    %c4_192 = arith.constant 4 : index
    %c0_193 = arith.constant 0 : index
    %c0_194 = arith.constant 0 : index
    %205 = vector.load %arg5[%c1_191, %c4_192, %c0_193, %c0_194] : memref<9x6x1x64xf32, #tpu.memory_space<vmem>>, vector<1x1x1x64xf32>
    %206 = vector.shape_cast %205 : vector<1x1x1x64xf32> to vector<1x64xf32>
    %207 = vector.broadcast %206 : vector<1x64xf32> to vector<16x64xf32>
    %208 = arith.mulf %204, %207 : vector<16x64xf32>
    %c1_195 = arith.constant 1 : index
    %c4_196 = arith.constant 4 : index
    %c0_197 = arith.constant 0 : index
    %c0_198 = arith.constant 0 : index
    %209 = vector.load %arg6[%c1_195, %c4_196, %c0_197, %c0_198] : memref<9x6x1x64xf32, #tpu.memory_space<vmem>>, vector<1x1x1x64xf32>
    %210 = vector.shape_cast %209 : vector<1x1x1x64xf32> to vector<1x64xf32>
    %211 = vector.broadcast %210 : vector<1x64xf32> to vector<16x64xf32>
    %212 = arith.addf %208, %211 : vector<16x64xf32>
    %cst_199 = arith.constant 0.000000e+00 : f32
    %213 = vector.broadcast %cst_199 : f32 to vector<16x64xf32>
    %214 = arith.maximumf %212, %213 : vector<16x64xf32>
    %c1_200 = arith.constant 1 : index
    %c5_201 = arith.constant 5 : index
    %c0_202 = arith.constant 0 : index
    %c0_203 = arith.constant 0 : index
    %215 = vector.load %arg5[%c1_200, %c5_201, %c0_202, %c0_203] : memref<9x6x1x64xf32, #tpu.memory_space<vmem>>, vector<1x1x1x64xf32>
    %216 = vector.shape_cast %215 : vector<1x1x1x64xf32> to vector<1x64xf32>
    %217 = vector.broadcast %216 : vector<1x64xf32> to vector<16x64xf32>
    %218 = arith.mulf %214, %217 : vector<16x64xf32>
    %c1_204 = arith.constant 1 : index
    %c5_205 = arith.constant 5 : index
    %c0_206 = arith.constant 0 : index
    %c0_207 = arith.constant 0 : index
    %219 = vector.load %arg6[%c1_204, %c5_205, %c0_206, %c0_207] : memref<9x6x1x64xf32, #tpu.memory_space<vmem>>, vector<1x1x1x64xf32>
    %220 = vector.shape_cast %219 : vector<1x1x1x64xf32> to vector<1x64xf32>
    %221 = vector.broadcast %220 : vector<1x64xf32> to vector<16x64xf32>
    %222 = arith.addf %218, %221 : vector<16x64xf32>
    %cst_208 = arith.constant 0.000000e+00 : f32
    %223 = vector.broadcast %cst_208 : f32 to vector<16x64xf32>
    %224 = arith.maximumf %222, %223 : vector<16x64xf32>
    %225 = arith.truncf %224 : vector<16x64xf32> to vector<16x64xbf16>
    %c2_209 = arith.constant 2 : index
    %c0_210 = arith.constant 0 : index
    %c0_211 = arith.constant 0 : index
    %226 = vector.load %arg7[%c2_209, %c0_210, %c0_211] : memref<10x64x2xbf16, #tpu.memory_space<vmem>>, vector<1x64x2xbf16>
    %227 = vector.shape_cast %226 : vector<1x64x2xbf16> to vector<64x2xbf16>
    %cst_212 = arith.constant dense<0.000000e+00> : vector<16x2xf32>
    %228 = tpu.matmul %225, %227, %cst_212 {dimension_numbers = #tpu.dot_dimension_numbers<[1], [0], [0], [1], [0, 0, 1, 1], [], []>} : vector<16x64xbf16>, vector<64x2xbf16>, vector<16x2xf32> -> vector<16x2xf32>
    %229 = arith.addf %117, %228 : vector<16x2xf32>
    %c2_213 = arith.constant 2 : index
    %230 = memref.load %arg0[%c2_213] : memref<9xf32, #tpu.memory_space<smem>>
    %231 = arith.truncf %224 : vector<16x64xf32> to vector<16x64xbf16>
    %cst_214 = arith.constant dense<0.000000e+00> : vector<16x64xf32>
    %232 = tpu.matmul %0, %231, %cst_214 {dimension_numbers = #tpu.dot_dimension_numbers<[1], [0], [0], [1], [0, 0, 1, 1], [], []>} : vector<16x16xbf16>, vector<16x64xbf16>, vector<16x64xf32> -> vector<16x64xf32>
    %cst_215 = arith.constant 1.000000e+00 : f32
    %233 = arith.addf %cst_215, %230 : f32
    %234 = vector.broadcast %233 : f32 to vector<16x64xf32>
    %235 = arith.mulf %234, %224 : vector<16x64xf32>
    %236 = arith.addf %232, %235 : vector<16x64xf32>
    %237 = arith.truncf %236 : vector<16x64xf32> to vector<16x64xbf16>
    %c2_216 = arith.constant 2 : index
    %c0_217 = arith.constant 0 : index
    %c0_218 = arith.constant 0 : index
    %c0_219 = arith.constant 0 : index
    %238 = vector.load %arg3[%c2_216, %c0_217, %c0_218, %c0_219] : memref<9x5x64x64xbf16, #tpu.memory_space<vmem>>, vector<1x1x64x64xbf16>
    %239 = vector.shape_cast %238 : vector<1x1x64x64xbf16> to vector<64x64xbf16>
    %cst_220 = arith.constant dense<0.000000e+00> : vector<16x64xf32>
    %240 = tpu.matmul %237, %239, %cst_220 {dimension_numbers = #tpu.dot_dimension_numbers<[1], [0], [0], [1], [0, 0, 1, 1], [], []>} : vector<16x64xbf16>, vector<64x64xbf16>, vector<16x64xf32> -> vector<16x64xf32>
    %c2_221 = arith.constant 2 : index
    %c0_222 = arith.constant 0 : index
    %c0_223 = arith.constant 0 : index
    %c0_224 = arith.constant 0 : index
    %241 = vector.load %arg4[%c2_221, %c0_222, %c0_223, %c0_224] : memref<9x5x1x64xf32, #tpu.memory_space<vmem>>, vector<1x1x1x64xf32>
    %242 = vector.shape_cast %241 : vector<1x1x1x64xf32> to vector<1x64xf32>
    %243 = vector.broadcast %242 : vector<1x64xf32> to vector<16x64xf32>
    %244 = arith.addf %240, %243 : vector<16x64xf32>
    %c2_225 = arith.constant 2 : index
    %c0_226 = arith.constant 0 : index
    %c0_227 = arith.constant 0 : index
    %c0_228 = arith.constant 0 : index
    %245 = vector.load %arg5[%c2_225, %c0_226, %c0_227, %c0_228] : memref<9x6x1x64xf32, #tpu.memory_space<vmem>>, vector<1x1x1x64xf32>
    %246 = vector.shape_cast %245 : vector<1x1x1x64xf32> to vector<1x64xf32>
    %247 = vector.broadcast %246 : vector<1x64xf32> to vector<16x64xf32>
    %248 = arith.mulf %244, %247 : vector<16x64xf32>
    %c2_229 = arith.constant 2 : index
    %c0_230 = arith.constant 0 : index
    %c0_231 = arith.constant 0 : index
    %c0_232 = arith.constant 0 : index
    %249 = vector.load %arg6[%c2_229, %c0_230, %c0_231, %c0_232] : memref<9x6x1x64xf32, #tpu.memory_space<vmem>>, vector<1x1x1x64xf32>
    %250 = vector.shape_cast %249 : vector<1x1x1x64xf32> to vector<1x64xf32>
    %251 = vector.broadcast %250 : vector<1x64xf32> to vector<16x64xf32>
    %252 = arith.addf %248, %251 : vector<16x64xf32>
    %cst_233 = arith.constant 0.000000e+00 : f32
    %253 = vector.broadcast %cst_233 : f32 to vector<16x64xf32>
    %254 = arith.maximumf %252, %253 : vector<16x64xf32>
    %255 = arith.truncf %254 : vector<16x64xf32> to vector<16x64xbf16>
    %c2_234 = arith.constant 2 : index
    %c1_235 = arith.constant 1 : index
    %c0_236 = arith.constant 0 : index
    %c0_237 = arith.constant 0 : index
    %256 = vector.load %arg3[%c2_234, %c1_235, %c0_236, %c0_237] : memref<9x5x64x64xbf16, #tpu.memory_space<vmem>>, vector<1x1x64x64xbf16>
    %257 = vector.shape_cast %256 : vector<1x1x64x64xbf16> to vector<64x64xbf16>
    %cst_238 = arith.constant dense<0.000000e+00> : vector<16x64xf32>
    %258 = tpu.matmul %255, %257, %cst_238 {dimension_numbers = #tpu.dot_dimension_numbers<[1], [0], [0], [1], [0, 0, 1, 1], [], []>} : vector<16x64xbf16>, vector<64x64xbf16>, vector<16x64xf32> -> vector<16x64xf32>
    %c2_239 = arith.constant 2 : index
    %c1_240 = arith.constant 1 : index
    %c0_241 = arith.constant 0 : index
    %c0_242 = arith.constant 0 : index
    %259 = vector.load %arg4[%c2_239, %c1_240, %c0_241, %c0_242] : memref<9x5x1x64xf32, #tpu.memory_space<vmem>>, vector<1x1x1x64xf32>
    %260 = vector.shape_cast %259 : vector<1x1x1x64xf32> to vector<1x64xf32>
    %261 = vector.broadcast %260 : vector<1x64xf32> to vector<16x64xf32>
    %262 = arith.addf %258, %261 : vector<16x64xf32>
    %c2_243 = arith.constant 2 : index
    %c1_244 = arith.constant 1 : index
    %c0_245 = arith.constant 0 : index
    %c0_246 = arith.constant 0 : index
    %263 = vector.load %arg5[%c2_243, %c1_244, %c0_245, %c0_246] : memref<9x6x1x64xf32, #tpu.memory_space<vmem>>, vector<1x1x1x64xf32>
    %264 = vector.shape_cast %263 : vector<1x1x1x64xf32> to vector<1x64xf32>
    %265 = vector.broadcast %264 : vector<1x64xf32> to vector<16x64xf32>
    %266 = arith.mulf %262, %265 : vector<16x64xf32>
    %c2_247 = arith.constant 2 : index
    %c1_248 = arith.constant 1 : index
    %c0_249 = arith.constant 0 : index
    %c0_250 = arith.constant 0 : index
    %267 = vector.load %arg6[%c2_247, %c1_248, %c0_249, %c0_250] : memref<9x6x1x64xf32, #tpu.memory_space<vmem>>, vector<1x1x1x64xf32>
    %268 = vector.shape_cast %267 : vector<1x1x1x64xf32> to vector<1x64xf32>
    %269 = vector.broadcast %268 : vector<1x64xf32> to vector<16x64xf32>
    %270 = arith.addf %266, %269 : vector<16x64xf32>
    %cst_251 = arith.constant 0.000000e+00 : f32
    %271 = vector.broadcast %cst_251 : f32 to vector<16x64xf32>
    %272 = arith.maximumf %270, %271 : vector<16x64xf32>
    %273 = arith.truncf %272 : vector<16x64xf32> to vector<16x64xbf16>
    %c2_252 = arith.constant 2 : index
    %c2_253 = arith.constant 2 : index
    %c0_254 = arith.constant 0 : index
    %c0_255 = arith.constant 0 : index
    %274 = vector.load %arg3[%c2_252, %c2_253, %c0_254, %c0_255] : memref<9x5x64x64xbf16, #tpu.memory_space<vmem>>, vector<1x1x64x64xbf16>
    %275 = vector.shape_cast %274 : vector<1x1x64x64xbf16> to vector<64x64xbf16>
    %cst_256 = arith.constant dense<0.000000e+00> : vector<16x64xf32>
    %276 = tpu.matmul %273, %275, %cst_256 {dimension_numbers = #tpu.dot_dimension_numbers<[1], [0], [0], [1], [0, 0, 1, 1], [], []>} : vector<16x64xbf16>, vector<64x64xbf16>, vector<16x64xf32> -> vector<16x64xf32>
    %c2_257 = arith.constant 2 : index
    %c2_258 = arith.constant 2 : index
    %c0_259 = arith.constant 0 : index
    %c0_260 = arith.constant 0 : index
    %277 = vector.load %arg4[%c2_257, %c2_258, %c0_259, %c0_260] : memref<9x5x1x64xf32, #tpu.memory_space<vmem>>, vector<1x1x1x64xf32>
    %278 = vector.shape_cast %277 : vector<1x1x1x64xf32> to vector<1x64xf32>
    %279 = vector.broadcast %278 : vector<1x64xf32> to vector<16x64xf32>
    %280 = arith.addf %276, %279 : vector<16x64xf32>
    %c2_261 = arith.constant 2 : index
    %c2_262 = arith.constant 2 : index
    %c0_263 = arith.constant 0 : index
    %c0_264 = arith.constant 0 : index
    %281 = vector.load %arg5[%c2_261, %c2_262, %c0_263, %c0_264] : memref<9x6x1x64xf32, #tpu.memory_space<vmem>>, vector<1x1x1x64xf32>
    %282 = vector.shape_cast %281 : vector<1x1x1x64xf32> to vector<1x64xf32>
    %283 = vector.broadcast %282 : vector<1x64xf32> to vector<16x64xf32>
    %284 = arith.mulf %280, %283 : vector<16x64xf32>
    %c2_265 = arith.constant 2 : index
    %c2_266 = arith.constant 2 : index
    %c0_267 = arith.constant 0 : index
    %c0_268 = arith.constant 0 : index
    %285 = vector.load %arg6[%c2_265, %c2_266, %c0_267, %c0_268] : memref<9x6x1x64xf32, #tpu.memory_space<vmem>>, vector<1x1x1x64xf32>
    %286 = vector.shape_cast %285 : vector<1x1x1x64xf32> to vector<1x64xf32>
    %287 = vector.broadcast %286 : vector<1x64xf32> to vector<16x64xf32>
    %288 = arith.addf %284, %287 : vector<16x64xf32>
    %cst_269 = arith.constant 0.000000e+00 : f32
    %289 = vector.broadcast %cst_269 : f32 to vector<16x64xf32>
    %290 = arith.maximumf %288, %289 : vector<16x64xf32>
    %291 = arith.truncf %290 : vector<16x64xf32> to vector<16x64xbf16>
    %c2_270 = arith.constant 2 : index
    %c3_271 = arith.constant 3 : index
    %c0_272 = arith.constant 0 : index
    %c0_273 = arith.constant 0 : index
    %292 = vector.load %arg3[%c2_270, %c3_271, %c0_272, %c0_273] : memref<9x5x64x64xbf16, #tpu.memory_space<vmem>>, vector<1x1x64x64xbf16>
    %293 = vector.shape_cast %292 : vector<1x1x64x64xbf16> to vector<64x64xbf16>
    %cst_274 = arith.constant dense<0.000000e+00> : vector<16x64xf32>
    %294 = tpu.matmul %291, %293, %cst_274 {dimension_numbers = #tpu.dot_dimension_numbers<[1], [0], [0], [1], [0, 0, 1, 1], [], []>} : vector<16x64xbf16>, vector<64x64xbf16>, vector<16x64xf32> -> vector<16x64xf32>
    %c2_275 = arith.constant 2 : index
    %c3_276 = arith.constant 3 : index
    %c0_277 = arith.constant 0 : index
    %c0_278 = arith.constant 0 : index
    %295 = vector.load %arg4[%c2_275, %c3_276, %c0_277, %c0_278] : memref<9x5x1x64xf32, #tpu.memory_space<vmem>>, vector<1x1x1x64xf32>
    %296 = vector.shape_cast %295 : vector<1x1x1x64xf32> to vector<1x64xf32>
    %297 = vector.broadcast %296 : vector<1x64xf32> to vector<16x64xf32>
    %298 = arith.addf %294, %297 : vector<16x64xf32>
    %c2_279 = arith.constant 2 : index
    %c3_280 = arith.constant 3 : index
    %c0_281 = arith.constant 0 : index
    %c0_282 = arith.constant 0 : index
    %299 = vector.load %arg5[%c2_279, %c3_280, %c0_281, %c0_282] : memref<9x6x1x64xf32, #tpu.memory_space<vmem>>, vector<1x1x1x64xf32>
    %300 = vector.shape_cast %299 : vector<1x1x1x64xf32> to vector<1x64xf32>
    %301 = vector.broadcast %300 : vector<1x64xf32> to vector<16x64xf32>
    %302 = arith.mulf %298, %301 : vector<16x64xf32>
    %c2_283 = arith.constant 2 : index
    %c3_284 = arith.constant 3 : index
    %c0_285 = arith.constant 0 : index
    %c0_286 = arith.constant 0 : index
    %303 = vector.load %arg6[%c2_283, %c3_284, %c0_285, %c0_286] : memref<9x6x1x64xf32, #tpu.memory_space<vmem>>, vector<1x1x1x64xf32>
    %304 = vector.shape_cast %303 : vector<1x1x1x64xf32> to vector<1x64xf32>
    %305 = vector.broadcast %304 : vector<1x64xf32> to vector<16x64xf32>
    %306 = arith.addf %302, %305 : vector<16x64xf32>
    %cst_287 = arith.constant 0.000000e+00 : f32
    %307 = vector.broadcast %cst_287 : f32 to vector<16x64xf32>
    %308 = arith.maximumf %306, %307 : vector<16x64xf32>
    %309 = arith.truncf %308 : vector<16x64xf32> to vector<16x64xbf16>
    %c2_288 = arith.constant 2 : index
    %c4_289 = arith.constant 4 : index
    %c0_290 = arith.constant 0 : index
    %c0_291 = arith.constant 0 : index
    %310 = vector.load %arg3[%c2_288, %c4_289, %c0_290, %c0_291] : memref<9x5x64x64xbf16, #tpu.memory_space<vmem>>, vector<1x1x64x64xbf16>
    %311 = vector.shape_cast %310 : vector<1x1x64x64xbf16> to vector<64x64xbf16>
    %cst_292 = arith.constant dense<0.000000e+00> : vector<16x64xf32>
    %312 = tpu.matmul %309, %311, %cst_292 {dimension_numbers = #tpu.dot_dimension_numbers<[1], [0], [0], [1], [0, 0, 1, 1], [], []>} : vector<16x64xbf16>, vector<64x64xbf16>, vector<16x64xf32> -> vector<16x64xf32>
    %c2_293 = arith.constant 2 : index
    %c4_294 = arith.constant 4 : index
    %c0_295 = arith.constant 0 : index
    %c0_296 = arith.constant 0 : index
    %313 = vector.load %arg4[%c2_293, %c4_294, %c0_295, %c0_296] : memref<9x5x1x64xf32, #tpu.memory_space<vmem>>, vector<1x1x1x64xf32>
    %314 = vector.shape_cast %313 : vector<1x1x1x64xf32> to vector<1x64xf32>
    %315 = vector.broadcast %314 : vector<1x64xf32> to vector<16x64xf32>
    %316 = arith.addf %312, %315 : vector<16x64xf32>
    %c2_297 = arith.constant 2 : index
    %c4_298 = arith.constant 4 : index
    %c0_299 = arith.constant 0 : index
    %c0_300 = arith.constant 0 : index
    %317 = vector.load %arg5[%c2_297, %c4_298, %c0_299, %c0_300] : memref<9x6x1x64xf32, #tpu.memory_space<vmem>>, vector<1x1x1x64xf32>
    %318 = vector.shape_cast %317 : vector<1x1x1x64xf32> to vector<1x64xf32>
    %319 = vector.broadcast %318 : vector<1x64xf32> to vector<16x64xf32>
    %320 = arith.mulf %316, %319 : vector<16x64xf32>
    %c2_301 = arith.constant 2 : index
    %c4_302 = arith.constant 4 : index
    %c0_303 = arith.constant 0 : index
    %c0_304 = arith.constant 0 : index
    %321 = vector.load %arg6[%c2_301, %c4_302, %c0_303, %c0_304] : memref<9x6x1x64xf32, #tpu.memory_space<vmem>>, vector<1x1x1x64xf32>
    %322 = vector.shape_cast %321 : vector<1x1x1x64xf32> to vector<1x64xf32>
    %323 = vector.broadcast %322 : vector<1x64xf32> to vector<16x64xf32>
    %324 = arith.addf %320, %323 : vector<16x64xf32>
    %cst_305 = arith.constant 0.000000e+00 : f32
    %325 = vector.broadcast %cst_305 : f32 to vector<16x64xf32>
    %326 = arith.maximumf %324, %325 : vector<16x64xf32>
    %c2_306 = arith.constant 2 : index
    %c5_307 = arith.constant 5 : index
    %c0_308 = arith.constant 0 : index
    %c0_309 = arith.constant 0 : index
    %327 = vector.load %arg5[%c2_306, %c5_307, %c0_308, %c0_309] : memref<9x6x1x64xf32, #tpu.memory_space<vmem>>, vector<1x1x1x64xf32>
    %328 = vector.shape_cast %327 : vector<1x1x1x64xf32> to vector<1x64xf32>
    %329 = vector.broadcast %328 : vector<1x64xf32> to vector<16x64xf32>
    %330 = arith.mulf %326, %329 : vector<16x64xf32>
    %c2_310 = arith.constant 2 : index
    %c5_311 = arith.constant 5 : index
    %c0_312 = arith.constant 0 : index
    %c0_313 = arith.constant 0 : index
    %331 = vector.load %arg6[%c2_310, %c5_311, %c0_312, %c0_313] : memref<9x6x1x64xf32, #tpu.memory_space<vmem>>, vector<1x1x1x64xf32>
    %332 = vector.shape_cast %331 : vector<1x1x1x64xf32> to vector<1x64xf32>
    %333 = vector.broadcast %332 : vector<1x64xf32> to vector<16x64xf32>
    %334 = arith.addf %330, %333 : vector<16x64xf32>
    %cst_314 = arith.constant 0.000000e+00 : f32
    %335 = vector.broadcast %cst_314 : f32 to vector<16x64xf32>
    %336 = arith.maximumf %334, %335 : vector<16x64xf32>
    %337 = arith.truncf %336 : vector<16x64xf32> to vector<16x64xbf16>
    %c3_315 = arith.constant 3 : index
    %c0_316 = arith.constant 0 : index
    %c0_317 = arith.constant 0 : index
    %338 = vector.load %arg7[%c3_315, %c0_316, %c0_317] : memref<10x64x2xbf16, #tpu.memory_space<vmem>>, vector<1x64x2xbf16>
    %339 = vector.shape_cast %338 : vector<1x64x2xbf16> to vector<64x2xbf16>
    %cst_318 = arith.constant dense<0.000000e+00> : vector<16x2xf32>
    %340 = tpu.matmul %337, %339, %cst_318 {dimension_numbers = #tpu.dot_dimension_numbers<[1], [0], [0], [1], [0, 0, 1, 1], [], []>} : vector<16x64xbf16>, vector<64x2xbf16>, vector<16x2xf32> -> vector<16x2xf32>
    %341 = arith.addf %229, %340 : vector<16x2xf32>
    %c3_319 = arith.constant 3 : index
    %342 = memref.load %arg0[%c3_319] : memref<9xf32, #tpu.memory_space<smem>>
    %343 = arith.truncf %336 : vector<16x64xf32> to vector<16x64xbf16>
    %cst_320 = arith.constant dense<0.000000e+00> : vector<16x64xf32>
    %344 = tpu.matmul %0, %343, %cst_320 {dimension_numbers = #tpu.dot_dimension_numbers<[1], [0], [0], [1], [0, 0, 1, 1], [], []>} : vector<16x16xbf16>, vector<16x64xbf16>, vector<16x64xf32> -> vector<16x64xf32>
    %cst_321 = arith.constant 1.000000e+00 : f32
    %345 = arith.addf %cst_321, %342 : f32
    %346 = vector.broadcast %345 : f32 to vector<16x64xf32>
    %347 = arith.mulf %346, %336 : vector<16x64xf32>
    %348 = arith.addf %344, %347 : vector<16x64xf32>
    %349 = arith.truncf %348 : vector<16x64xf32> to vector<16x64xbf16>
    %c3_322 = arith.constant 3 : index
    %c0_323 = arith.constant 0 : index
    %c0_324 = arith.constant 0 : index
    %c0_325 = arith.constant 0 : index
    %350 = vector.load %arg3[%c3_322, %c0_323, %c0_324, %c0_325] : memref<9x5x64x64xbf16, #tpu.memory_space<vmem>>, vector<1x1x64x64xbf16>
    %351 = vector.shape_cast %350 : vector<1x1x64x64xbf16> to vector<64x64xbf16>
    %cst_326 = arith.constant dense<0.000000e+00> : vector<16x64xf32>
    %352 = tpu.matmul %349, %351, %cst_326 {dimension_numbers = #tpu.dot_dimension_numbers<[1], [0], [0], [1], [0, 0, 1, 1], [], []>} : vector<16x64xbf16>, vector<64x64xbf16>, vector<16x64xf32> -> vector<16x64xf32>
    %c3_327 = arith.constant 3 : index
    %c0_328 = arith.constant 0 : index
    %c0_329 = arith.constant 0 : index
    %c0_330 = arith.constant 0 : index
    %353 = vector.load %arg4[%c3_327, %c0_328, %c0_329, %c0_330] : memref<9x5x1x64xf32, #tpu.memory_space<vmem>>, vector<1x1x1x64xf32>
    %354 = vector.shape_cast %353 : vector<1x1x1x64xf32> to vector<1x64xf32>
    %355 = vector.broadcast %354 : vector<1x64xf32> to vector<16x64xf32>
    %356 = arith.addf %352, %355 : vector<16x64xf32>
    %c3_331 = arith.constant 3 : index
    %c0_332 = arith.constant 0 : index
    %c0_333 = arith.constant 0 : index
    %c0_334 = arith.constant 0 : index
    %357 = vector.load %arg5[%c3_331, %c0_332, %c0_333, %c0_334] : memref<9x6x1x64xf32, #tpu.memory_space<vmem>>, vector<1x1x1x64xf32>
    %358 = vector.shape_cast %357 : vector<1x1x1x64xf32> to vector<1x64xf32>
    %359 = vector.broadcast %358 : vector<1x64xf32> to vector<16x64xf32>
    %360 = arith.mulf %356, %359 : vector<16x64xf32>
    %c3_335 = arith.constant 3 : index
    %c0_336 = arith.constant 0 : index
    %c0_337 = arith.constant 0 : index
    %c0_338 = arith.constant 0 : index
    %361 = vector.load %arg6[%c3_335, %c0_336, %c0_337, %c0_338] : memref<9x6x1x64xf32, #tpu.memory_space<vmem>>, vector<1x1x1x64xf32>
    %362 = vector.shape_cast %361 : vector<1x1x1x64xf32> to vector<1x64xf32>
    %363 = vector.broadcast %362 : vector<1x64xf32> to vector<16x64xf32>
    %364 = arith.addf %360, %363 : vector<16x64xf32>
    %cst_339 = arith.constant 0.000000e+00 : f32
    %365 = vector.broadcast %cst_339 : f32 to vector<16x64xf32>
    %366 = arith.maximumf %364, %365 : vector<16x64xf32>
    %367 = arith.truncf %366 : vector<16x64xf32> to vector<16x64xbf16>
    %c3_340 = arith.constant 3 : index
    %c1_341 = arith.constant 1 : index
    %c0_342 = arith.constant 0 : index
    %c0_343 = arith.constant 0 : index
    %368 = vector.load %arg3[%c3_340, %c1_341, %c0_342, %c0_343] : memref<9x5x64x64xbf16, #tpu.memory_space<vmem>>, vector<1x1x64x64xbf16>
    %369 = vector.shape_cast %368 : vector<1x1x64x64xbf16> to vector<64x64xbf16>
    %cst_344 = arith.constant dense<0.000000e+00> : vector<16x64xf32>
    %370 = tpu.matmul %367, %369, %cst_344 {dimension_numbers = #tpu.dot_dimension_numbers<[1], [0], [0], [1], [0, 0, 1, 1], [], []>} : vector<16x64xbf16>, vector<64x64xbf16>, vector<16x64xf32> -> vector<16x64xf32>
    %c3_345 = arith.constant 3 : index
    %c1_346 = arith.constant 1 : index
    %c0_347 = arith.constant 0 : index
    %c0_348 = arith.constant 0 : index
    %371 = vector.load %arg4[%c3_345, %c1_346, %c0_347, %c0_348] : memref<9x5x1x64xf32, #tpu.memory_space<vmem>>, vector<1x1x1x64xf32>
    %372 = vector.shape_cast %371 : vector<1x1x1x64xf32> to vector<1x64xf32>
    %373 = vector.broadcast %372 : vector<1x64xf32> to vector<16x64xf32>
    %374 = arith.addf %370, %373 : vector<16x64xf32>
    %c3_349 = arith.constant 3 : index
    %c1_350 = arith.constant 1 : index
    %c0_351 = arith.constant 0 : index
    %c0_352 = arith.constant 0 : index
    %375 = vector.load %arg5[%c3_349, %c1_350, %c0_351, %c0_352] : memref<9x6x1x64xf32, #tpu.memory_space<vmem>>, vector<1x1x1x64xf32>
    %376 = vector.shape_cast %375 : vector<1x1x1x64xf32> to vector<1x64xf32>
    %377 = vector.broadcast %376 : vector<1x64xf32> to vector<16x64xf32>
    %378 = arith.mulf %374, %377 : vector<16x64xf32>
    %c3_353 = arith.constant 3 : index
    %c1_354 = arith.constant 1 : index
    %c0_355 = arith.constant 0 : index
    %c0_356 = arith.constant 0 : index
    %379 = vector.load %arg6[%c3_353, %c1_354, %c0_355, %c0_356] : memref<9x6x1x64xf32, #tpu.memory_space<vmem>>, vector<1x1x1x64xf32>
    %380 = vector.shape_cast %379 : vector<1x1x1x64xf32> to vector<1x64xf32>
    %381 = vector.broadcast %380 : vector<1x64xf32> to vector<16x64xf32>
    %382 = arith.addf %378, %381 : vector<16x64xf32>
    %cst_357 = arith.constant 0.000000e+00 : f32
    %383 = vector.broadcast %cst_357 : f32 to vector<16x64xf32>
    %384 = arith.maximumf %382, %383 : vector<16x64xf32>
    %385 = arith.truncf %384 : vector<16x64xf32> to vector<16x64xbf16>
    %c3_358 = arith.constant 3 : index
    %c2_359 = arith.constant 2 : index
    %c0_360 = arith.constant 0 : index
    %c0_361 = arith.constant 0 : index
    %386 = vector.load %arg3[%c3_358, %c2_359, %c0_360, %c0_361] : memref<9x5x64x64xbf16, #tpu.memory_space<vmem>>, vector<1x1x64x64xbf16>
    %387 = vector.shape_cast %386 : vector<1x1x64x64xbf16> to vector<64x64xbf16>
    %cst_362 = arith.constant dense<0.000000e+00> : vector<16x64xf32>
    %388 = tpu.matmul %385, %387, %cst_362 {dimension_numbers = #tpu.dot_dimension_numbers<[1], [0], [0], [1], [0, 0, 1, 1], [], []>} : vector<16x64xbf16>, vector<64x64xbf16>, vector<16x64xf32> -> vector<16x64xf32>
    %c3_363 = arith.constant 3 : index
    %c2_364 = arith.constant 2 : index
    %c0_365 = arith.constant 0 : index
    %c0_366 = arith.constant 0 : index
    %389 = vector.load %arg4[%c3_363, %c2_364, %c0_365, %c0_366] : memref<9x5x1x64xf32, #tpu.memory_space<vmem>>, vector<1x1x1x64xf32>
    %390 = vector.shape_cast %389 : vector<1x1x1x64xf32> to vector<1x64xf32>
    %391 = vector.broadcast %390 : vector<1x64xf32> to vector<16x64xf32>
    %392 = arith.addf %388, %391 : vector<16x64xf32>
    %c3_367 = arith.constant 3 : index
    %c2_368 = arith.constant 2 : index
    %c0_369 = arith.constant 0 : index
    %c0_370 = arith.constant 0 : index
    %393 = vector.load %arg5[%c3_367, %c2_368, %c0_369, %c0_370] : memref<9x6x1x64xf32, #tpu.memory_space<vmem>>, vector<1x1x1x64xf32>
    %394 = vector.shape_cast %393 : vector<1x1x1x64xf32> to vector<1x64xf32>
    %395 = vector.broadcast %394 : vector<1x64xf32> to vector<16x64xf32>
    %396 = arith.mulf %392, %395 : vector<16x64xf32>
    %c3_371 = arith.constant 3 : index
    %c2_372 = arith.constant 2 : index
    %c0_373 = arith.constant 0 : index
    %c0_374 = arith.constant 0 : index
    %397 = vector.load %arg6[%c3_371, %c2_372, %c0_373, %c0_374] : memref<9x6x1x64xf32, #tpu.memory_space<vmem>>, vector<1x1x1x64xf32>
    %398 = vector.shape_cast %397 : vector<1x1x1x64xf32> to vector<1x64xf32>
    %399 = vector.broadcast %398 : vector<1x64xf32> to vector<16x64xf32>
    %400 = arith.addf %396, %399 : vector<16x64xf32>
    %cst_375 = arith.constant 0.000000e+00 : f32
    %401 = vector.broadcast %cst_375 : f32 to vector<16x64xf32>
    %402 = arith.maximumf %400, %401 : vector<16x64xf32>
    %403 = arith.truncf %402 : vector<16x64xf32> to vector<16x64xbf16>
    %c3_376 = arith.constant 3 : index
    %c3_377 = arith.constant 3 : index
    %c0_378 = arith.constant 0 : index
    %c0_379 = arith.constant 0 : index
    %404 = vector.load %arg3[%c3_376, %c3_377, %c0_378, %c0_379] : memref<9x5x64x64xbf16, #tpu.memory_space<vmem>>, vector<1x1x64x64xbf16>
    %405 = vector.shape_cast %404 : vector<1x1x64x64xbf16> to vector<64x64xbf16>
    %cst_380 = arith.constant dense<0.000000e+00> : vector<16x64xf32>
    %406 = tpu.matmul %403, %405, %cst_380 {dimension_numbers = #tpu.dot_dimension_numbers<[1], [0], [0], [1], [0, 0, 1, 1], [], []>} : vector<16x64xbf16>, vector<64x64xbf16>, vector<16x64xf32> -> vector<16x64xf32>
    %c3_381 = arith.constant 3 : index
    %c3_382 = arith.constant 3 : index
    %c0_383 = arith.constant 0 : index
    %c0_384 = arith.constant 0 : index
    %407 = vector.load %arg4[%c3_381, %c3_382, %c0_383, %c0_384] : memref<9x5x1x64xf32, #tpu.memory_space<vmem>>, vector<1x1x1x64xf32>
    %408 = vector.shape_cast %407 : vector<1x1x1x64xf32> to vector<1x64xf32>
    %409 = vector.broadcast %408 : vector<1x64xf32> to vector<16x64xf32>
    %410 = arith.addf %406, %409 : vector<16x64xf32>
    %c3_385 = arith.constant 3 : index
    %c3_386 = arith.constant 3 : index
    %c0_387 = arith.constant 0 : index
    %c0_388 = arith.constant 0 : index
    %411 = vector.load %arg5[%c3_385, %c3_386, %c0_387, %c0_388] : memref<9x6x1x64xf32, #tpu.memory_space<vmem>>, vector<1x1x1x64xf32>
    %412 = vector.shape_cast %411 : vector<1x1x1x64xf32> to vector<1x64xf32>
    %413 = vector.broadcast %412 : vector<1x64xf32> to vector<16x64xf32>
    %414 = arith.mulf %410, %413 : vector<16x64xf32>
    %c3_389 = arith.constant 3 : index
    %c3_390 = arith.constant 3 : index
    %c0_391 = arith.constant 0 : index
    %c0_392 = arith.constant 0 : index
    %415 = vector.load %arg6[%c3_389, %c3_390, %c0_391, %c0_392] : memref<9x6x1x64xf32, #tpu.memory_space<vmem>>, vector<1x1x1x64xf32>
    %416 = vector.shape_cast %415 : vector<1x1x1x64xf32> to vector<1x64xf32>
    %417 = vector.broadcast %416 : vector<1x64xf32> to vector<16x64xf32>
    %418 = arith.addf %414, %417 : vector<16x64xf32>
    %cst_393 = arith.constant 0.000000e+00 : f32
    %419 = vector.broadcast %cst_393 : f32 to vector<16x64xf32>
    %420 = arith.maximumf %418, %419 : vector<16x64xf32>
    %421 = arith.truncf %420 : vector<16x64xf32> to vector<16x64xbf16>
    %c3_394 = arith.constant 3 : index
    %c4_395 = arith.constant 4 : index
    %c0_396 = arith.constant 0 : index
    %c0_397 = arith.constant 0 : index
    %422 = vector.load %arg3[%c3_394, %c4_395, %c0_396, %c0_397] : memref<9x5x64x64xbf16, #tpu.memory_space<vmem>>, vector<1x1x64x64xbf16>
    %423 = vector.shape_cast %422 : vector<1x1x64x64xbf16> to vector<64x64xbf16>
    %cst_398 = arith.constant dense<0.000000e+00> : vector<16x64xf32>
    %424 = tpu.matmul %421, %423, %cst_398 {dimension_numbers = #tpu.dot_dimension_numbers<[1], [0], [0], [1], [0, 0, 1, 1], [], []>} : vector<16x64xbf16>, vector<64x64xbf16>, vector<16x64xf32> -> vector<16x64xf32>
    %c3_399 = arith.constant 3 : index
    %c4_400 = arith.constant 4 : index
    %c0_401 = arith.constant 0 : index
    %c0_402 = arith.constant 0 : index
    %425 = vector.load %arg4[%c3_399, %c4_400, %c0_401, %c0_402] : memref<9x5x1x64xf32, #tpu.memory_space<vmem>>, vector<1x1x1x64xf32>
    %426 = vector.shape_cast %425 : vector<1x1x1x64xf32> to vector<1x64xf32>
    %427 = vector.broadcast %426 : vector<1x64xf32> to vector<16x64xf32>
    %428 = arith.addf %424, %427 : vector<16x64xf32>
    %c3_403 = arith.constant 3 : index
    %c4_404 = arith.constant 4 : index
    %c0_405 = arith.constant 0 : index
    %c0_406 = arith.constant 0 : index
    %429 = vector.load %arg5[%c3_403, %c4_404, %c0_405, %c0_406] : memref<9x6x1x64xf32, #tpu.memory_space<vmem>>, vector<1x1x1x64xf32>
    %430 = vector.shape_cast %429 : vector<1x1x1x64xf32> to vector<1x64xf32>
    %431 = vector.broadcast %430 : vector<1x64xf32> to vector<16x64xf32>
    %432 = arith.mulf %428, %431 : vector<16x64xf32>
    %c3_407 = arith.constant 3 : index
    %c4_408 = arith.constant 4 : index
    %c0_409 = arith.constant 0 : index
    %c0_410 = arith.constant 0 : index
    %433 = vector.load %arg6[%c3_407, %c4_408, %c0_409, %c0_410] : memref<9x6x1x64xf32, #tpu.memory_space<vmem>>, vector<1x1x1x64xf32>
    %434 = vector.shape_cast %433 : vector<1x1x1x64xf32> to vector<1x64xf32>
    %435 = vector.broadcast %434 : vector<1x64xf32> to vector<16x64xf32>
    %436 = arith.addf %432, %435 : vector<16x64xf32>
    %cst_411 = arith.constant 0.000000e+00 : f32
    %437 = vector.broadcast %cst_411 : f32 to vector<16x64xf32>
    %438 = arith.maximumf %436, %437 : vector<16x64xf32>
    %c3_412 = arith.constant 3 : index
    %c5_413 = arith.constant 5 : index
    %c0_414 = arith.constant 0 : index
    %c0_415 = arith.constant 0 : index
    %439 = vector.load %arg5[%c3_412, %c5_413, %c0_414, %c0_415] : memref<9x6x1x64xf32, #tpu.memory_space<vmem>>, vector<1x1x1x64xf32>
    %440 = vector.shape_cast %439 : vector<1x1x1x64xf32> to vector<1x64xf32>
    %441 = vector.broadcast %440 : vector<1x64xf32> to vector<16x64xf32>
    %442 = arith.mulf %438, %441 : vector<16x64xf32>
    %c3_416 = arith.constant 3 : index
    %c5_417 = arith.constant 5 : index
    %c0_418 = arith.constant 0 : index
    %c0_419 = arith.constant 0 : index
    %443 = vector.load %arg6[%c3_416, %c5_417, %c0_418, %c0_419] : memref<9x6x1x64xf32, #tpu.memory_space<vmem>>, vector<1x1x1x64xf32>
    %444 = vector.shape_cast %443 : vector<1x1x1x64xf32> to vector<1x64xf32>
    %445 = vector.broadcast %444 : vector<1x64xf32> to vector<16x64xf32>
    %446 = arith.addf %442, %445 : vector<16x64xf32>
    %cst_420 = arith.constant 0.000000e+00 : f32
    %447 = vector.broadcast %cst_420 : f32 to vector<16x64xf32>
    %448 = arith.maximumf %446, %447 : vector<16x64xf32>
    %449 = arith.truncf %448 : vector<16x64xf32> to vector<16x64xbf16>
    %c4_421 = arith.constant 4 : index
    %c0_422 = arith.constant 0 : index
    %c0_423 = arith.constant 0 : index
    %450 = vector.load %arg7[%c4_421, %c0_422, %c0_423] : memref<10x64x2xbf16, #tpu.memory_space<vmem>>, vector<1x64x2xbf16>
    %451 = vector.shape_cast %450 : vector<1x64x2xbf16> to vector<64x2xbf16>
    %cst_424 = arith.constant dense<0.000000e+00> : vector<16x2xf32>
    %452 = tpu.matmul %449, %451, %cst_424 {dimension_numbers = #tpu.dot_dimension_numbers<[1], [0], [0], [1], [0, 0, 1, 1], [], []>} : vector<16x64xbf16>, vector<64x2xbf16>, vector<16x2xf32> -> vector<16x2xf32>
    %453 = arith.addf %341, %452 : vector<16x2xf32>
    %c4_425 = arith.constant 4 : index
    %454 = memref.load %arg0[%c4_425] : memref<9xf32, #tpu.memory_space<smem>>
    %455 = arith.truncf %448 : vector<16x64xf32> to vector<16x64xbf16>
    %cst_426 = arith.constant dense<0.000000e+00> : vector<16x64xf32>
    %456 = tpu.matmul %0, %455, %cst_426 {dimension_numbers = #tpu.dot_dimension_numbers<[1], [0], [0], [1], [0, 0, 1, 1], [], []>} : vector<16x16xbf16>, vector<16x64xbf16>, vector<16x64xf32> -> vector<16x64xf32>
    %cst_427 = arith.constant 1.000000e+00 : f32
    %457 = arith.addf %cst_427, %454 : f32
    %458 = vector.broadcast %457 : f32 to vector<16x64xf32>
    %459 = arith.mulf %458, %448 : vector<16x64xf32>
    %460 = arith.addf %456, %459 : vector<16x64xf32>
    %461 = arith.truncf %460 : vector<16x64xf32> to vector<16x64xbf16>
    %c4_428 = arith.constant 4 : index
    %c0_429 = arith.constant 0 : index
    %c0_430 = arith.constant 0 : index
    %c0_431 = arith.constant 0 : index
    %462 = vector.load %arg3[%c4_428, %c0_429, %c0_430, %c0_431] : memref<9x5x64x64xbf16, #tpu.memory_space<vmem>>, vector<1x1x64x64xbf16>
    %463 = vector.shape_cast %462 : vector<1x1x64x64xbf16> to vector<64x64xbf16>
    %cst_432 = arith.constant dense<0.000000e+00> : vector<16x64xf32>
    %464 = tpu.matmul %461, %463, %cst_432 {dimension_numbers = #tpu.dot_dimension_numbers<[1], [0], [0], [1], [0, 0, 1, 1], [], []>} : vector<16x64xbf16>, vector<64x64xbf16>, vector<16x64xf32> -> vector<16x64xf32>
    %c4_433 = arith.constant 4 : index
    %c0_434 = arith.constant 0 : index
    %c0_435 = arith.constant 0 : index
    %c0_436 = arith.constant 0 : index
    %465 = vector.load %arg4[%c4_433, %c0_434, %c0_435, %c0_436] : memref<9x5x1x64xf32, #tpu.memory_space<vmem>>, vector<1x1x1x64xf32>
    %466 = vector.shape_cast %465 : vector<1x1x1x64xf32> to vector<1x64xf32>
    %467 = vector.broadcast %466 : vector<1x64xf32> to vector<16x64xf32>
    %468 = arith.addf %464, %467 : vector<16x64xf32>
    %c4_437 = arith.constant 4 : index
    %c0_438 = arith.constant 0 : index
    %c0_439 = arith.constant 0 : index
    %c0_440 = arith.constant 0 : index
    %469 = vector.load %arg5[%c4_437, %c0_438, %c0_439, %c0_440] : memref<9x6x1x64xf32, #tpu.memory_space<vmem>>, vector<1x1x1x64xf32>
    %470 = vector.shape_cast %469 : vector<1x1x1x64xf32> to vector<1x64xf32>
    %471 = vector.broadcast %470 : vector<1x64xf32> to vector<16x64xf32>
    %472 = arith.mulf %468, %471 : vector<16x64xf32>
    %c4_441 = arith.constant 4 : index
    %c0_442 = arith.constant 0 : index
    %c0_443 = arith.constant 0 : index
    %c0_444 = arith.constant 0 : index
    %473 = vector.load %arg6[%c4_441, %c0_442, %c0_443, %c0_444] : memref<9x6x1x64xf32, #tpu.memory_space<vmem>>, vector<1x1x1x64xf32>
    %474 = vector.shape_cast %473 : vector<1x1x1x64xf32> to vector<1x64xf32>
    %475 = vector.broadcast %474 : vector<1x64xf32> to vector<16x64xf32>
    %476 = arith.addf %472, %475 : vector<16x64xf32>
    %cst_445 = arith.constant 0.000000e+00 : f32
    %477 = vector.broadcast %cst_445 : f32 to vector<16x64xf32>
    %478 = arith.maximumf %476, %477 : vector<16x64xf32>
    %479 = arith.truncf %478 : vector<16x64xf32> to vector<16x64xbf16>
    %c4_446 = arith.constant 4 : index
    %c1_447 = arith.constant 1 : index
    %c0_448 = arith.constant 0 : index
    %c0_449 = arith.constant 0 : index
    %480 = vector.load %arg3[%c4_446, %c1_447, %c0_448, %c0_449] : memref<9x5x64x64xbf16, #tpu.memory_space<vmem>>, vector<1x1x64x64xbf16>
    %481 = vector.shape_cast %480 : vector<1x1x64x64xbf16> to vector<64x64xbf16>
    %cst_450 = arith.constant dense<0.000000e+00> : vector<16x64xf32>
    %482 = tpu.matmul %479, %481, %cst_450 {dimension_numbers = #tpu.dot_dimension_numbers<[1], [0], [0], [1], [0, 0, 1, 1], [], []>} : vector<16x64xbf16>, vector<64x64xbf16>, vector<16x64xf32> -> vector<16x64xf32>
    %c4_451 = arith.constant 4 : index
    %c1_452 = arith.constant 1 : index
    %c0_453 = arith.constant 0 : index
    %c0_454 = arith.constant 0 : index
    %483 = vector.load %arg4[%c4_451, %c1_452, %c0_453, %c0_454] : memref<9x5x1x64xf32, #tpu.memory_space<vmem>>, vector<1x1x1x64xf32>
    %484 = vector.shape_cast %483 : vector<1x1x1x64xf32> to vector<1x64xf32>
    %485 = vector.broadcast %484 : vector<1x64xf32> to vector<16x64xf32>
    %486 = arith.addf %482, %485 : vector<16x64xf32>
    %c4_455 = arith.constant 4 : index
    %c1_456 = arith.constant 1 : index
    %c0_457 = arith.constant 0 : index
    %c0_458 = arith.constant 0 : index
    %487 = vector.load %arg5[%c4_455, %c1_456, %c0_457, %c0_458] : memref<9x6x1x64xf32, #tpu.memory_space<vmem>>, vector<1x1x1x64xf32>
    %488 = vector.shape_cast %487 : vector<1x1x1x64xf32> to vector<1x64xf32>
    %489 = vector.broadcast %488 : vector<1x64xf32> to vector<16x64xf32>
    %490 = arith.mulf %486, %489 : vector<16x64xf32>
    %c4_459 = arith.constant 4 : index
    %c1_460 = arith.constant 1 : index
    %c0_461 = arith.constant 0 : index
    %c0_462 = arith.constant 0 : index
    %491 = vector.load %arg6[%c4_459, %c1_460, %c0_461, %c0_462] : memref<9x6x1x64xf32, #tpu.memory_space<vmem>>, vector<1x1x1x64xf32>
    %492 = vector.shape_cast %491 : vector<1x1x1x64xf32> to vector<1x64xf32>
    %493 = vector.broadcast %492 : vector<1x64xf32> to vector<16x64xf32>
    %494 = arith.addf %490, %493 : vector<16x64xf32>
    %cst_463 = arith.constant 0.000000e+00 : f32
    %495 = vector.broadcast %cst_463 : f32 to vector<16x64xf32>
    %496 = arith.maximumf %494, %495 : vector<16x64xf32>
    %497 = arith.truncf %496 : vector<16x64xf32> to vector<16x64xbf16>
    %c4_464 = arith.constant 4 : index
    %c2_465 = arith.constant 2 : index
    %c0_466 = arith.constant 0 : index
    %c0_467 = arith.constant 0 : index
    %498 = vector.load %arg3[%c4_464, %c2_465, %c0_466, %c0_467] : memref<9x5x64x64xbf16, #tpu.memory_space<vmem>>, vector<1x1x64x64xbf16>
    %499 = vector.shape_cast %498 : vector<1x1x64x64xbf16> to vector<64x64xbf16>
    %cst_468 = arith.constant dense<0.000000e+00> : vector<16x64xf32>
    %500 = tpu.matmul %497, %499, %cst_468 {dimension_numbers = #tpu.dot_dimension_numbers<[1], [0], [0], [1], [0, 0, 1, 1], [], []>} : vector<16x64xbf16>, vector<64x64xbf16>, vector<16x64xf32> -> vector<16x64xf32>
    %c4_469 = arith.constant 4 : index
    %c2_470 = arith.constant 2 : index
    %c0_471 = arith.constant 0 : index
    %c0_472 = arith.constant 0 : index
    %501 = vector.load %arg4[%c4_469, %c2_470, %c0_471, %c0_472] : memref<9x5x1x64xf32, #tpu.memory_space<vmem>>, vector<1x1x1x64xf32>
    %502 = vector.shape_cast %501 : vector<1x1x1x64xf32> to vector<1x64xf32>
    %503 = vector.broadcast %502 : vector<1x64xf32> to vector<16x64xf32>
    %504 = arith.addf %500, %503 : vector<16x64xf32>
    %c4_473 = arith.constant 4 : index
    %c2_474 = arith.constant 2 : index
    %c0_475 = arith.constant 0 : index
    %c0_476 = arith.constant 0 : index
    %505 = vector.load %arg5[%c4_473, %c2_474, %c0_475, %c0_476] : memref<9x6x1x64xf32, #tpu.memory_space<vmem>>, vector<1x1x1x64xf32>
    %506 = vector.shape_cast %505 : vector<1x1x1x64xf32> to vector<1x64xf32>
    %507 = vector.broadcast %506 : vector<1x64xf32> to vector<16x64xf32>
    %508 = arith.mulf %504, %507 : vector<16x64xf32>
    %c4_477 = arith.constant 4 : index
    %c2_478 = arith.constant 2 : index
    %c0_479 = arith.constant 0 : index
    %c0_480 = arith.constant 0 : index
    %509 = vector.load %arg6[%c4_477, %c2_478, %c0_479, %c0_480] : memref<9x6x1x64xf32, #tpu.memory_space<vmem>>, vector<1x1x1x64xf32>
    %510 = vector.shape_cast %509 : vector<1x1x1x64xf32> to vector<1x64xf32>
    %511 = vector.broadcast %510 : vector<1x64xf32> to vector<16x64xf32>
    %512 = arith.addf %508, %511 : vector<16x64xf32>
    %cst_481 = arith.constant 0.000000e+00 : f32
    %513 = vector.broadcast %cst_481 : f32 to vector<16x64xf32>
    %514 = arith.maximumf %512, %513 : vector<16x64xf32>
    %515 = arith.truncf %514 : vector<16x64xf32> to vector<16x64xbf16>
    %c4_482 = arith.constant 4 : index
    %c3_483 = arith.constant 3 : index
    %c0_484 = arith.constant 0 : index
    %c0_485 = arith.constant 0 : index
    %516 = vector.load %arg3[%c4_482, %c3_483, %c0_484, %c0_485] : memref<9x5x64x64xbf16, #tpu.memory_space<vmem>>, vector<1x1x64x64xbf16>
    %517 = vector.shape_cast %516 : vector<1x1x64x64xbf16> to vector<64x64xbf16>
    %cst_486 = arith.constant dense<0.000000e+00> : vector<16x64xf32>
    %518 = tpu.matmul %515, %517, %cst_486 {dimension_numbers = #tpu.dot_dimension_numbers<[1], [0], [0], [1], [0, 0, 1, 1], [], []>} : vector<16x64xbf16>, vector<64x64xbf16>, vector<16x64xf32> -> vector<16x64xf32>
    %c4_487 = arith.constant 4 : index
    %c3_488 = arith.constant 3 : index
    %c0_489 = arith.constant 0 : index
    %c0_490 = arith.constant 0 : index
    %519 = vector.load %arg4[%c4_487, %c3_488, %c0_489, %c0_490] : memref<9x5x1x64xf32, #tpu.memory_space<vmem>>, vector<1x1x1x64xf32>
    %520 = vector.shape_cast %519 : vector<1x1x1x64xf32> to vector<1x64xf32>
    %521 = vector.broadcast %520 : vector<1x64xf32> to vector<16x64xf32>
    %522 = arith.addf %518, %521 : vector<16x64xf32>
    %c4_491 = arith.constant 4 : index
    %c3_492 = arith.constant 3 : index
    %c0_493 = arith.constant 0 : index
    %c0_494 = arith.constant 0 : index
    %523 = vector.load %arg5[%c4_491, %c3_492, %c0_493, %c0_494] : memref<9x6x1x64xf32, #tpu.memory_space<vmem>>, vector<1x1x1x64xf32>
    %524 = vector.shape_cast %523 : vector<1x1x1x64xf32> to vector<1x64xf32>
    %525 = vector.broadcast %524 : vector<1x64xf32> to vector<16x64xf32>
    %526 = arith.mulf %522, %525 : vector<16x64xf32>
    %c4_495 = arith.constant 4 : index
    %c3_496 = arith.constant 3 : index
    %c0_497 = arith.constant 0 : index
    %c0_498 = arith.constant 0 : index
    %527 = vector.load %arg6[%c4_495, %c3_496, %c0_497, %c0_498] : memref<9x6x1x64xf32, #tpu.memory_space<vmem>>, vector<1x1x1x64xf32>
    %528 = vector.shape_cast %527 : vector<1x1x1x64xf32> to vector<1x64xf32>
    %529 = vector.broadcast %528 : vector<1x64xf32> to vector<16x64xf32>
    %530 = arith.addf %526, %529 : vector<16x64xf32>
    %cst_499 = arith.constant 0.000000e+00 : f32
    %531 = vector.broadcast %cst_499 : f32 to vector<16x64xf32>
    %532 = arith.maximumf %530, %531 : vector<16x64xf32>
    %533 = arith.truncf %532 : vector<16x64xf32> to vector<16x64xbf16>
    %c4_500 = arith.constant 4 : index
    %c4_501 = arith.constant 4 : index
    %c0_502 = arith.constant 0 : index
    %c0_503 = arith.constant 0 : index
    %534 = vector.load %arg3[%c4_500, %c4_501, %c0_502, %c0_503] : memref<9x5x64x64xbf16, #tpu.memory_space<vmem>>, vector<1x1x64x64xbf16>
    %535 = vector.shape_cast %534 : vector<1x1x64x64xbf16> to vector<64x64xbf16>
    %cst_504 = arith.constant dense<0.000000e+00> : vector<16x64xf32>
    %536 = tpu.matmul %533, %535, %cst_504 {dimension_numbers = #tpu.dot_dimension_numbers<[1], [0], [0], [1], [0, 0, 1, 1], [], []>} : vector<16x64xbf16>, vector<64x64xbf16>, vector<16x64xf32> -> vector<16x64xf32>
    %c4_505 = arith.constant 4 : index
    %c4_506 = arith.constant 4 : index
    %c0_507 = arith.constant 0 : index
    %c0_508 = arith.constant 0 : index
    %537 = vector.load %arg4[%c4_505, %c4_506, %c0_507, %c0_508] : memref<9x5x1x64xf32, #tpu.memory_space<vmem>>, vector<1x1x1x64xf32>
    %538 = vector.shape_cast %537 : vector<1x1x1x64xf32> to vector<1x64xf32>
    %539 = vector.broadcast %538 : vector<1x64xf32> to vector<16x64xf32>
    %540 = arith.addf %536, %539 : vector<16x64xf32>
    %c4_509 = arith.constant 4 : index
    %c4_510 = arith.constant 4 : index
    %c0_511 = arith.constant 0 : index
    %c0_512 = arith.constant 0 : index
    %541 = vector.load %arg5[%c4_509, %c4_510, %c0_511, %c0_512] : memref<9x6x1x64xf32, #tpu.memory_space<vmem>>, vector<1x1x1x64xf32>
    %542 = vector.shape_cast %541 : vector<1x1x1x64xf32> to vector<1x64xf32>
    %543 = vector.broadcast %542 : vector<1x64xf32> to vector<16x64xf32>
    %544 = arith.mulf %540, %543 : vector<16x64xf32>
    %c4_513 = arith.constant 4 : index
    %c4_514 = arith.constant 4 : index
    %c0_515 = arith.constant 0 : index
    %c0_516 = arith.constant 0 : index
    %545 = vector.load %arg6[%c4_513, %c4_514, %c0_515, %c0_516] : memref<9x6x1x64xf32, #tpu.memory_space<vmem>>, vector<1x1x1x64xf32>
    %546 = vector.shape_cast %545 : vector<1x1x1x64xf32> to vector<1x64xf32>
    %547 = vector.broadcast %546 : vector<1x64xf32> to vector<16x64xf32>
    %548 = arith.addf %544, %547 : vector<16x64xf32>
    %cst_517 = arith.constant 0.000000e+00 : f32
    %549 = vector.broadcast %cst_517 : f32 to vector<16x64xf32>
    %550 = arith.maximumf %548, %549 : vector<16x64xf32>
    %c4_518 = arith.constant 4 : index
    %c5_519 = arith.constant 5 : index
    %c0_520 = arith.constant 0 : index
    %c0_521 = arith.constant 0 : index
    %551 = vector.load %arg5[%c4_518, %c5_519, %c0_520, %c0_521] : memref<9x6x1x64xf32, #tpu.memory_space<vmem>>, vector<1x1x1x64xf32>
    %552 = vector.shape_cast %551 : vector<1x1x1x64xf32> to vector<1x64xf32>
    %553 = vector.broadcast %552 : vector<1x64xf32> to vector<16x64xf32>
    %554 = arith.mulf %550, %553 : vector<16x64xf32>
    %c4_522 = arith.constant 4 : index
    %c5_523 = arith.constant 5 : index
    %c0_524 = arith.constant 0 : index
    %c0_525 = arith.constant 0 : index
    %555 = vector.load %arg6[%c4_522, %c5_523, %c0_524, %c0_525] : memref<9x6x1x64xf32, #tpu.memory_space<vmem>>, vector<1x1x1x64xf32>
    %556 = vector.shape_cast %555 : vector<1x1x1x64xf32> to vector<1x64xf32>
    %557 = vector.broadcast %556 : vector<1x64xf32> to vector<16x64xf32>
    %558 = arith.addf %554, %557 : vector<16x64xf32>
    %cst_526 = arith.constant 0.000000e+00 : f32
    %559 = vector.broadcast %cst_526 : f32 to vector<16x64xf32>
    %560 = arith.maximumf %558, %559 : vector<16x64xf32>
    %561 = arith.truncf %560 : vector<16x64xf32> to vector<16x64xbf16>
    %c5_527 = arith.constant 5 : index
    %c0_528 = arith.constant 0 : index
    %c0_529 = arith.constant 0 : index
    %562 = vector.load %arg7[%c5_527, %c0_528, %c0_529] : memref<10x64x2xbf16, #tpu.memory_space<vmem>>, vector<1x64x2xbf16>
    %563 = vector.shape_cast %562 : vector<1x64x2xbf16> to vector<64x2xbf16>
    %cst_530 = arith.constant dense<0.000000e+00> : vector<16x2xf32>
    %564 = tpu.matmul %561, %563, %cst_530 {dimension_numbers = #tpu.dot_dimension_numbers<[1], [0], [0], [1], [0, 0, 1, 1], [], []>} : vector<16x64xbf16>, vector<64x2xbf16>, vector<16x2xf32> -> vector<16x2xf32>
    %565 = arith.addf %453, %564 : vector<16x2xf32>
    %c5_531 = arith.constant 5 : index
    %566 = memref.load %arg0[%c5_531] : memref<9xf32, #tpu.memory_space<smem>>
    %567 = arith.truncf %560 : vector<16x64xf32> to vector<16x64xbf16>
    %cst_532 = arith.constant dense<0.000000e+00> : vector<16x64xf32>
    %568 = tpu.matmul %0, %567, %cst_532 {dimension_numbers = #tpu.dot_dimension_numbers<[1], [0], [0], [1], [0, 0, 1, 1], [], []>} : vector<16x16xbf16>, vector<16x64xbf16>, vector<16x64xf32> -> vector<16x64xf32>
    %cst_533 = arith.constant 1.000000e+00 : f32
    %569 = arith.addf %cst_533, %566 : f32
    %570 = vector.broadcast %569 : f32 to vector<16x64xf32>
    %571 = arith.mulf %570, %560 : vector<16x64xf32>
    %572 = arith.addf %568, %571 : vector<16x64xf32>
    %573 = arith.truncf %572 : vector<16x64xf32> to vector<16x64xbf16>
    %c5_534 = arith.constant 5 : index
    %c0_535 = arith.constant 0 : index
    %c0_536 = arith.constant 0 : index
    %c0_537 = arith.constant 0 : index
    %574 = vector.load %arg3[%c5_534, %c0_535, %c0_536, %c0_537] : memref<9x5x64x64xbf16, #tpu.memory_space<vmem>>, vector<1x1x64x64xbf16>
    %575 = vector.shape_cast %574 : vector<1x1x64x64xbf16> to vector<64x64xbf16>
    %cst_538 = arith.constant dense<0.000000e+00> : vector<16x64xf32>
    %576 = tpu.matmul %573, %575, %cst_538 {dimension_numbers = #tpu.dot_dimension_numbers<[1], [0], [0], [1], [0, 0, 1, 1], [], []>} : vector<16x64xbf16>, vector<64x64xbf16>, vector<16x64xf32> -> vector<16x64xf32>
    %c5_539 = arith.constant 5 : index
    %c0_540 = arith.constant 0 : index
    %c0_541 = arith.constant 0 : index
    %c0_542 = arith.constant 0 : index
    %577 = vector.load %arg4[%c5_539, %c0_540, %c0_541, %c0_542] : memref<9x5x1x64xf32, #tpu.memory_space<vmem>>, vector<1x1x1x64xf32>
    %578 = vector.shape_cast %577 : vector<1x1x1x64xf32> to vector<1x64xf32>
    %579 = vector.broadcast %578 : vector<1x64xf32> to vector<16x64xf32>
    %580 = arith.addf %576, %579 : vector<16x64xf32>
    %c5_543 = arith.constant 5 : index
    %c0_544 = arith.constant 0 : index
    %c0_545 = arith.constant 0 : index
    %c0_546 = arith.constant 0 : index
    %581 = vector.load %arg5[%c5_543, %c0_544, %c0_545, %c0_546] : memref<9x6x1x64xf32, #tpu.memory_space<vmem>>, vector<1x1x1x64xf32>
    %582 = vector.shape_cast %581 : vector<1x1x1x64xf32> to vector<1x64xf32>
    %583 = vector.broadcast %582 : vector<1x64xf32> to vector<16x64xf32>
    %584 = arith.mulf %580, %583 : vector<16x64xf32>
    %c5_547 = arith.constant 5 : index
    %c0_548 = arith.constant 0 : index
    %c0_549 = arith.constant 0 : index
    %c0_550 = arith.constant 0 : index
    %585 = vector.load %arg6[%c5_547, %c0_548, %c0_549, %c0_550] : memref<9x6x1x64xf32, #tpu.memory_space<vmem>>, vector<1x1x1x64xf32>
    %586 = vector.shape_cast %585 : vector<1x1x1x64xf32> to vector<1x64xf32>
    %587 = vector.broadcast %586 : vector<1x64xf32> to vector<16x64xf32>
    %588 = arith.addf %584, %587 : vector<16x64xf32>
    %cst_551 = arith.constant 0.000000e+00 : f32
    %589 = vector.broadcast %cst_551 : f32 to vector<16x64xf32>
    %590 = arith.maximumf %588, %589 : vector<16x64xf32>
    %591 = arith.truncf %590 : vector<16x64xf32> to vector<16x64xbf16>
    %c5_552 = arith.constant 5 : index
    %c1_553 = arith.constant 1 : index
    %c0_554 = arith.constant 0 : index
    %c0_555 = arith.constant 0 : index
    %592 = vector.load %arg3[%c5_552, %c1_553, %c0_554, %c0_555] : memref<9x5x64x64xbf16, #tpu.memory_space<vmem>>, vector<1x1x64x64xbf16>
    %593 = vector.shape_cast %592 : vector<1x1x64x64xbf16> to vector<64x64xbf16>
    %cst_556 = arith.constant dense<0.000000e+00> : vector<16x64xf32>
    %594 = tpu.matmul %591, %593, %cst_556 {dimension_numbers = #tpu.dot_dimension_numbers<[1], [0], [0], [1], [0, 0, 1, 1], [], []>} : vector<16x64xbf16>, vector<64x64xbf16>, vector<16x64xf32> -> vector<16x64xf32>
    %c5_557 = arith.constant 5 : index
    %c1_558 = arith.constant 1 : index
    %c0_559 = arith.constant 0 : index
    %c0_560 = arith.constant 0 : index
    %595 = vector.load %arg4[%c5_557, %c1_558, %c0_559, %c0_560] : memref<9x5x1x64xf32, #tpu.memory_space<vmem>>, vector<1x1x1x64xf32>
    %596 = vector.shape_cast %595 : vector<1x1x1x64xf32> to vector<1x64xf32>
    %597 = vector.broadcast %596 : vector<1x64xf32> to vector<16x64xf32>
    %598 = arith.addf %594, %597 : vector<16x64xf32>
    %c5_561 = arith.constant 5 : index
    %c1_562 = arith.constant 1 : index
    %c0_563 = arith.constant 0 : index
    %c0_564 = arith.constant 0 : index
    %599 = vector.load %arg5[%c5_561, %c1_562, %c0_563, %c0_564] : memref<9x6x1x64xf32, #tpu.memory_space<vmem>>, vector<1x1x1x64xf32>
    %600 = vector.shape_cast %599 : vector<1x1x1x64xf32> to vector<1x64xf32>
    %601 = vector.broadcast %600 : vector<1x64xf32> to vector<16x64xf32>
    %602 = arith.mulf %598, %601 : vector<16x64xf32>
    %c5_565 = arith.constant 5 : index
    %c1_566 = arith.constant 1 : index
    %c0_567 = arith.constant 0 : index
    %c0_568 = arith.constant 0 : index
    %603 = vector.load %arg6[%c5_565, %c1_566, %c0_567, %c0_568] : memref<9x6x1x64xf32, #tpu.memory_space<vmem>>, vector<1x1x1x64xf32>
    %604 = vector.shape_cast %603 : vector<1x1x1x64xf32> to vector<1x64xf32>
    %605 = vector.broadcast %604 : vector<1x64xf32> to vector<16x64xf32>
    %606 = arith.addf %602, %605 : vector<16x64xf32>
    %cst_569 = arith.constant 0.000000e+00 : f32
    %607 = vector.broadcast %cst_569 : f32 to vector<16x64xf32>
    %608 = arith.maximumf %606, %607 : vector<16x64xf32>
    %609 = arith.truncf %608 : vector<16x64xf32> to vector<16x64xbf16>
    %c5_570 = arith.constant 5 : index
    %c2_571 = arith.constant 2 : index
    %c0_572 = arith.constant 0 : index
    %c0_573 = arith.constant 0 : index
    %610 = vector.load %arg3[%c5_570, %c2_571, %c0_572, %c0_573] : memref<9x5x64x64xbf16, #tpu.memory_space<vmem>>, vector<1x1x64x64xbf16>
    %611 = vector.shape_cast %610 : vector<1x1x64x64xbf16> to vector<64x64xbf16>
    %cst_574 = arith.constant dense<0.000000e+00> : vector<16x64xf32>
    %612 = tpu.matmul %609, %611, %cst_574 {dimension_numbers = #tpu.dot_dimension_numbers<[1], [0], [0], [1], [0, 0, 1, 1], [], []>} : vector<16x64xbf16>, vector<64x64xbf16>, vector<16x64xf32> -> vector<16x64xf32>
    %c5_575 = arith.constant 5 : index
    %c2_576 = arith.constant 2 : index
    %c0_577 = arith.constant 0 : index
    %c0_578 = arith.constant 0 : index
    %613 = vector.load %arg4[%c5_575, %c2_576, %c0_577, %c0_578] : memref<9x5x1x64xf32, #tpu.memory_space<vmem>>, vector<1x1x1x64xf32>
    %614 = vector.shape_cast %613 : vector<1x1x1x64xf32> to vector<1x64xf32>
    %615 = vector.broadcast %614 : vector<1x64xf32> to vector<16x64xf32>
    %616 = arith.addf %612, %615 : vector<16x64xf32>
    %c5_579 = arith.constant 5 : index
    %c2_580 = arith.constant 2 : index
    %c0_581 = arith.constant 0 : index
    %c0_582 = arith.constant 0 : index
    %617 = vector.load %arg5[%c5_579, %c2_580, %c0_581, %c0_582] : memref<9x6x1x64xf32, #tpu.memory_space<vmem>>, vector<1x1x1x64xf32>
    %618 = vector.shape_cast %617 : vector<1x1x1x64xf32> to vector<1x64xf32>
    %619 = vector.broadcast %618 : vector<1x64xf32> to vector<16x64xf32>
    %620 = arith.mulf %616, %619 : vector<16x64xf32>
    %c5_583 = arith.constant 5 : index
    %c2_584 = arith.constant 2 : index
    %c0_585 = arith.constant 0 : index
    %c0_586 = arith.constant 0 : index
    %621 = vector.load %arg6[%c5_583, %c2_584, %c0_585, %c0_586] : memref<9x6x1x64xf32, #tpu.memory_space<vmem>>, vector<1x1x1x64xf32>
    %622 = vector.shape_cast %621 : vector<1x1x1x64xf32> to vector<1x64xf32>
    %623 = vector.broadcast %622 : vector<1x64xf32> to vector<16x64xf32>
    %624 = arith.addf %620, %623 : vector<16x64xf32>
    %cst_587 = arith.constant 0.000000e+00 : f32
    %625 = vector.broadcast %cst_587 : f32 to vector<16x64xf32>
    %626 = arith.maximumf %624, %625 : vector<16x64xf32>
    %627 = arith.truncf %626 : vector<16x64xf32> to vector<16x64xbf16>
    %c5_588 = arith.constant 5 : index
    %c3_589 = arith.constant 3 : index
    %c0_590 = arith.constant 0 : index
    %c0_591 = arith.constant 0 : index
    %628 = vector.load %arg3[%c5_588, %c3_589, %c0_590, %c0_591] : memref<9x5x64x64xbf16, #tpu.memory_space<vmem>>, vector<1x1x64x64xbf16>
    %629 = vector.shape_cast %628 : vector<1x1x64x64xbf16> to vector<64x64xbf16>
    %cst_592 = arith.constant dense<0.000000e+00> : vector<16x64xf32>
    %630 = tpu.matmul %627, %629, %cst_592 {dimension_numbers = #tpu.dot_dimension_numbers<[1], [0], [0], [1], [0, 0, 1, 1], [], []>} : vector<16x64xbf16>, vector<64x64xbf16>, vector<16x64xf32> -> vector<16x64xf32>
    %c5_593 = arith.constant 5 : index
    %c3_594 = arith.constant 3 : index
    %c0_595 = arith.constant 0 : index
    %c0_596 = arith.constant 0 : index
    %631 = vector.load %arg4[%c5_593, %c3_594, %c0_595, %c0_596] : memref<9x5x1x64xf32, #tpu.memory_space<vmem>>, vector<1x1x1x64xf32>
    %632 = vector.shape_cast %631 : vector<1x1x1x64xf32> to vector<1x64xf32>
    %633 = vector.broadcast %632 : vector<1x64xf32> to vector<16x64xf32>
    %634 = arith.addf %630, %633 : vector<16x64xf32>
    %c5_597 = arith.constant 5 : index
    %c3_598 = arith.constant 3 : index
    %c0_599 = arith.constant 0 : index
    %c0_600 = arith.constant 0 : index
    %635 = vector.load %arg5[%c5_597, %c3_598, %c0_599, %c0_600] : memref<9x6x1x64xf32, #tpu.memory_space<vmem>>, vector<1x1x1x64xf32>
    %636 = vector.shape_cast %635 : vector<1x1x1x64xf32> to vector<1x64xf32>
    %637 = vector.broadcast %636 : vector<1x64xf32> to vector<16x64xf32>
    %638 = arith.mulf %634, %637 : vector<16x64xf32>
    %c5_601 = arith.constant 5 : index
    %c3_602 = arith.constant 3 : index
    %c0_603 = arith.constant 0 : index
    %c0_604 = arith.constant 0 : index
    %639 = vector.load %arg6[%c5_601, %c3_602, %c0_603, %c0_604] : memref<9x6x1x64xf32, #tpu.memory_space<vmem>>, vector<1x1x1x64xf32>
    %640 = vector.shape_cast %639 : vector<1x1x1x64xf32> to vector<1x64xf32>
    %641 = vector.broadcast %640 : vector<1x64xf32> to vector<16x64xf32>
    %642 = arith.addf %638, %641 : vector<16x64xf32>
    %cst_605 = arith.constant 0.000000e+00 : f32
    %643 = vector.broadcast %cst_605 : f32 to vector<16x64xf32>
    %644 = arith.maximumf %642, %643 : vector<16x64xf32>
    %645 = arith.truncf %644 : vector<16x64xf32> to vector<16x64xbf16>
    %c5_606 = arith.constant 5 : index
    %c4_607 = arith.constant 4 : index
    %c0_608 = arith.constant 0 : index
    %c0_609 = arith.constant 0 : index
    %646 = vector.load %arg3[%c5_606, %c4_607, %c0_608, %c0_609] : memref<9x5x64x64xbf16, #tpu.memory_space<vmem>>, vector<1x1x64x64xbf16>
    %647 = vector.shape_cast %646 : vector<1x1x64x64xbf16> to vector<64x64xbf16>
    %cst_610 = arith.constant dense<0.000000e+00> : vector<16x64xf32>
    %648 = tpu.matmul %645, %647, %cst_610 {dimension_numbers = #tpu.dot_dimension_numbers<[1], [0], [0], [1], [0, 0, 1, 1], [], []>} : vector<16x64xbf16>, vector<64x64xbf16>, vector<16x64xf32> -> vector<16x64xf32>
    %c5_611 = arith.constant 5 : index
    %c4_612 = arith.constant 4 : index
    %c0_613 = arith.constant 0 : index
    %c0_614 = arith.constant 0 : index
    %649 = vector.load %arg4[%c5_611, %c4_612, %c0_613, %c0_614] : memref<9x5x1x64xf32, #tpu.memory_space<vmem>>, vector<1x1x1x64xf32>
    %650 = vector.shape_cast %649 : vector<1x1x1x64xf32> to vector<1x64xf32>
    %651 = vector.broadcast %650 : vector<1x64xf32> to vector<16x64xf32>
    %652 = arith.addf %648, %651 : vector<16x64xf32>
    %c5_615 = arith.constant 5 : index
    %c4_616 = arith.constant 4 : index
    %c0_617 = arith.constant 0 : index
    %c0_618 = arith.constant 0 : index
    %653 = vector.load %arg5[%c5_615, %c4_616, %c0_617, %c0_618] : memref<9x6x1x64xf32, #tpu.memory_space<vmem>>, vector<1x1x1x64xf32>
    %654 = vector.shape_cast %653 : vector<1x1x1x64xf32> to vector<1x64xf32>
    %655 = vector.broadcast %654 : vector<1x64xf32> to vector<16x64xf32>
    %656 = arith.mulf %652, %655 : vector<16x64xf32>
    %c5_619 = arith.constant 5 : index
    %c4_620 = arith.constant 4 : index
    %c0_621 = arith.constant 0 : index
    %c0_622 = arith.constant 0 : index
    %657 = vector.load %arg6[%c5_619, %c4_620, %c0_621, %c0_622] : memref<9x6x1x64xf32, #tpu.memory_space<vmem>>, vector<1x1x1x64xf32>
    %658 = vector.shape_cast %657 : vector<1x1x1x64xf32> to vector<1x64xf32>
    %659 = vector.broadcast %658 : vector<1x64xf32> to vector<16x64xf32>
    %660 = arith.addf %656, %659 : vector<16x64xf32>
    %cst_623 = arith.constant 0.000000e+00 : f32
    %661 = vector.broadcast %cst_623 : f32 to vector<16x64xf32>
    %662 = arith.maximumf %660, %661 : vector<16x64xf32>
    %c5_624 = arith.constant 5 : index
    %c5_625 = arith.constant 5 : index
    %c0_626 = arith.constant 0 : index
    %c0_627 = arith.constant 0 : index
    %663 = vector.load %arg5[%c5_624, %c5_625, %c0_626, %c0_627] : memref<9x6x1x64xf32, #tpu.memory_space<vmem>>, vector<1x1x1x64xf32>
    %664 = vector.shape_cast %663 : vector<1x1x1x64xf32> to vector<1x64xf32>
    %665 = vector.broadcast %664 : vector<1x64xf32> to vector<16x64xf32>
    %666 = arith.mulf %662, %665 : vector<16x64xf32>
    %c5_628 = arith.constant 5 : index
    %c5_629 = arith.constant 5 : index
    %c0_630 = arith.constant 0 : index
    %c0_631 = arith.constant 0 : index
    %667 = vector.load %arg6[%c5_628, %c5_629, %c0_630, %c0_631] : memref<9x6x1x64xf32, #tpu.memory_space<vmem>>, vector<1x1x1x64xf32>
    %668 = vector.shape_cast %667 : vector<1x1x1x64xf32> to vector<1x64xf32>
    %669 = vector.broadcast %668 : vector<1x64xf32> to vector<16x64xf32>
    %670 = arith.addf %666, %669 : vector<16x64xf32>
    %cst_632 = arith.constant 0.000000e+00 : f32
    %671 = vector.broadcast %cst_632 : f32 to vector<16x64xf32>
    %672 = arith.maximumf %670, %671 : vector<16x64xf32>
    %673 = arith.truncf %672 : vector<16x64xf32> to vector<16x64xbf16>
    %c6 = arith.constant 6 : index
    %c0_633 = arith.constant 0 : index
    %c0_634 = arith.constant 0 : index
    %674 = vector.load %arg7[%c6, %c0_633, %c0_634] : memref<10x64x2xbf16, #tpu.memory_space<vmem>>, vector<1x64x2xbf16>
    %675 = vector.shape_cast %674 : vector<1x64x2xbf16> to vector<64x2xbf16>
    %cst_635 = arith.constant dense<0.000000e+00> : vector<16x2xf32>
    %676 = tpu.matmul %673, %675, %cst_635 {dimension_numbers = #tpu.dot_dimension_numbers<[1], [0], [0], [1], [0, 0, 1, 1], [], []>} : vector<16x64xbf16>, vector<64x2xbf16>, vector<16x2xf32> -> vector<16x2xf32>
    %677 = arith.addf %565, %676 : vector<16x2xf32>
    %c6_636 = arith.constant 6 : index
    %678 = memref.load %arg0[%c6_636] : memref<9xf32, #tpu.memory_space<smem>>
    %679 = arith.truncf %672 : vector<16x64xf32> to vector<16x64xbf16>
    %cst_637 = arith.constant dense<0.000000e+00> : vector<16x64xf32>
    %680 = tpu.matmul %0, %679, %cst_637 {dimension_numbers = #tpu.dot_dimension_numbers<[1], [0], [0], [1], [0, 0, 1, 1], [], []>} : vector<16x16xbf16>, vector<16x64xbf16>, vector<16x64xf32> -> vector<16x64xf32>
    %cst_638 = arith.constant 1.000000e+00 : f32
    %681 = arith.addf %cst_638, %678 : f32
    %682 = vector.broadcast %681 : f32 to vector<16x64xf32>
    %683 = arith.mulf %682, %672 : vector<16x64xf32>
    %684 = arith.addf %680, %683 : vector<16x64xf32>
    %685 = arith.truncf %684 : vector<16x64xf32> to vector<16x64xbf16>
    %c6_639 = arith.constant 6 : index
    %c0_640 = arith.constant 0 : index
    %c0_641 = arith.constant 0 : index
    %c0_642 = arith.constant 0 : index
    %686 = vector.load %arg3[%c6_639, %c0_640, %c0_641, %c0_642] : memref<9x5x64x64xbf16, #tpu.memory_space<vmem>>, vector<1x1x64x64xbf16>
    %687 = vector.shape_cast %686 : vector<1x1x64x64xbf16> to vector<64x64xbf16>
    %cst_643 = arith.constant dense<0.000000e+00> : vector<16x64xf32>
    %688 = tpu.matmul %685, %687, %cst_643 {dimension_numbers = #tpu.dot_dimension_numbers<[1], [0], [0], [1], [0, 0, 1, 1], [], []>} : vector<16x64xbf16>, vector<64x64xbf16>, vector<16x64xf32> -> vector<16x64xf32>
    %c6_644 = arith.constant 6 : index
    %c0_645 = arith.constant 0 : index
    %c0_646 = arith.constant 0 : index
    %c0_647 = arith.constant 0 : index
    %689 = vector.load %arg4[%c6_644, %c0_645, %c0_646, %c0_647] : memref<9x5x1x64xf32, #tpu.memory_space<vmem>>, vector<1x1x1x64xf32>
    %690 = vector.shape_cast %689 : vector<1x1x1x64xf32> to vector<1x64xf32>
    %691 = vector.broadcast %690 : vector<1x64xf32> to vector<16x64xf32>
    %692 = arith.addf %688, %691 : vector<16x64xf32>
    %c6_648 = arith.constant 6 : index
    %c0_649 = arith.constant 0 : index
    %c0_650 = arith.constant 0 : index
    %c0_651 = arith.constant 0 : index
    %693 = vector.load %arg5[%c6_648, %c0_649, %c0_650, %c0_651] : memref<9x6x1x64xf32, #tpu.memory_space<vmem>>, vector<1x1x1x64xf32>
    %694 = vector.shape_cast %693 : vector<1x1x1x64xf32> to vector<1x64xf32>
    %695 = vector.broadcast %694 : vector<1x64xf32> to vector<16x64xf32>
    %696 = arith.mulf %692, %695 : vector<16x64xf32>
    %c6_652 = arith.constant 6 : index
    %c0_653 = arith.constant 0 : index
    %c0_654 = arith.constant 0 : index
    %c0_655 = arith.constant 0 : index
    %697 = vector.load %arg6[%c6_652, %c0_653, %c0_654, %c0_655] : memref<9x6x1x64xf32, #tpu.memory_space<vmem>>, vector<1x1x1x64xf32>
    %698 = vector.shape_cast %697 : vector<1x1x1x64xf32> to vector<1x64xf32>
    %699 = vector.broadcast %698 : vector<1x64xf32> to vector<16x64xf32>
    %700 = arith.addf %696, %699 : vector<16x64xf32>
    %cst_656 = arith.constant 0.000000e+00 : f32
    %701 = vector.broadcast %cst_656 : f32 to vector<16x64xf32>
    %702 = arith.maximumf %700, %701 : vector<16x64xf32>
    %703 = arith.truncf %702 : vector<16x64xf32> to vector<16x64xbf16>
    %c6_657 = arith.constant 6 : index
    %c1_658 = arith.constant 1 : index
    %c0_659 = arith.constant 0 : index
    %c0_660 = arith.constant 0 : index
    %704 = vector.load %arg3[%c6_657, %c1_658, %c0_659, %c0_660] : memref<9x5x64x64xbf16, #tpu.memory_space<vmem>>, vector<1x1x64x64xbf16>
    %705 = vector.shape_cast %704 : vector<1x1x64x64xbf16> to vector<64x64xbf16>
    %cst_661 = arith.constant dense<0.000000e+00> : vector<16x64xf32>
    %706 = tpu.matmul %703, %705, %cst_661 {dimension_numbers = #tpu.dot_dimension_numbers<[1], [0], [0], [1], [0, 0, 1, 1], [], []>} : vector<16x64xbf16>, vector<64x64xbf16>, vector<16x64xf32> -> vector<16x64xf32>
    %c6_662 = arith.constant 6 : index
    %c1_663 = arith.constant 1 : index
    %c0_664 = arith.constant 0 : index
    %c0_665 = arith.constant 0 : index
    %707 = vector.load %arg4[%c6_662, %c1_663, %c0_664, %c0_665] : memref<9x5x1x64xf32, #tpu.memory_space<vmem>>, vector<1x1x1x64xf32>
    %708 = vector.shape_cast %707 : vector<1x1x1x64xf32> to vector<1x64xf32>
    %709 = vector.broadcast %708 : vector<1x64xf32> to vector<16x64xf32>
    %710 = arith.addf %706, %709 : vector<16x64xf32>
    %c6_666 = arith.constant 6 : index
    %c1_667 = arith.constant 1 : index
    %c0_668 = arith.constant 0 : index
    %c0_669 = arith.constant 0 : index
    %711 = vector.load %arg5[%c6_666, %c1_667, %c0_668, %c0_669] : memref<9x6x1x64xf32, #tpu.memory_space<vmem>>, vector<1x1x1x64xf32>
    %712 = vector.shape_cast %711 : vector<1x1x1x64xf32> to vector<1x64xf32>
    %713 = vector.broadcast %712 : vector<1x64xf32> to vector<16x64xf32>
    %714 = arith.mulf %710, %713 : vector<16x64xf32>
    %c6_670 = arith.constant 6 : index
    %c1_671 = arith.constant 1 : index
    %c0_672 = arith.constant 0 : index
    %c0_673 = arith.constant 0 : index
    %715 = vector.load %arg6[%c6_670, %c1_671, %c0_672, %c0_673] : memref<9x6x1x64xf32, #tpu.memory_space<vmem>>, vector<1x1x1x64xf32>
    %716 = vector.shape_cast %715 : vector<1x1x1x64xf32> to vector<1x64xf32>
    %717 = vector.broadcast %716 : vector<1x64xf32> to vector<16x64xf32>
    %718 = arith.addf %714, %717 : vector<16x64xf32>
    %cst_674 = arith.constant 0.000000e+00 : f32
    %719 = vector.broadcast %cst_674 : f32 to vector<16x64xf32>
    %720 = arith.maximumf %718, %719 : vector<16x64xf32>
    %721 = arith.truncf %720 : vector<16x64xf32> to vector<16x64xbf16>
    %c6_675 = arith.constant 6 : index
    %c2_676 = arith.constant 2 : index
    %c0_677 = arith.constant 0 : index
    %c0_678 = arith.constant 0 : index
    %722 = vector.load %arg3[%c6_675, %c2_676, %c0_677, %c0_678] : memref<9x5x64x64xbf16, #tpu.memory_space<vmem>>, vector<1x1x64x64xbf16>
    %723 = vector.shape_cast %722 : vector<1x1x64x64xbf16> to vector<64x64xbf16>
    %cst_679 = arith.constant dense<0.000000e+00> : vector<16x64xf32>
    %724 = tpu.matmul %721, %723, %cst_679 {dimension_numbers = #tpu.dot_dimension_numbers<[1], [0], [0], [1], [0, 0, 1, 1], [], []>} : vector<16x64xbf16>, vector<64x64xbf16>, vector<16x64xf32> -> vector<16x64xf32>
    %c6_680 = arith.constant 6 : index
    %c2_681 = arith.constant 2 : index
    %c0_682 = arith.constant 0 : index
    %c0_683 = arith.constant 0 : index
    %725 = vector.load %arg4[%c6_680, %c2_681, %c0_682, %c0_683] : memref<9x5x1x64xf32, #tpu.memory_space<vmem>>, vector<1x1x1x64xf32>
    %726 = vector.shape_cast %725 : vector<1x1x1x64xf32> to vector<1x64xf32>
    %727 = vector.broadcast %726 : vector<1x64xf32> to vector<16x64xf32>
    %728 = arith.addf %724, %727 : vector<16x64xf32>
    %c6_684 = arith.constant 6 : index
    %c2_685 = arith.constant 2 : index
    %c0_686 = arith.constant 0 : index
    %c0_687 = arith.constant 0 : index
    %729 = vector.load %arg5[%c6_684, %c2_685, %c0_686, %c0_687] : memref<9x6x1x64xf32, #tpu.memory_space<vmem>>, vector<1x1x1x64xf32>
    %730 = vector.shape_cast %729 : vector<1x1x1x64xf32> to vector<1x64xf32>
    %731 = vector.broadcast %730 : vector<1x64xf32> to vector<16x64xf32>
    %732 = arith.mulf %728, %731 : vector<16x64xf32>
    %c6_688 = arith.constant 6 : index
    %c2_689 = arith.constant 2 : index
    %c0_690 = arith.constant 0 : index
    %c0_691 = arith.constant 0 : index
    %733 = vector.load %arg6[%c6_688, %c2_689, %c0_690, %c0_691] : memref<9x6x1x64xf32, #tpu.memory_space<vmem>>, vector<1x1x1x64xf32>
    %734 = vector.shape_cast %733 : vector<1x1x1x64xf32> to vector<1x64xf32>
    %735 = vector.broadcast %734 : vector<1x64xf32> to vector<16x64xf32>
    %736 = arith.addf %732, %735 : vector<16x64xf32>
    %cst_692 = arith.constant 0.000000e+00 : f32
    %737 = vector.broadcast %cst_692 : f32 to vector<16x64xf32>
    %738 = arith.maximumf %736, %737 : vector<16x64xf32>
    %739 = arith.truncf %738 : vector<16x64xf32> to vector<16x64xbf16>
    %c6_693 = arith.constant 6 : index
    %c3_694 = arith.constant 3 : index
    %c0_695 = arith.constant 0 : index
    %c0_696 = arith.constant 0 : index
    %740 = vector.load %arg3[%c6_693, %c3_694, %c0_695, %c0_696] : memref<9x5x64x64xbf16, #tpu.memory_space<vmem>>, vector<1x1x64x64xbf16>
    %741 = vector.shape_cast %740 : vector<1x1x64x64xbf16> to vector<64x64xbf16>
    %cst_697 = arith.constant dense<0.000000e+00> : vector<16x64xf32>
    %742 = tpu.matmul %739, %741, %cst_697 {dimension_numbers = #tpu.dot_dimension_numbers<[1], [0], [0], [1], [0, 0, 1, 1], [], []>} : vector<16x64xbf16>, vector<64x64xbf16>, vector<16x64xf32> -> vector<16x64xf32>
    %c6_698 = arith.constant 6 : index
    %c3_699 = arith.constant 3 : index
    %c0_700 = arith.constant 0 : index
    %c0_701 = arith.constant 0 : index
    %743 = vector.load %arg4[%c6_698, %c3_699, %c0_700, %c0_701] : memref<9x5x1x64xf32, #tpu.memory_space<vmem>>, vector<1x1x1x64xf32>
    %744 = vector.shape_cast %743 : vector<1x1x1x64xf32> to vector<1x64xf32>
    %745 = vector.broadcast %744 : vector<1x64xf32> to vector<16x64xf32>
    %746 = arith.addf %742, %745 : vector<16x64xf32>
    %c6_702 = arith.constant 6 : index
    %c3_703 = arith.constant 3 : index
    %c0_704 = arith.constant 0 : index
    %c0_705 = arith.constant 0 : index
    %747 = vector.load %arg5[%c6_702, %c3_703, %c0_704, %c0_705] : memref<9x6x1x64xf32, #tpu.memory_space<vmem>>, vector<1x1x1x64xf32>
    %748 = vector.shape_cast %747 : vector<1x1x1x64xf32> to vector<1x64xf32>
    %749 = vector.broadcast %748 : vector<1x64xf32> to vector<16x64xf32>
    %750 = arith.mulf %746, %749 : vector<16x64xf32>
    %c6_706 = arith.constant 6 : index
    %c3_707 = arith.constant 3 : index
    %c0_708 = arith.constant 0 : index
    %c0_709 = arith.constant 0 : index
    %751 = vector.load %arg6[%c6_706, %c3_707, %c0_708, %c0_709] : memref<9x6x1x64xf32, #tpu.memory_space<vmem>>, vector<1x1x1x64xf32>
    %752 = vector.shape_cast %751 : vector<1x1x1x64xf32> to vector<1x64xf32>
    %753 = vector.broadcast %752 : vector<1x64xf32> to vector<16x64xf32>
    %754 = arith.addf %750, %753 : vector<16x64xf32>
    %cst_710 = arith.constant 0.000000e+00 : f32
    %755 = vector.broadcast %cst_710 : f32 to vector<16x64xf32>
    %756 = arith.maximumf %754, %755 : vector<16x64xf32>
    %757 = arith.truncf %756 : vector<16x64xf32> to vector<16x64xbf16>
    %c6_711 = arith.constant 6 : index
    %c4_712 = arith.constant 4 : index
    %c0_713 = arith.constant 0 : index
    %c0_714 = arith.constant 0 : index
    %758 = vector.load %arg3[%c6_711, %c4_712, %c0_713, %c0_714] : memref<9x5x64x64xbf16, #tpu.memory_space<vmem>>, vector<1x1x64x64xbf16>
    %759 = vector.shape_cast %758 : vector<1x1x64x64xbf16> to vector<64x64xbf16>
    %cst_715 = arith.constant dense<0.000000e+00> : vector<16x64xf32>
    %760 = tpu.matmul %757, %759, %cst_715 {dimension_numbers = #tpu.dot_dimension_numbers<[1], [0], [0], [1], [0, 0, 1, 1], [], []>} : vector<16x64xbf16>, vector<64x64xbf16>, vector<16x64xf32> -> vector<16x64xf32>
    %c6_716 = arith.constant 6 : index
    %c4_717 = arith.constant 4 : index
    %c0_718 = arith.constant 0 : index
    %c0_719 = arith.constant 0 : index
    %761 = vector.load %arg4[%c6_716, %c4_717, %c0_718, %c0_719] : memref<9x5x1x64xf32, #tpu.memory_space<vmem>>, vector<1x1x1x64xf32>
    %762 = vector.shape_cast %761 : vector<1x1x1x64xf32> to vector<1x64xf32>
    %763 = vector.broadcast %762 : vector<1x64xf32> to vector<16x64xf32>
    %764 = arith.addf %760, %763 : vector<16x64xf32>
    %c6_720 = arith.constant 6 : index
    %c4_721 = arith.constant 4 : index
    %c0_722 = arith.constant 0 : index
    %c0_723 = arith.constant 0 : index
    %765 = vector.load %arg5[%c6_720, %c4_721, %c0_722, %c0_723] : memref<9x6x1x64xf32, #tpu.memory_space<vmem>>, vector<1x1x1x64xf32>
    %766 = vector.shape_cast %765 : vector<1x1x1x64xf32> to vector<1x64xf32>
    %767 = vector.broadcast %766 : vector<1x64xf32> to vector<16x64xf32>
    %768 = arith.mulf %764, %767 : vector<16x64xf32>
    %c6_724 = arith.constant 6 : index
    %c4_725 = arith.constant 4 : index
    %c0_726 = arith.constant 0 : index
    %c0_727 = arith.constant 0 : index
    %769 = vector.load %arg6[%c6_724, %c4_725, %c0_726, %c0_727] : memref<9x6x1x64xf32, #tpu.memory_space<vmem>>, vector<1x1x1x64xf32>
    %770 = vector.shape_cast %769 : vector<1x1x1x64xf32> to vector<1x64xf32>
    %771 = vector.broadcast %770 : vector<1x64xf32> to vector<16x64xf32>
    %772 = arith.addf %768, %771 : vector<16x64xf32>
    %cst_728 = arith.constant 0.000000e+00 : f32
    %773 = vector.broadcast %cst_728 : f32 to vector<16x64xf32>
    %774 = arith.maximumf %772, %773 : vector<16x64xf32>
    %c6_729 = arith.constant 6 : index
    %c5_730 = arith.constant 5 : index
    %c0_731 = arith.constant 0 : index
    %c0_732 = arith.constant 0 : index
    %775 = vector.load %arg5[%c6_729, %c5_730, %c0_731, %c0_732] : memref<9x6x1x64xf32, #tpu.memory_space<vmem>>, vector<1x1x1x64xf32>
    %776 = vector.shape_cast %775 : vector<1x1x1x64xf32> to vector<1x64xf32>
    %777 = vector.broadcast %776 : vector<1x64xf32> to vector<16x64xf32>
    %778 = arith.mulf %774, %777 : vector<16x64xf32>
    %c6_733 = arith.constant 6 : index
    %c5_734 = arith.constant 5 : index
    %c0_735 = arith.constant 0 : index
    %c0_736 = arith.constant 0 : index
    %779 = vector.load %arg6[%c6_733, %c5_734, %c0_735, %c0_736] : memref<9x6x1x64xf32, #tpu.memory_space<vmem>>, vector<1x1x1x64xf32>
    %780 = vector.shape_cast %779 : vector<1x1x1x64xf32> to vector<1x64xf32>
    %781 = vector.broadcast %780 : vector<1x64xf32> to vector<16x64xf32>
    %782 = arith.addf %778, %781 : vector<16x64xf32>
    %cst_737 = arith.constant 0.000000e+00 : f32
    %783 = vector.broadcast %cst_737 : f32 to vector<16x64xf32>
    %784 = arith.maximumf %782, %783 : vector<16x64xf32>
    %785 = arith.truncf %784 : vector<16x64xf32> to vector<16x64xbf16>
    %c7 = arith.constant 7 : index
    %c0_738 = arith.constant 0 : index
    %c0_739 = arith.constant 0 : index
    %786 = vector.load %arg7[%c7, %c0_738, %c0_739] : memref<10x64x2xbf16, #tpu.memory_space<vmem>>, vector<1x64x2xbf16>
    %787 = vector.shape_cast %786 : vector<1x64x2xbf16> to vector<64x2xbf16>
    %cst_740 = arith.constant dense<0.000000e+00> : vector<16x2xf32>
    %788 = tpu.matmul %785, %787, %cst_740 {dimension_numbers = #tpu.dot_dimension_numbers<[1], [0], [0], [1], [0, 0, 1, 1], [], []>} : vector<16x64xbf16>, vector<64x2xbf16>, vector<16x2xf32> -> vector<16x2xf32>
    %789 = arith.addf %677, %788 : vector<16x2xf32>
    %c7_741 = arith.constant 7 : index
    %790 = memref.load %arg0[%c7_741] : memref<9xf32, #tpu.memory_space<smem>>
    %791 = arith.truncf %784 : vector<16x64xf32> to vector<16x64xbf16>
    %cst_742 = arith.constant dense<0.000000e+00> : vector<16x64xf32>
    %792 = tpu.matmul %0, %791, %cst_742 {dimension_numbers = #tpu.dot_dimension_numbers<[1], [0], [0], [1], [0, 0, 1, 1], [], []>} : vector<16x16xbf16>, vector<16x64xbf16>, vector<16x64xf32> -> vector<16x64xf32>
    %cst_743 = arith.constant 1.000000e+00 : f32
    %793 = arith.addf %cst_743, %790 : f32
    %794 = vector.broadcast %793 : f32 to vector<16x64xf32>
    %795 = arith.mulf %794, %784 : vector<16x64xf32>
    %796 = arith.addf %792, %795 : vector<16x64xf32>
    %797 = arith.truncf %796 : vector<16x64xf32> to vector<16x64xbf16>
    %c7_744 = arith.constant 7 : index
    %c0_745 = arith.constant 0 : index
    %c0_746 = arith.constant 0 : index
    %c0_747 = arith.constant 0 : index
    %798 = vector.load %arg3[%c7_744, %c0_745, %c0_746, %c0_747] : memref<9x5x64x64xbf16, #tpu.memory_space<vmem>>, vector<1x1x64x64xbf16>
    %799 = vector.shape_cast %798 : vector<1x1x64x64xbf16> to vector<64x64xbf16>
    %cst_748 = arith.constant dense<0.000000e+00> : vector<16x64xf32>
    %800 = tpu.matmul %797, %799, %cst_748 {dimension_numbers = #tpu.dot_dimension_numbers<[1], [0], [0], [1], [0, 0, 1, 1], [], []>} : vector<16x64xbf16>, vector<64x64xbf16>, vector<16x64xf32> -> vector<16x64xf32>
    %c7_749 = arith.constant 7 : index
    %c0_750 = arith.constant 0 : index
    %c0_751 = arith.constant 0 : index
    %c0_752 = arith.constant 0 : index
    %801 = vector.load %arg4[%c7_749, %c0_750, %c0_751, %c0_752] : memref<9x5x1x64xf32, #tpu.memory_space<vmem>>, vector<1x1x1x64xf32>
    %802 = vector.shape_cast %801 : vector<1x1x1x64xf32> to vector<1x64xf32>
    %803 = vector.broadcast %802 : vector<1x64xf32> to vector<16x64xf32>
    %804 = arith.addf %800, %803 : vector<16x64xf32>
    %c7_753 = arith.constant 7 : index
    %c0_754 = arith.constant 0 : index
    %c0_755 = arith.constant 0 : index
    %c0_756 = arith.constant 0 : index
    %805 = vector.load %arg5[%c7_753, %c0_754, %c0_755, %c0_756] : memref<9x6x1x64xf32, #tpu.memory_space<vmem>>, vector<1x1x1x64xf32>
    %806 = vector.shape_cast %805 : vector<1x1x1x64xf32> to vector<1x64xf32>
    %807 = vector.broadcast %806 : vector<1x64xf32> to vector<16x64xf32>
    %808 = arith.mulf %804, %807 : vector<16x64xf32>
    %c7_757 = arith.constant 7 : index
    %c0_758 = arith.constant 0 : index
    %c0_759 = arith.constant 0 : index
    %c0_760 = arith.constant 0 : index
    %809 = vector.load %arg6[%c7_757, %c0_758, %c0_759, %c0_760] : memref<9x6x1x64xf32, #tpu.memory_space<vmem>>, vector<1x1x1x64xf32>
    %810 = vector.shape_cast %809 : vector<1x1x1x64xf32> to vector<1x64xf32>
    %811 = vector.broadcast %810 : vector<1x64xf32> to vector<16x64xf32>
    %812 = arith.addf %808, %811 : vector<16x64xf32>
    %cst_761 = arith.constant 0.000000e+00 : f32
    %813 = vector.broadcast %cst_761 : f32 to vector<16x64xf32>
    %814 = arith.maximumf %812, %813 : vector<16x64xf32>
    %815 = arith.truncf %814 : vector<16x64xf32> to vector<16x64xbf16>
    %c7_762 = arith.constant 7 : index
    %c1_763 = arith.constant 1 : index
    %c0_764 = arith.constant 0 : index
    %c0_765 = arith.constant 0 : index
    %816 = vector.load %arg3[%c7_762, %c1_763, %c0_764, %c0_765] : memref<9x5x64x64xbf16, #tpu.memory_space<vmem>>, vector<1x1x64x64xbf16>
    %817 = vector.shape_cast %816 : vector<1x1x64x64xbf16> to vector<64x64xbf16>
    %cst_766 = arith.constant dense<0.000000e+00> : vector<16x64xf32>
    %818 = tpu.matmul %815, %817, %cst_766 {dimension_numbers = #tpu.dot_dimension_numbers<[1], [0], [0], [1], [0, 0, 1, 1], [], []>} : vector<16x64xbf16>, vector<64x64xbf16>, vector<16x64xf32> -> vector<16x64xf32>
    %c7_767 = arith.constant 7 : index
    %c1_768 = arith.constant 1 : index
    %c0_769 = arith.constant 0 : index
    %c0_770 = arith.constant 0 : index
    %819 = vector.load %arg4[%c7_767, %c1_768, %c0_769, %c0_770] : memref<9x5x1x64xf32, #tpu.memory_space<vmem>>, vector<1x1x1x64xf32>
    %820 = vector.shape_cast %819 : vector<1x1x1x64xf32> to vector<1x64xf32>
    %821 = vector.broadcast %820 : vector<1x64xf32> to vector<16x64xf32>
    %822 = arith.addf %818, %821 : vector<16x64xf32>
    %c7_771 = arith.constant 7 : index
    %c1_772 = arith.constant 1 : index
    %c0_773 = arith.constant 0 : index
    %c0_774 = arith.constant 0 : index
    %823 = vector.load %arg5[%c7_771, %c1_772, %c0_773, %c0_774] : memref<9x6x1x64xf32, #tpu.memory_space<vmem>>, vector<1x1x1x64xf32>
    %824 = vector.shape_cast %823 : vector<1x1x1x64xf32> to vector<1x64xf32>
    %825 = vector.broadcast %824 : vector<1x64xf32> to vector<16x64xf32>
    %826 = arith.mulf %822, %825 : vector<16x64xf32>
    %c7_775 = arith.constant 7 : index
    %c1_776 = arith.constant 1 : index
    %c0_777 = arith.constant 0 : index
    %c0_778 = arith.constant 0 : index
    %827 = vector.load %arg6[%c7_775, %c1_776, %c0_777, %c0_778] : memref<9x6x1x64xf32, #tpu.memory_space<vmem>>, vector<1x1x1x64xf32>
    %828 = vector.shape_cast %827 : vector<1x1x1x64xf32> to vector<1x64xf32>
    %829 = vector.broadcast %828 : vector<1x64xf32> to vector<16x64xf32>
    %830 = arith.addf %826, %829 : vector<16x64xf32>
    %cst_779 = arith.constant 0.000000e+00 : f32
    %831 = vector.broadcast %cst_779 : f32 to vector<16x64xf32>
    %832 = arith.maximumf %830, %831 : vector<16x64xf32>
    %833 = arith.truncf %832 : vector<16x64xf32> to vector<16x64xbf16>
    %c7_780 = arith.constant 7 : index
    %c2_781 = arith.constant 2 : index
    %c0_782 = arith.constant 0 : index
    %c0_783 = arith.constant 0 : index
    %834 = vector.load %arg3[%c7_780, %c2_781, %c0_782, %c0_783] : memref<9x5x64x64xbf16, #tpu.memory_space<vmem>>, vector<1x1x64x64xbf16>
    %835 = vector.shape_cast %834 : vector<1x1x64x64xbf16> to vector<64x64xbf16>
    %cst_784 = arith.constant dense<0.000000e+00> : vector<16x64xf32>
    %836 = tpu.matmul %833, %835, %cst_784 {dimension_numbers = #tpu.dot_dimension_numbers<[1], [0], [0], [1], [0, 0, 1, 1], [], []>} : vector<16x64xbf16>, vector<64x64xbf16>, vector<16x64xf32> -> vector<16x64xf32>
    %c7_785 = arith.constant 7 : index
    %c2_786 = arith.constant 2 : index
    %c0_787 = arith.constant 0 : index
    %c0_788 = arith.constant 0 : index
    %837 = vector.load %arg4[%c7_785, %c2_786, %c0_787, %c0_788] : memref<9x5x1x64xf32, #tpu.memory_space<vmem>>, vector<1x1x1x64xf32>
    %838 = vector.shape_cast %837 : vector<1x1x1x64xf32> to vector<1x64xf32>
    %839 = vector.broadcast %838 : vector<1x64xf32> to vector<16x64xf32>
    %840 = arith.addf %836, %839 : vector<16x64xf32>
    %c7_789 = arith.constant 7 : index
    %c2_790 = arith.constant 2 : index
    %c0_791 = arith.constant 0 : index
    %c0_792 = arith.constant 0 : index
    %841 = vector.load %arg5[%c7_789, %c2_790, %c0_791, %c0_792] : memref<9x6x1x64xf32, #tpu.memory_space<vmem>>, vector<1x1x1x64xf32>
    %842 = vector.shape_cast %841 : vector<1x1x1x64xf32> to vector<1x64xf32>
    %843 = vector.broadcast %842 : vector<1x64xf32> to vector<16x64xf32>
    %844 = arith.mulf %840, %843 : vector<16x64xf32>
    %c7_793 = arith.constant 7 : index
    %c2_794 = arith.constant 2 : index
    %c0_795 = arith.constant 0 : index
    %c0_796 = arith.constant 0 : index
    %845 = vector.load %arg6[%c7_793, %c2_794, %c0_795, %c0_796] : memref<9x6x1x64xf32, #tpu.memory_space<vmem>>, vector<1x1x1x64xf32>
    %846 = vector.shape_cast %845 : vector<1x1x1x64xf32> to vector<1x64xf32>
    %847 = vector.broadcast %846 : vector<1x64xf32> to vector<16x64xf32>
    %848 = arith.addf %844, %847 : vector<16x64xf32>
    %cst_797 = arith.constant 0.000000e+00 : f32
    %849 = vector.broadcast %cst_797 : f32 to vector<16x64xf32>
    %850 = arith.maximumf %848, %849 : vector<16x64xf32>
    %851 = arith.truncf %850 : vector<16x64xf32> to vector<16x64xbf16>
    %c7_798 = arith.constant 7 : index
    %c3_799 = arith.constant 3 : index
    %c0_800 = arith.constant 0 : index
    %c0_801 = arith.constant 0 : index
    %852 = vector.load %arg3[%c7_798, %c3_799, %c0_800, %c0_801] : memref<9x5x64x64xbf16, #tpu.memory_space<vmem>>, vector<1x1x64x64xbf16>
    %853 = vector.shape_cast %852 : vector<1x1x64x64xbf16> to vector<64x64xbf16>
    %cst_802 = arith.constant dense<0.000000e+00> : vector<16x64xf32>
    %854 = tpu.matmul %851, %853, %cst_802 {dimension_numbers = #tpu.dot_dimension_numbers<[1], [0], [0], [1], [0, 0, 1, 1], [], []>} : vector<16x64xbf16>, vector<64x64xbf16>, vector<16x64xf32> -> vector<16x64xf32>
    %c7_803 = arith.constant 7 : index
    %c3_804 = arith.constant 3 : index
    %c0_805 = arith.constant 0 : index
    %c0_806 = arith.constant 0 : index
    %855 = vector.load %arg4[%c7_803, %c3_804, %c0_805, %c0_806] : memref<9x5x1x64xf32, #tpu.memory_space<vmem>>, vector<1x1x1x64xf32>
    %856 = vector.shape_cast %855 : vector<1x1x1x64xf32> to vector<1x64xf32>
    %857 = vector.broadcast %856 : vector<1x64xf32> to vector<16x64xf32>
    %858 = arith.addf %854, %857 : vector<16x64xf32>
    %c7_807 = arith.constant 7 : index
    %c3_808 = arith.constant 3 : index
    %c0_809 = arith.constant 0 : index
    %c0_810 = arith.constant 0 : index
    %859 = vector.load %arg5[%c7_807, %c3_808, %c0_809, %c0_810] : memref<9x6x1x64xf32, #tpu.memory_space<vmem>>, vector<1x1x1x64xf32>
    %860 = vector.shape_cast %859 : vector<1x1x1x64xf32> to vector<1x64xf32>
    %861 = vector.broadcast %860 : vector<1x64xf32> to vector<16x64xf32>
    %862 = arith.mulf %858, %861 : vector<16x64xf32>
    %c7_811 = arith.constant 7 : index
    %c3_812 = arith.constant 3 : index
    %c0_813 = arith.constant 0 : index
    %c0_814 = arith.constant 0 : index
    %863 = vector.load %arg6[%c7_811, %c3_812, %c0_813, %c0_814] : memref<9x6x1x64xf32, #tpu.memory_space<vmem>>, vector<1x1x1x64xf32>
    %864 = vector.shape_cast %863 : vector<1x1x1x64xf32> to vector<1x64xf32>
    %865 = vector.broadcast %864 : vector<1x64xf32> to vector<16x64xf32>
    %866 = arith.addf %862, %865 : vector<16x64xf32>
    %cst_815 = arith.constant 0.000000e+00 : f32
    %867 = vector.broadcast %cst_815 : f32 to vector<16x64xf32>
    %868 = arith.maximumf %866, %867 : vector<16x64xf32>
    %869 = arith.truncf %868 : vector<16x64xf32> to vector<16x64xbf16>
    %c7_816 = arith.constant 7 : index
    %c4_817 = arith.constant 4 : index
    %c0_818 = arith.constant 0 : index
    %c0_819 = arith.constant 0 : index
    %870 = vector.load %arg3[%c7_816, %c4_817, %c0_818, %c0_819] : memref<9x5x64x64xbf16, #tpu.memory_space<vmem>>, vector<1x1x64x64xbf16>
    %871 = vector.shape_cast %870 : vector<1x1x64x64xbf16> to vector<64x64xbf16>
    %cst_820 = arith.constant dense<0.000000e+00> : vector<16x64xf32>
    %872 = tpu.matmul %869, %871, %cst_820 {dimension_numbers = #tpu.dot_dimension_numbers<[1], [0], [0], [1], [0, 0, 1, 1], [], []>} : vector<16x64xbf16>, vector<64x64xbf16>, vector<16x64xf32> -> vector<16x64xf32>
    %c7_821 = arith.constant 7 : index
    %c4_822 = arith.constant 4 : index
    %c0_823 = arith.constant 0 : index
    %c0_824 = arith.constant 0 : index
    %873 = vector.load %arg4[%c7_821, %c4_822, %c0_823, %c0_824] : memref<9x5x1x64xf32, #tpu.memory_space<vmem>>, vector<1x1x1x64xf32>
    %874 = vector.shape_cast %873 : vector<1x1x1x64xf32> to vector<1x64xf32>
    %875 = vector.broadcast %874 : vector<1x64xf32> to vector<16x64xf32>
    %876 = arith.addf %872, %875 : vector<16x64xf32>
    %c7_825 = arith.constant 7 : index
    %c4_826 = arith.constant 4 : index
    %c0_827 = arith.constant 0 : index
    %c0_828 = arith.constant 0 : index
    %877 = vector.load %arg5[%c7_825, %c4_826, %c0_827, %c0_828] : memref<9x6x1x64xf32, #tpu.memory_space<vmem>>, vector<1x1x1x64xf32>
    %878 = vector.shape_cast %877 : vector<1x1x1x64xf32> to vector<1x64xf32>
    %879 = vector.broadcast %878 : vector<1x64xf32> to vector<16x64xf32>
    %880 = arith.mulf %876, %879 : vector<16x64xf32>
    %c7_829 = arith.constant 7 : index
    %c4_830 = arith.constant 4 : index
    %c0_831 = arith.constant 0 : index
    %c0_832 = arith.constant 0 : index
    %881 = vector.load %arg6[%c7_829, %c4_830, %c0_831, %c0_832] : memref<9x6x1x64xf32, #tpu.memory_space<vmem>>, vector<1x1x1x64xf32>
    %882 = vector.shape_cast %881 : vector<1x1x1x64xf32> to vector<1x64xf32>
    %883 = vector.broadcast %882 : vector<1x64xf32> to vector<16x64xf32>
    %884 = arith.addf %880, %883 : vector<16x64xf32>
    %cst_833 = arith.constant 0.000000e+00 : f32
    %885 = vector.broadcast %cst_833 : f32 to vector<16x64xf32>
    %886 = arith.maximumf %884, %885 : vector<16x64xf32>
    %c7_834 = arith.constant 7 : index
    %c5_835 = arith.constant 5 : index
    %c0_836 = arith.constant 0 : index
    %c0_837 = arith.constant 0 : index
    %887 = vector.load %arg5[%c7_834, %c5_835, %c0_836, %c0_837] : memref<9x6x1x64xf32, #tpu.memory_space<vmem>>, vector<1x1x1x64xf32>
    %888 = vector.shape_cast %887 : vector<1x1x1x64xf32> to vector<1x64xf32>
    %889 = vector.broadcast %888 : vector<1x64xf32> to vector<16x64xf32>
    %890 = arith.mulf %886, %889 : vector<16x64xf32>
    %c7_838 = arith.constant 7 : index
    %c5_839 = arith.constant 5 : index
    %c0_840 = arith.constant 0 : index
    %c0_841 = arith.constant 0 : index
    %891 = vector.load %arg6[%c7_838, %c5_839, %c0_840, %c0_841] : memref<9x6x1x64xf32, #tpu.memory_space<vmem>>, vector<1x1x1x64xf32>
    %892 = vector.shape_cast %891 : vector<1x1x1x64xf32> to vector<1x64xf32>
    %893 = vector.broadcast %892 : vector<1x64xf32> to vector<16x64xf32>
    %894 = arith.addf %890, %893 : vector<16x64xf32>
    %cst_842 = arith.constant 0.000000e+00 : f32
    %895 = vector.broadcast %cst_842 : f32 to vector<16x64xf32>
    %896 = arith.maximumf %894, %895 : vector<16x64xf32>
    %897 = arith.truncf %896 : vector<16x64xf32> to vector<16x64xbf16>
    %c8 = arith.constant 8 : index
    %c0_843 = arith.constant 0 : index
    %c0_844 = arith.constant 0 : index
    %898 = vector.load %arg7[%c8, %c0_843, %c0_844] : memref<10x64x2xbf16, #tpu.memory_space<vmem>>, vector<1x64x2xbf16>
    %899 = vector.shape_cast %898 : vector<1x64x2xbf16> to vector<64x2xbf16>
    %cst_845 = arith.constant dense<0.000000e+00> : vector<16x2xf32>
    %900 = tpu.matmul %897, %899, %cst_845 {dimension_numbers = #tpu.dot_dimension_numbers<[1], [0], [0], [1], [0, 0, 1, 1], [], []>} : vector<16x64xbf16>, vector<64x2xbf16>, vector<16x2xf32> -> vector<16x2xf32>
    %901 = arith.addf %789, %900 : vector<16x2xf32>
    %c8_846 = arith.constant 8 : index
    %902 = memref.load %arg0[%c8_846] : memref<9xf32, #tpu.memory_space<smem>>
    %903 = arith.truncf %896 : vector<16x64xf32> to vector<16x64xbf16>
    %cst_847 = arith.constant dense<0.000000e+00> : vector<16x64xf32>
    %904 = tpu.matmul %0, %903, %cst_847 {dimension_numbers = #tpu.dot_dimension_numbers<[1], [0], [0], [1], [0, 0, 1, 1], [], []>} : vector<16x16xbf16>, vector<16x64xbf16>, vector<16x64xf32> -> vector<16x64xf32>
    %cst_848 = arith.constant 1.000000e+00 : f32
    %905 = arith.addf %cst_848, %902 : f32
    %906 = vector.broadcast %905 : f32 to vector<16x64xf32>
    %907 = arith.mulf %906, %896 : vector<16x64xf32>
    %908 = arith.addf %904, %907 : vector<16x64xf32>
    %909 = arith.truncf %908 : vector<16x64xf32> to vector<16x64xbf16>
    %c8_849 = arith.constant 8 : index
    %c0_850 = arith.constant 0 : index
    %c0_851 = arith.constant 0 : index
    %c0_852 = arith.constant 0 : index
    %910 = vector.load %arg3[%c8_849, %c0_850, %c0_851, %c0_852] : memref<9x5x64x64xbf16, #tpu.memory_space<vmem>>, vector<1x1x64x64xbf16>
    %911 = vector.shape_cast %910 : vector<1x1x64x64xbf16> to vector<64x64xbf16>
    %cst_853 = arith.constant dense<0.000000e+00> : vector<16x64xf32>
    %912 = tpu.matmul %909, %911, %cst_853 {dimension_numbers = #tpu.dot_dimension_numbers<[1], [0], [0], [1], [0, 0, 1, 1], [], []>} : vector<16x64xbf16>, vector<64x64xbf16>, vector<16x64xf32> -> vector<16x64xf32>
    %c8_854 = arith.constant 8 : index
    %c0_855 = arith.constant 0 : index
    %c0_856 = arith.constant 0 : index
    %c0_857 = arith.constant 0 : index
    %913 = vector.load %arg4[%c8_854, %c0_855, %c0_856, %c0_857] : memref<9x5x1x64xf32, #tpu.memory_space<vmem>>, vector<1x1x1x64xf32>
    %914 = vector.shape_cast %913 : vector<1x1x1x64xf32> to vector<1x64xf32>
    %915 = vector.broadcast %914 : vector<1x64xf32> to vector<16x64xf32>
    %916 = arith.addf %912, %915 : vector<16x64xf32>
    %c8_858 = arith.constant 8 : index
    %c0_859 = arith.constant 0 : index
    %c0_860 = arith.constant 0 : index
    %c0_861 = arith.constant 0 : index
    %917 = vector.load %arg5[%c8_858, %c0_859, %c0_860, %c0_861] : memref<9x6x1x64xf32, #tpu.memory_space<vmem>>, vector<1x1x1x64xf32>
    %918 = vector.shape_cast %917 : vector<1x1x1x64xf32> to vector<1x64xf32>
    %919 = vector.broadcast %918 : vector<1x64xf32> to vector<16x64xf32>
    %920 = arith.mulf %916, %919 : vector<16x64xf32>
    %c8_862 = arith.constant 8 : index
    %c0_863 = arith.constant 0 : index
    %c0_864 = arith.constant 0 : index
    %c0_865 = arith.constant 0 : index
    %921 = vector.load %arg6[%c8_862, %c0_863, %c0_864, %c0_865] : memref<9x6x1x64xf32, #tpu.memory_space<vmem>>, vector<1x1x1x64xf32>
    %922 = vector.shape_cast %921 : vector<1x1x1x64xf32> to vector<1x64xf32>
    %923 = vector.broadcast %922 : vector<1x64xf32> to vector<16x64xf32>
    %924 = arith.addf %920, %923 : vector<16x64xf32>
    %cst_866 = arith.constant 0.000000e+00 : f32
    %925 = vector.broadcast %cst_866 : f32 to vector<16x64xf32>
    %926 = arith.maximumf %924, %925 : vector<16x64xf32>
    %927 = arith.truncf %926 : vector<16x64xf32> to vector<16x64xbf16>
    %c8_867 = arith.constant 8 : index
    %c1_868 = arith.constant 1 : index
    %c0_869 = arith.constant 0 : index
    %c0_870 = arith.constant 0 : index
    %928 = vector.load %arg3[%c8_867, %c1_868, %c0_869, %c0_870] : memref<9x5x64x64xbf16, #tpu.memory_space<vmem>>, vector<1x1x64x64xbf16>
    %929 = vector.shape_cast %928 : vector<1x1x64x64xbf16> to vector<64x64xbf16>
    %cst_871 = arith.constant dense<0.000000e+00> : vector<16x64xf32>
    %930 = tpu.matmul %927, %929, %cst_871 {dimension_numbers = #tpu.dot_dimension_numbers<[1], [0], [0], [1], [0, 0, 1, 1], [], []>} : vector<16x64xbf16>, vector<64x64xbf16>, vector<16x64xf32> -> vector<16x64xf32>
    %c8_872 = arith.constant 8 : index
    %c1_873 = arith.constant 1 : index
    %c0_874 = arith.constant 0 : index
    %c0_875 = arith.constant 0 : index
    %931 = vector.load %arg4[%c8_872, %c1_873, %c0_874, %c0_875] : memref<9x5x1x64xf32, #tpu.memory_space<vmem>>, vector<1x1x1x64xf32>
    %932 = vector.shape_cast %931 : vector<1x1x1x64xf32> to vector<1x64xf32>
    %933 = vector.broadcast %932 : vector<1x64xf32> to vector<16x64xf32>
    %934 = arith.addf %930, %933 : vector<16x64xf32>
    %c8_876 = arith.constant 8 : index
    %c1_877 = arith.constant 1 : index
    %c0_878 = arith.constant 0 : index
    %c0_879 = arith.constant 0 : index
    %935 = vector.load %arg5[%c8_876, %c1_877, %c0_878, %c0_879] : memref<9x6x1x64xf32, #tpu.memory_space<vmem>>, vector<1x1x1x64xf32>
    %936 = vector.shape_cast %935 : vector<1x1x1x64xf32> to vector<1x64xf32>
    %937 = vector.broadcast %936 : vector<1x64xf32> to vector<16x64xf32>
    %938 = arith.mulf %934, %937 : vector<16x64xf32>
    %c8_880 = arith.constant 8 : index
    %c1_881 = arith.constant 1 : index
    %c0_882 = arith.constant 0 : index
    %c0_883 = arith.constant 0 : index
    %939 = vector.load %arg6[%c8_880, %c1_881, %c0_882, %c0_883] : memref<9x6x1x64xf32, #tpu.memory_space<vmem>>, vector<1x1x1x64xf32>
    %940 = vector.shape_cast %939 : vector<1x1x1x64xf32> to vector<1x64xf32>
    %941 = vector.broadcast %940 : vector<1x64xf32> to vector<16x64xf32>
    %942 = arith.addf %938, %941 : vector<16x64xf32>
    %cst_884 = arith.constant 0.000000e+00 : f32
    %943 = vector.broadcast %cst_884 : f32 to vector<16x64xf32>
    %944 = arith.maximumf %942, %943 : vector<16x64xf32>
    %945 = arith.truncf %944 : vector<16x64xf32> to vector<16x64xbf16>
    %c8_885 = arith.constant 8 : index
    %c2_886 = arith.constant 2 : index
    %c0_887 = arith.constant 0 : index
    %c0_888 = arith.constant 0 : index
    %946 = vector.load %arg3[%c8_885, %c2_886, %c0_887, %c0_888] : memref<9x5x64x64xbf16, #tpu.memory_space<vmem>>, vector<1x1x64x64xbf16>
    %947 = vector.shape_cast %946 : vector<1x1x64x64xbf16> to vector<64x64xbf16>
    %cst_889 = arith.constant dense<0.000000e+00> : vector<16x64xf32>
    %948 = tpu.matmul %945, %947, %cst_889 {dimension_numbers = #tpu.dot_dimension_numbers<[1], [0], [0], [1], [0, 0, 1, 1], [], []>} : vector<16x64xbf16>, vector<64x64xbf16>, vector<16x64xf32> -> vector<16x64xf32>
    %c8_890 = arith.constant 8 : index
    %c2_891 = arith.constant 2 : index
    %c0_892 = arith.constant 0 : index
    %c0_893 = arith.constant 0 : index
    %949 = vector.load %arg4[%c8_890, %c2_891, %c0_892, %c0_893] : memref<9x5x1x64xf32, #tpu.memory_space<vmem>>, vector<1x1x1x64xf32>
    %950 = vector.shape_cast %949 : vector<1x1x1x64xf32> to vector<1x64xf32>
    %951 = vector.broadcast %950 : vector<1x64xf32> to vector<16x64xf32>
    %952 = arith.addf %948, %951 : vector<16x64xf32>
    %c8_894 = arith.constant 8 : index
    %c2_895 = arith.constant 2 : index
    %c0_896 = arith.constant 0 : index
    %c0_897 = arith.constant 0 : index
    %953 = vector.load %arg5[%c8_894, %c2_895, %c0_896, %c0_897] : memref<9x6x1x64xf32, #tpu.memory_space<vmem>>, vector<1x1x1x64xf32>
    %954 = vector.shape_cast %953 : vector<1x1x1x64xf32> to vector<1x64xf32>
    %955 = vector.broadcast %954 : vector<1x64xf32> to vector<16x64xf32>
    %956 = arith.mulf %952, %955 : vector<16x64xf32>
    %c8_898 = arith.constant 8 : index
    %c2_899 = arith.constant 2 : index
    %c0_900 = arith.constant 0 : index
    %c0_901 = arith.constant 0 : index
    %957 = vector.load %arg6[%c8_898, %c2_899, %c0_900, %c0_901] : memref<9x6x1x64xf32, #tpu.memory_space<vmem>>, vector<1x1x1x64xf32>
    %958 = vector.shape_cast %957 : vector<1x1x1x64xf32> to vector<1x64xf32>
    %959 = vector.broadcast %958 : vector<1x64xf32> to vector<16x64xf32>
    %960 = arith.addf %956, %959 : vector<16x64xf32>
    %cst_902 = arith.constant 0.000000e+00 : f32
    %961 = vector.broadcast %cst_902 : f32 to vector<16x64xf32>
    %962 = arith.maximumf %960, %961 : vector<16x64xf32>
    %963 = arith.truncf %962 : vector<16x64xf32> to vector<16x64xbf16>
    %c8_903 = arith.constant 8 : index
    %c3_904 = arith.constant 3 : index
    %c0_905 = arith.constant 0 : index
    %c0_906 = arith.constant 0 : index
    %964 = vector.load %arg3[%c8_903, %c3_904, %c0_905, %c0_906] : memref<9x5x64x64xbf16, #tpu.memory_space<vmem>>, vector<1x1x64x64xbf16>
    %965 = vector.shape_cast %964 : vector<1x1x64x64xbf16> to vector<64x64xbf16>
    %cst_907 = arith.constant dense<0.000000e+00> : vector<16x64xf32>
    %966 = tpu.matmul %963, %965, %cst_907 {dimension_numbers = #tpu.dot_dimension_numbers<[1], [0], [0], [1], [0, 0, 1, 1], [], []>} : vector<16x64xbf16>, vector<64x64xbf16>, vector<16x64xf32> -> vector<16x64xf32>
    %c8_908 = arith.constant 8 : index
    %c3_909 = arith.constant 3 : index
    %c0_910 = arith.constant 0 : index
    %c0_911 = arith.constant 0 : index
    %967 = vector.load %arg4[%c8_908, %c3_909, %c0_910, %c0_911] : memref<9x5x1x64xf32, #tpu.memory_space<vmem>>, vector<1x1x1x64xf32>
    %968 = vector.shape_cast %967 : vector<1x1x1x64xf32> to vector<1x64xf32>
    %969 = vector.broadcast %968 : vector<1x64xf32> to vector<16x64xf32>
    %970 = arith.addf %966, %969 : vector<16x64xf32>
    %c8_912 = arith.constant 8 : index
    %c3_913 = arith.constant 3 : index
    %c0_914 = arith.constant 0 : index
    %c0_915 = arith.constant 0 : index
    %971 = vector.load %arg5[%c8_912, %c3_913, %c0_914, %c0_915] : memref<9x6x1x64xf32, #tpu.memory_space<vmem>>, vector<1x1x1x64xf32>
    %972 = vector.shape_cast %971 : vector<1x1x1x64xf32> to vector<1x64xf32>
    %973 = vector.broadcast %972 : vector<1x64xf32> to vector<16x64xf32>
    %974 = arith.mulf %970, %973 : vector<16x64xf32>
    %c8_916 = arith.constant 8 : index
    %c3_917 = arith.constant 3 : index
    %c0_918 = arith.constant 0 : index
    %c0_919 = arith.constant 0 : index
    %975 = vector.load %arg6[%c8_916, %c3_917, %c0_918, %c0_919] : memref<9x6x1x64xf32, #tpu.memory_space<vmem>>, vector<1x1x1x64xf32>
    %976 = vector.shape_cast %975 : vector<1x1x1x64xf32> to vector<1x64xf32>
    %977 = vector.broadcast %976 : vector<1x64xf32> to vector<16x64xf32>
    %978 = arith.addf %974, %977 : vector<16x64xf32>
    %cst_920 = arith.constant 0.000000e+00 : f32
    %979 = vector.broadcast %cst_920 : f32 to vector<16x64xf32>
    %980 = arith.maximumf %978, %979 : vector<16x64xf32>
    %981 = arith.truncf %980 : vector<16x64xf32> to vector<16x64xbf16>
    %c8_921 = arith.constant 8 : index
    %c4_922 = arith.constant 4 : index
    %c0_923 = arith.constant 0 : index
    %c0_924 = arith.constant 0 : index
    %982 = vector.load %arg3[%c8_921, %c4_922, %c0_923, %c0_924] : memref<9x5x64x64xbf16, #tpu.memory_space<vmem>>, vector<1x1x64x64xbf16>
    %983 = vector.shape_cast %982 : vector<1x1x64x64xbf16> to vector<64x64xbf16>
    %cst_925 = arith.constant dense<0.000000e+00> : vector<16x64xf32>
    %984 = tpu.matmul %981, %983, %cst_925 {dimension_numbers = #tpu.dot_dimension_numbers<[1], [0], [0], [1], [0, 0, 1, 1], [], []>} : vector<16x64xbf16>, vector<64x64xbf16>, vector<16x64xf32> -> vector<16x64xf32>
    %c8_926 = arith.constant 8 : index
    %c4_927 = arith.constant 4 : index
    %c0_928 = arith.constant 0 : index
    %c0_929 = arith.constant 0 : index
    %985 = vector.load %arg4[%c8_926, %c4_927, %c0_928, %c0_929] : memref<9x5x1x64xf32, #tpu.memory_space<vmem>>, vector<1x1x1x64xf32>
    %986 = vector.shape_cast %985 : vector<1x1x1x64xf32> to vector<1x64xf32>
    %987 = vector.broadcast %986 : vector<1x64xf32> to vector<16x64xf32>
    %988 = arith.addf %984, %987 : vector<16x64xf32>
    %c8_930 = arith.constant 8 : index
    %c4_931 = arith.constant 4 : index
    %c0_932 = arith.constant 0 : index
    %c0_933 = arith.constant 0 : index
    %989 = vector.load %arg5[%c8_930, %c4_931, %c0_932, %c0_933] : memref<9x6x1x64xf32, #tpu.memory_space<vmem>>, vector<1x1x1x64xf32>
    %990 = vector.shape_cast %989 : vector<1x1x1x64xf32> to vector<1x64xf32>
    %991 = vector.broadcast %990 : vector<1x64xf32> to vector<16x64xf32>
    %992 = arith.mulf %988, %991 : vector<16x64xf32>
    %c8_934 = arith.constant 8 : index
    %c4_935 = arith.constant 4 : index
    %c0_936 = arith.constant 0 : index
    %c0_937 = arith.constant 0 : index
    %993 = vector.load %arg6[%c8_934, %c4_935, %c0_936, %c0_937] : memref<9x6x1x64xf32, #tpu.memory_space<vmem>>, vector<1x1x1x64xf32>
    %994 = vector.shape_cast %993 : vector<1x1x1x64xf32> to vector<1x64xf32>
    %995 = vector.broadcast %994 : vector<1x64xf32> to vector<16x64xf32>
    %996 = arith.addf %992, %995 : vector<16x64xf32>
    %cst_938 = arith.constant 0.000000e+00 : f32
    %997 = vector.broadcast %cst_938 : f32 to vector<16x64xf32>
    %998 = arith.maximumf %996, %997 : vector<16x64xf32>
    %c8_939 = arith.constant 8 : index
    %c5_940 = arith.constant 5 : index
    %c0_941 = arith.constant 0 : index
    %c0_942 = arith.constant 0 : index
    %999 = vector.load %arg5[%c8_939, %c5_940, %c0_941, %c0_942] : memref<9x6x1x64xf32, #tpu.memory_space<vmem>>, vector<1x1x1x64xf32>
    %1000 = vector.shape_cast %999 : vector<1x1x1x64xf32> to vector<1x64xf32>
    %1001 = vector.broadcast %1000 : vector<1x64xf32> to vector<16x64xf32>
    %1002 = arith.mulf %998, %1001 : vector<16x64xf32>
    %c8_943 = arith.constant 8 : index
    %c5_944 = arith.constant 5 : index
    %c0_945 = arith.constant 0 : index
    %c0_946 = arith.constant 0 : index
    %1003 = vector.load %arg6[%c8_943, %c5_944, %c0_945, %c0_946] : memref<9x6x1x64xf32, #tpu.memory_space<vmem>>, vector<1x1x1x64xf32>
    %1004 = vector.shape_cast %1003 : vector<1x1x1x64xf32> to vector<1x64xf32>
    %1005 = vector.broadcast %1004 : vector<1x64xf32> to vector<16x64xf32>
    %1006 = arith.addf %1002, %1005 : vector<16x64xf32>
    %cst_947 = arith.constant 0.000000e+00 : f32
    %1007 = vector.broadcast %cst_947 : f32 to vector<16x64xf32>
    %1008 = arith.maximumf %1006, %1007 : vector<16x64xf32>
    %1009 = arith.truncf %1008 : vector<16x64xf32> to vector<16x64xbf16>
    %c9 = arith.constant 9 : index
    %c0_948 = arith.constant 0 : index
    %c0_949 = arith.constant 0 : index
    %1010 = vector.load %arg7[%c9, %c0_948, %c0_949] : memref<10x64x2xbf16, #tpu.memory_space<vmem>>, vector<1x64x2xbf16>
    %1011 = vector.shape_cast %1010 : vector<1x64x2xbf16> to vector<64x2xbf16>
    %cst_950 = arith.constant dense<0.000000e+00> : vector<16x2xf32>
    %1012 = tpu.matmul %1009, %1011, %cst_950 {dimension_numbers = #tpu.dot_dimension_numbers<[1], [0], [0], [1], [0, 0, 1, 1], [], []>} : vector<16x64xbf16>, vector<64x2xbf16>, vector<16x2xf32> -> vector<16x2xf32>
    %1013 = arith.addf %901, %1012 : vector<16x2xf32>
    %c0_951 = arith.constant 0 : index
    %c0_952 = arith.constant 0 : index
    %1014 = vector.load %arg8[%c0_951, %c0_952] : memref<1x2xf32, #tpu.memory_space<vmem>>, vector<1x2xf32>
    %1015 = vector.broadcast %1014 : vector<1x2xf32> to vector<16x2xf32>
    %1016 = arith.addf %1013, %1015 : vector<16x2xf32>
    %c0_953 = arith.constant 0 : index
    %c0_954 = arith.constant 0 : index
    %1017 = vector.load %arg9[%c0_953, %c0_954] : memref<16x2xf32, #tpu.memory_space<vmem>>, vector<16x2xf32>
    tpu.vector_store %arg9[%c0_953, %c0_954], %1016 {strides = array<i32>} : memref<16x2xf32, #tpu.memory_space<vmem>>, vector<16x2xf32>,
    return
  }
}

</mosaic_0001>

<llo_original>
// kernel: gin_forward.1
$region0: #{gin_forward.1}
  #allocation0 [shape = 'u32[]', space=smem, size = 0x4, offset = 0x4, fixed_abs, tag = 'smem constant byte address 0x4 - core index']
  #allocation1 [shape = 'u32[72,128]{1,0:T(1,128)}', space=vmem, size = 0x9000, scoped, tag = 'internal scratch']
  %s0 = inlined_call_operand.vmem [shape: f32[9], index: 0, kind: input, shape index: {}]
  %s1 = inlined_call_operand.vmem [shape: bf16[16,16], index: 1, kind: input, shape index: {}]
  %s2 = inlined_call_operand.vmem [shape: f32[16,64], index: 2, kind: input, shape index: {}]
  %s3 = inlined_call_operand.hbm [shape: bf16[9,5,64,64], index: 3, kind: input, shape index: {}]
  %s4 = inlined_call_operand.vmem [shape: f32[9,5,1,64], index: 4, kind: input, shape index: {}]
  %s5 = inlined_call_operand.vmem [shape: f32[9,6,1,64], index: 5, kind: input, shape index: {}]
  %s6 = inlined_call_operand.vmem [shape: f32[9,6,1,64], index: 6, kind: input, shape index: {}]
  %s7 = inlined_call_operand.vmem [shape: bf16[10,64,2], index: 7, kind: input, shape index: {}]
  %s8 = inlined_call_operand.vmem [shape: f32[1,2], index: 8, kind: input, shape index: {}]
  %s9 = inlined_call_operand.vmem [shape: f32[16,2], index: 9, kind: output, shape index: {}]
  %s10 = sld [smem:[#allocation0]]
  $region54: #{gin_forward.1} parent=0
    _
  %s12 = ssub.s32 1, %s10
  %s13 = scalar_select 0, %s12, %s10
  $region1: #{gin_forward.1} parent=0
    #allocation2 [shape = 'u8[512]{0}', space=smem, size = 0x200, scoped, tag = 'input window, operand 0, single buffered']
    #allocation3 [shape = 's32[1]{0}', space=sflag, size = 0x4, scoped, tag = 'scoped memory for gin_forward.1']
    #allocation4 [shape = 's32[1]{0}', space=sflag, size = 0x4, scoped, tag = 'scoped memory for gin_forward.1']
    #allocation5 [shape = 'u8[737280]{0}', space=vmem, size = 0xb4000, scoped, tag = 'input window, operand 3, single buffered']
    %14 = vsyncpa [#allocation4], 0
    %15 = vsyncpa [#allocation3], 0
    // Predicated region
    $region2: #{gin_forward.1} parent=1 // pred_check
      _
    $region3: #{gin_forward.1} parent=1 // pred_check_branch
      %17 = sbr.rel (0) target = $region5
    $region4: #{gin_forward.1} parent=1 // pred_region
      %19 = vsyncadd [#allocation4], 0
      %s21 = sshll.u32 %s0, 4
      %s22 = int_to_ptr.vmem [resolvable:$true] %s21
      %24 = dma.vmem_to_smem %s22, 16, [#allocation2], [#allocation4]
    $region5: #{gin_forward.1} parent=1 // pred_fallthru
      _
    // Predicated region
    $region6: #{gin_forward.1} parent=1 // pred_check
      _
    $region7: #{gin_forward.1} parent=1 // pred_check_branch
      %26 = sbr.rel (0) target = $region9
    $region8: #{gin_forward.1} parent=1 // pred_region
      _
    $region9: #{gin_forward.1} parent=1 // pred_fallthru
      _
    // Predicated region
    $region10: #{gin_forward.1} parent=1 // pred_check
      _
    $region11: #{gin_forward.1} parent=1 // pred_check_branch
      %28 = sbr.rel (0) target = $region13
    $region12: #{gin_forward.1} parent=1 // pred_region
      _
    $region13: #{gin_forward.1} parent=1 // pred_fallthru
      _
    // Predicated region
    $region14: #{gin_forward.1} parent=1 // pred_check
      _
    $region15: #{gin_forward.1} parent=1 // pred_check_branch
      %30 = sbr.rel (0) target = $region17
    $region16: #{gin_forward.1} parent=1 // pred_region
      %32 = vsyncadd [#allocation3], 0
      %s33 = sshll.u32 %s3, 4
      %s34 = int_to_ptr.hbm [resolvable:$true] %s33
      %s35 = sshll.u32 [#allocation5], 4
      %s36 = int_to_ptr.vmem [resolvable:$true] %s35
      %41 = dma.hbm_to_vmem [thread:$0]  %s34, 23040, %s36, [#allocation3], 64, 64, 4
    $region17: #{gin_forward.1} parent=1 // pred_fallthru
      _
    // Predicated region
    $region18: #{gin_forward.1} parent=1 // pred_check
      _
    $region19: #{gin_forward.1} parent=1 // pred_check_branch
      %43 = sbr.rel (0) target = $region21
    $region20: #{gin_forward.1} parent=1 // pred_region
      _
    $region21: #{gin_forward.1} parent=1 // pred_fallthru
      _
    // Predicated region
    $region22: #{gin_forward.1} parent=1 // pred_check
      _
    $region23: #{gin_forward.1} parent=1 // pred_check_branch
      %45 = sbr.rel (0) target = $region25
    $region24: #{gin_forward.1} parent=1 // pred_region
      _
    $region25: #{gin_forward.1} parent=1 // pred_fallthru
      _
    // Predicated region
    $region26: #{gin_forward.1} parent=1 // pred_check
      _
    $region27: #{gin_forward.1} parent=1 // pred_check_branch
      %47 = sbr.rel (0) target = $region29
    $region28: #{gin_forward.1} parent=1 // pred_region
      _
    $region29: #{gin_forward.1} parent=1 // pred_fallthru
      _
    // Predicated region
    $region30: #{gin_forward.1} parent=1 // pred_check
      _
    $region31: #{gin_forward.1} parent=1 // pred_check_branch
      %49 = sbr.rel (0) target = $region33
    $region32: #{gin_forward.1} parent=1 // pred_region
      _
    $region33: #{gin_forward.1} parent=1 // pred_fallthru
      _
    // Predicated region
    $region34: #{gin_forward.1} parent=1 // pred_check
      _
    $region35: #{gin_forward.1} parent=1 // pred_check_branch
      %51 = sbr.rel (0) target = $region37
    $region36: #{gin_forward.1} parent=1 // pred_region
      _
    $region37: #{gin_forward.1} parent=1 // pred_fallthru
      _
    // Predicated region
    $region38: #{gin_forward.1} parent=1 // pred_check
      _
    $region39: #{gin_forward.1} parent=1 // pred_check_branch
      %53 = sbr.rel (0) target = $region41
    $region40: #{gin_forward.1} parent=1 // pred_region
      %55 = dma.done [#allocation4], 16
    $region41: #{gin_forward.1} parent=1 // pred_fallthru
      _
    // Predicated region
    $region42: #{gin_forward.1} parent=1 // pred_check
      _
    $region43: #{gin_forward.1} parent=1 // pred_check_branch
      %57 = sbr.rel (0) target = $region45
    $region44: #{gin_forward.1} parent=1 // pred_region
      %59 = dma.done [#allocation3], 23040
    $region45: #{gin_forward.1} parent=1 // pred_fallthru
      _
    %60 = sfence
    %v62 = vld [vmem:[%s1] sm:$0xf]
    %v63 = vld [vmem:[%s1 + $0x4] sm:$0xf]
    %v64 = vld [vmem:[%s2] sm:$0xff]
    %v65 = vld [vmem:[%s2 + $0x8] sm:$0xff]
    %v66 = vpack.c.bf16 %v65, %v64
    %v67 = vld [vmem:[%s7] sm:$0xf]
    %v68 = vld [vmem:[%s7 + $0x4] sm:$0xf]
    %v69 = vld [vmem:[%s7 + $0x8] sm:$0xf]
    %v70 = vld [vmem:[%s7 + $0xc] sm:$0xf]
    %v71 = vld [vmem:[%s7 + $0x10] sm:$0xf]
    %v72 = vld [vmem:[%s7 + $0x14] sm:$0xf]
    %v73 = vld [vmem:[%s7 + $0x18] sm:$0xf]
    %v74 = vld [vmem:[%s7 + $0x1c] sm:$0xf]
    %s75 = sld [smem:[#allocation2]]
    %s76 = sadd.f32 %s75, 1.0
    %v77 = vstv %s76
    %v78 = vmul.f32 %v77, %v64
    %v79 = vmul.f32 %v77, %v65
    %v82 = vunpack.c.l.b16 %v62
    %v83 = vunpack.c.l.b16 %v63
    %v84 = vpack.c.b16 %v83, %v82
    %vm85 = vcmask 130048
    %v87 = vsel %vm85, %v84, 0
    %89 = vmatpush.bf16.msra.mxu0 0
    %90 = vmatpush.bf16.msra.mxu0 0
    %91 = vmatpush.bf16.msra.mxu0 0
    %92 = vmatpush.bf16.msra.mxu0 0
    %93 = vmatpush.bf16.msra.mxu0 0
    %94 = vmatpush.bf16.msra.mxu0 0
    %95 = vmatpush.bf16.msra.mxu0 0
    %96 = vmatpush.bf16.msra.mxu0 %v66
    %97 = vmatmul.bf16.gmra.mxu0 %v87
    %v98 = vpop.f32.mrf.mxu0
    %v99 = vadd.f32 %v78, %v98
    %v100 = vpop.f32.mrf.mxu0
    %v101 = vadd.f32 %v79, %v100
    %102 = vdwg.mxu0
    %v103 = vpack.c.bf16 %v101, %v99
    %v104 = vld [vmem:[#allocation5] sm:$0xf]
    %v105 = vld [vmem:[#allocation5 + $0x4] sm:$0xf]
    %v106 = vld [vmem:[#allocation5 + $0x8] sm:$0xf]
    %v107 = vld [vmem:[#allocation5 + $0xc] sm:$0xf]
    %v108 = vld [vmem:[#allocation5 + $0x10] sm:$0xf]
    %v109 = vld [vmem:[#allocation5 + $0x14] sm:$0xf]
    %v110 = vld [vmem:[#allocation5 + $0x18] sm:$0xf]
    %v111 = vld [vmem:[#allocation5 + $0x1c] sm:$0xf]
    %v112 = vld [vmem:[%s4] sm:$0x1]
    %v114 = vperm.slane %v112, 0
    %v124 = vunpack.c.l.b16 %v104
    %v125 = vunpack.c.l.b16 %v105
    %v126 = vunpack.c.l.b16 %v106
    %v127 = vunpack.c.l.b16 %v107
    %v128 = vunpack.c.l.b16 %v108
    %v129 = vunpack.c.l.b16 %v109
    %v130 = vunpack.c.l.b16 %v110
    %v131 = vunpack.c.l.b16 %v111
    %v132 = vpack.c.b16 %v125, %v124
    %v133 = vpack.c.b16 %v127, %v126
    %v134 = vpack.c.b16 %v129, %v128
    %v135 = vpack.c.b16 %v131, %v130
    %vm140 = vcmask 523264
    %v142 = vsel %vm140, %v103, 0
    %144 = vmatpush.bf16.msra.mxu0 0
    %145 = vmatpush.bf16.msra.mxu0 0
    %146 = vmatpush.bf16.msra.mxu0 0
    %147 = vmatpush.bf16.msra.mxu0 0
    %148 = vmatpush.bf16.msra.mxu0 %v135
    %149 = vmatpush.bf16.msra.mxu0 %v134
    %150 = vmatpush.bf16.msra.mxu0 %v133
    %151 = vmatpush.bf16.msra.mxu0 %v132
    %152 = vmatmul.bf16.gmra.mxu0 %v142
    %v153 = vpop.f32.mrf.mxu0
    %v154 = vadd.f32 %v114, %v153
    %v155 = vpop.f32.mrf.mxu0
    %v156 = vadd.f32 %v114, %v155
    %157 = vdwg.mxu0
    %v158 = vld [vmem:[%s5] sm:$0x1]
    %v160 = vperm.slane %v158, 0
    %v162 = vmul.f32 %v154, %v160
    %v163 = vmul.f32 %v156, %v160
    %v164 = vld [vmem:[%s6] sm:$0x1]
    %v166 = vperm.slane %v164, 0
    %v168 = vadd.f32 %v162, %v166
    %v169 = vadd.f32 %v163, %v166
    %v170 = vmax.f32 %v168, 0.0
    %v171 = vmax.f32 %v169, 0.0
    %v172 = vpack.c.bf16 %v171, %v170
    %s173 = scalar_lea.vmem [#allocation5], 32
    %v174 = vld [vmem:[%s173] sm:$0xf]
    %v175 = vld [vmem:[%s173 + $0x4] sm:$0xf]
    %v176 = vld [vmem:[%s173 + $0x8] sm:$0xf]
    %v177 = vld [vmem:[%s173 + $0xc] sm:$0xf]
    %v178 = vld [vmem:[%s173 + $0x10] sm:$0xf]
    %v179 = vld [vmem:[%s173 + $0x14] sm:$0xf]
    %v180 = vld [vmem:[%s173 + $0x18] sm:$0xf]
    %v181 = vld [vmem:[%s173 + $0x1c] sm:$0xf]
    %s182 = scalar_lea.vmem %s4, 1
    %v183 = vld [vmem:[%s182] sm:$0x1]
    %v185 = vperm.slane %v183, 0
    %v195 = vunpack.c.l.b16 %v174
    %v196 = vunpack.c.l.b16 %v175
    %v197 = vunpack.c.l.b16 %v176
    %v198 = vunpack.c.l.b16 %v177
    %v199 = vunpack.c.l.b16 %v178
    %v200 = vunpack.c.l.b16 %v179
    %v201 = vunpack.c.l.b16 %v180
    %v202 = vunpack.c.l.b16 %v181
    %v203 = vpack.c.b16 %v196, %v195
    %v204 = vpack.c.b16 %v198, %v197
    %v205 = vpack.c.b16 %v200, %v199
    %v206 = vpack.c.b16 %v202, %v201
    %v212 = vsel %vm140, %v172, 0
    %214 = vmatpush.bf16.msra.mxu0 0
    %215 = vmatpush.bf16.msra.mxu0 0
    %216 = vmatpush.bf16.msra.mxu0 0
    %217 = vmatpush.bf16.msra.mxu0 0
    %218 = vmatpush.bf16.msra.mxu0 %v206
    %219 = vmatpush.bf16.msra.mxu0 %v205
    %220 = vmatpush.bf16.msra.mxu0 %v204
    %221 = vmatpush.bf16.msra.mxu0 %v203
    %222 = vmatmul.bf16.gmra.mxu0 %v212
    %v223 = vpop.f32.mrf.mxu0
    %v224 = vadd.f32 %v185, %v223
    %v225 = vpop.f32.mrf.mxu0
    %v226 = vadd.f32 %v185, %v225
    %227 = vdwg.mxu0
    %s228 = scalar_lea.vmem %s5, 1
    %v229 = vld [vmem:[%s228] sm:$0x1]
    %v231 = vperm.slane %v229, 0
    %v233 = vmul.f32 %v224, %v231
    %v234 = vmul.f32 %v226, %v231
    %s235 = scalar_lea.vmem %s6, 1
    %v236 = vld [vmem:[%s235] sm:$0x1]
    %v238 = vperm.slane %v236, 0
    %v240 = vadd.f32 %v233, %v238
    %v241 = vadd.f32 %v234, %v238
    %v242 = vmax.f32 %v240, 0.0
    %v243 = vmax.f32 %v241, 0.0
    %v244 = vpack.c.bf16 %v243, %v242
    %s245 = scalar_lea.vmem [#allocation5], 64
    %v246 = vld [vmem:[%s245] sm:$0xf]
    %v247 = vld [vmem:[%s245 + $0x4] sm:$0xf]
    %v248 = vld [vmem:[%s245 + $0x8] sm:$0xf]
    %v249 = vld [vmem:[%s245 + $0xc] sm:$0xf]
    %v250 = vld [vmem:[%s245 + $0x10] sm:$0xf]
    %v251 = vld [vmem:[%s245 + $0x14] sm:$0xf]
    %v252 = vld [vmem:[%s245 + $0x18] sm:$0xf]
    %v253 = vld [vmem:[%s245 + $0x1c] sm:$0xf]
    %s254 = scalar_lea.vmem %s4, 2
    %v255 = vld [vmem:[%s254] sm:$0x1]
    %v257 = vperm.slane %v255, 0
    %v267 = vunpack.c.l.b16 %v246
    %v268 = vunpack.c.l.b16 %v247
    %v269 = vunpack.c.l.b16 %v248
    %v270 = vunpack.c.l.b16 %v249
    %v271 = vunpack.c.l.b16 %v250
    %v272 = vunpack.c.l.b16 %v251
    %v273 = vunpack.c.l.b16 %v252
    %v274 = vunpack.c.l.b16 %v253
    %v275 = vpack.c.b16 %v268, %v267
    %v276 = vpack.c.b16 %v270, %v269
    %v277 = vpack.c.b16 %v272, %v271
    %v278 = vpack.c.b16 %v274, %v273
    %v284 = vsel %vm140, %v244, 0
    %286 = vmatpush.bf16.msra.mxu0 0
    %287 = vmatpush.bf16.msra.mxu0 0
    %288 = vmatpush.bf16.msra.mxu0 0
    %289 = vmatpush.bf16.msra.mxu0 0
    %290 = vmatpush.bf16.msra.mxu0 %v278
    %291 = vmatpush.bf16.msra.mxu0 %v277
    %292 = vmatpush.bf16.msra.mxu0 %v276
    %293 = vmatpush.bf16.msra.mxu0 %v275
    %294 = vmatmul.bf16.gmra.mxu0 %v284
    %v295 = vpop.f32.mrf.mxu0
    %v296 = vadd.f32 %v257, %v295
    %v297 = vpop.f32.mrf.mxu0
    %v298 = vadd.f32 %v257, %v297
    %299 = vdwg.mxu0
    %s300 = scalar_lea.vmem %s5, 2
    %v301 = vld [vmem:[%s300] sm:$0x1]
    %v303 = vperm.slane %v301, 0
    %v305 = vmul.f32 %v296, %v303
    %v306 = vmul.f32 %v298, %v303
    %s307 = scalar_lea.vmem %s6, 2
    %v308 = vld [vmem:[%s307] sm:$0x1]
    %v310 = vperm.slane %v308, 0
    %v312 = vadd.f32 %v305, %v310
    %v313 = vadd.f32 %v306, %v310
    %v314 = vmax.f32 %v312, 0.0
    %v315 = vmax.f32 %v313, 0.0
    %v316 = vpack.c.bf16 %v315, %v314
    %s317 = scalar_lea.vmem [#allocation5], 96
    %v318 = vld [vmem:[%s317] sm:$0xf]
    %v319 = vld [vmem:[%s317 + $0x4] sm:$0xf]
    %v320 = vld [vmem:[%s317 + $0x8] sm:$0xf]
    %v321 = vld [vmem:[%s317 + $0xc] sm:$0xf]
    %v322 = vld [vmem:[%s317 + $0x10] sm:$0xf]
    %v323 = vld [vmem:[%s317 + $0x14] sm:$0xf]
    %v324 = vld [vmem:[%s317 + $0x18] sm:$0xf]
    %v325 = vld [vmem:[%s317 + $0x1c] sm:$0xf]
    %s326 = scalar_lea.vmem %s4, 3
    %v327 = vld [vmem:[%s326] sm:$0x1]
    %v329 = vperm.slane %v327, 0
    %v339 = vunpack.c.l.b16 %v318
    %v340 = vunpack.c.l.b16 %v319
    %v341 = vunpack.c.l.b16 %v320
    %v342 = vunpack.c.l.b16 %v321
    %v343 = vunpack.c.l.b16 %v322
    %v344 = vunpack.c.l.b16 %v323
    %v345 = vunpack.c.l.b16 %v324
    %v346 = vunpack.c.l.b16 %v325
    %v347 = vpack.c.b16 %v340, %v339
    %v348 = vpack.c.b16 %v342, %v341
    %v349 = vpack.c.b16 %v344, %v343
    %v350 = vpack.c.b16 %v346, %v345
    %v356 = vsel %vm140, %v316, 0
    %358 = vmatpush.bf16.msra.mxu0 0
    %359 = vmatpush.bf16.msra.mxu0 0
    %360 = vmatpush.bf16.msra.mxu0 0
    %361 = vmatpush.bf16.msra.mxu0 0
    %362 = vmatpush.bf16.msra.mxu0 %v350
    %363 = vmatpush.bf16.msra.mxu0 %v349
    %364 = vmatpush.bf16.msra.mxu0 %v348
    %365 = vmatpush.bf16.msra.mxu0 %v347
    %366 = vmatmul.bf16.gmra.mxu0 %v356
    %v367 = vpop.f32.mrf.mxu0
    %v368 = vadd.f32 %v329, %v367
    %v369 = vpop.f32.mrf.mxu0
    %v370 = vadd.f32 %v329, %v369
    %371 = vdwg.mxu0
    %s372 = scalar_lea.vmem %s5, 3
    %v373 = vld [vmem:[%s372] sm:$0x1]
    %v375 = vperm.slane %v373, 0
    %v377 = vmul.f32 %v368, %v375
    %v378 = vmul.f32 %v370, %v375
    %s379 = scalar_lea.vmem %s6, 3
    %v380 = vld [vmem:[%s379] sm:$0x1]
    %v382 = vperm.slane %v380, 0
    %v384 = vadd.f32 %v377, %v382
    %v385 = vadd.f32 %v378, %v382
    %v386 = vmax.f32 %v384, 0.0
    %v387 = vmax.f32 %v385, 0.0
    %v388 = vpack.c.bf16 %v387, %v386
    %s389 = scalar_lea.vmem [#allocation5], 128
    %v390 = vld [vmem:[%s389] sm:$0xf]
    %v391 = vld [vmem:[%s389 + $0x4] sm:$0xf]
    %v392 = vld [vmem:[%s389 + $0x8] sm:$0xf]
    %v393 = vld [vmem:[%s389 + $0xc] sm:$0xf]
    %v394 = vld [vmem:[%s389 + $0x10] sm:$0xf]
    %v395 = vld [vmem:[%s389 + $0x14] sm:$0xf]
    %v396 = vld [vmem:[%s389 + $0x18] sm:$0xf]
    %v397 = vld [vmem:[%s389 + $0x1c] sm:$0xf]
    %s398 = scalar_lea.vmem %s4, 4
    %v399 = vld [vmem:[%s398] sm:$0x1]
    %v401 = vperm.slane %v399, 0
    %v411 = vunpack.c.l.b16 %v390
    %v412 = vunpack.c.l.b16 %v391
    %v413 = vunpack.c.l.b16 %v392
    %v414 = vunpack.c.l.b16 %v393
    %v415 = vunpack.c.l.b16 %v394
    %v416 = vunpack.c.l.b16 %v395
    %v417 = vunpack.c.l.b16 %v396
    %v418 = vunpack.c.l.b16 %v397
    %v419 = vpack.c.b16 %v412, %v411
    %v420 = vpack.c.b16 %v414, %v413
    %v421 = vpack.c.b16 %v416, %v415
    %v422 = vpack.c.b16 %v418, %v417
    %v428 = vsel %vm140, %v388, 0
    %430 = vmatpush.bf16.msra.mxu0 0
    %431 = vmatpush.bf16.msra.mxu0 0
    %432 = vmatpush.bf16.msra.mxu0 0
    %433 = vmatpush.bf16.msra.mxu0 0
    %434 = vmatpush.bf16.msra.mxu0 %v422
    %435 = vmatpush.bf16.msra.mxu0 %v421
    %436 = vmatpush.bf16.msra.mxu0 %v420
    %437 = vmatpush.bf16.msra.mxu0 %v419
    %438 = vmatmul.bf16.gmra.mxu0 %v428
    %v439 = vpop.f32.mrf.mxu0
    %v440 = vadd.f32 %v401, %v439
    %v441 = vpop.f32.mrf.mxu0
    %v442 = vadd.f32 %v401, %v441
    %443 = vdwg.mxu0
    %s444 = scalar_lea.vmem %s5, 4
    %v445 = vld [vmem:[%s444] sm:$0x1]
    %v447 = vperm.slane %v445, 0
    %v449 = vmul.f32 %v440, %v447
    %v450 = vmul.f32 %v442, %v447
    %s451 = scalar_lea.vmem %s6, 4
    %v452 = vld [vmem:[%s451] sm:$0x1]
    %v454 = vperm.slane %v452, 0
    %v456 = vadd.f32 %v449, %v454
    %v457 = vadd.f32 %v450, %v454
    %v458 = vmax.f32 %v456, 0.0
    %v459 = vmax.f32 %v457, 0.0
    %s460 = scalar_lea.vmem %s5, 5
    %v461 = vld [vmem:[%s460] sm:$0x1]
    %v463 = vperm.slane %v461, 0
    %v465 = vmul.f32 %v458, %v463
    %v466 = vmul.f32 %v459, %v463
    %s467 = scalar_lea.vmem %s6, 5
    %v468 = vld [vmem:[%s467] sm:$0x1]
    %v470 = vperm.slane %v468, 0
    %v472 = vadd.f32 %v465, %v470
    %v473 = vadd.f32 %v466, %v470
    %v474 = vmax.f32 %v472, 0.0
    %v475 = vmax.f32 %v473, 0.0
    %v476 = vpack.c.bf16 %v475, %v474
    %s477 = scalar_lea.vmem %s7, 32
    %v478 = vld [vmem:[%s477] sm:$0xf]
    %v479 = vld [vmem:[%s477 + $0x4] sm:$0xf]
    %v480 = vld [vmem:[%s477 + $0x8] sm:$0xf]
    %v481 = vld [vmem:[%s477 + $0xc] sm:$0xf]
    %v482 = vld [vmem:[%s477 + $0x10] sm:$0xf]
    %v483 = vld [vmem:[%s477 + $0x14] sm:$0xf]
    %v484 = vld [vmem:[%s477 + $0x18] sm:$0xf]
    %v485 = vld [vmem:[%s477 + $0x1c] sm:$0xf]
    %v494 = vunpack.c.l.b16 %v478
    %v495 = vunpack.c.l.b16 %v479
    %v496 = vunpack.c.l.b16 %v480
    %v497 = vunpack.c.l.b16 %v481
    %v498 = vunpack.c.l.b16 %v482
    %v499 = vunpack.c.l.b16 %v483
    %v500 = vunpack.c.l.b16 %v484
    %v501 = vunpack.c.l.b16 %v485
    %v502 = vpack.c.b16 %v495, %v494
    %v503 = vpack.c.b16 %v497, %v496
    %v504 = vpack.c.b16 %v499, %v498
    %v505 = vpack.c.b16 %v501, %v500
    %v511 = vsel %vm140, %v476, 0
    %513 = vmatpush.bf16.msra.mxu0 0
    %514 = vmatpush.bf16.msra.mxu0 0
    %515 = vmatpush.bf16.msra.mxu0 0
    %516 = vmatpush.bf16.msra.mxu0 0
    %517 = vmatpush.bf16.msra.mxu0 %v505
    %518 = vmatpush.bf16.msra.mxu0 %v504
    %519 = vmatpush.bf16.msra.mxu0 %v503
    %520 = vmatpush.bf16.msra.mxu0 %v502
    %521 = vmatmul.bf16.gmra.mxu0 %v511
    %v522 = vpop.f32.mrf.mxu0
    %v523 = vadd.f32 0.0, %v522
    %v524 = vpop.f32.mrf.mxu0
    %v525 = vadd.f32 0.0, %v524
    %526 = vdwg.mxu0
    %v535 = vunpack.c.l.b16 %v67
    %v536 = vunpack.c.l.b16 %v68
    %v537 = vunpack.c.l.b16 %v69
    %v538 = vunpack.c.l.b16 %v70
    %v539 = vunpack.c.l.b16 %v71
    %v540 = vunpack.c.l.b16 %v72
    %v541 = vunpack.c.l.b16 %v73
    %v542 = vunpack.c.l.b16 %v74
    %v543 = vpack.c.b16 %v536, %v535
    %v544 = vpack.c.b16 %v538, %v537
    %v545 = vpack.c.b16 %v540, %v539
    %v546 = vpack.c.b16 %v542, %v541
    %v552 = vsel %vm140, %v66, 0
    %554 = vmatpush.bf16.msra.mxu0 0
    %555 = vmatpush.bf16.msra.mxu0 0
    %556 = vmatpush.bf16.msra.mxu0 0
    %557 = vmatpush.bf16.msra.mxu0 0
    %558 = vmatpush.bf16.msra.mxu0 %v546
    %559 = vmatpush.bf16.msra.mxu0 %v545
    %560 = vmatpush.bf16.msra.mxu0 %v544
    %561 = vmatpush.bf16.msra.mxu0 %v543
    %562 = vmatmul.bf16.gmra.mxu0 %v552
    %v563 = vpop.f32.mrf.mxu0
    %v564 = vadd.f32 %v523, %v563
    %v565 = vpop.f32.mrf.mxu0
    %v566 = vadd.f32 %v525, %v565
    %567 = vdwg.mxu0
    %s568 = sld [smem:[#allocation2 + $0x1]]
    %s569 = sadd.f32 %s568, 1.0
    %v570 = vstv %s569
    %v571 = vmul.f32 %v570, %v474
    %v572 = vmul.f32 %v570, %v475
    %573 = vmatpush.bf16.msra.mxu0 0
    %574 = vmatpush.bf16.msra.mxu0 0
    %575 = vmatpush.bf16.msra.mxu0 0
    %576 = vmatpush.bf16.msra.mxu0 0
    %577 = vmatpush.bf16.msra.mxu0 0
    %578 = vmatpush.bf16.msra.mxu0 0
    %579 = vmatpush.bf16.msra.mxu0 0
    %580 = vmatpush.bf16.msra.mxu0 %v476
    %581 = vmatmul.bf16.gmra.mxu0 %v87
    %v582 = vpop.f32.mrf.mxu0
    %v583 = vadd.f32 %v571, %v582
    %v584 = vpop.f32.mrf.mxu0
    %v585 = vadd.f32 %v572, %v584
    %586 = vdwg.mxu0
    %v587 = vpack.c.bf16 %v585, %v583
    %s588 = scalar_lea.vmem [#allocation5], 160
    %v589 = vld [vmem:[%s588] sm:$0xf]
    %v590 = vld [vmem:[%s588 + $0x4] sm:$0xf]
    %v591 = vld [vmem:[%s588 + $0x8] sm:$0xf]
    %v592 = vld [vmem:[%s588 + $0xc] sm:$0xf]
    %v593 = vld [vmem:[%s588 + $0x10] sm:$0xf]
    %v594 = vld [vmem:[%s588 + $0x14] sm:$0xf]
    %v595 = vld [vmem:[%s588 + $0x18] sm:$0xf]
    %v596 = vld [vmem:[%s588 + $0x1c] sm:$0xf]
    %s597 = scalar_lea.vmem %s4, 5
    %v598 = vld [vmem:[%s597] sm:$0x1]
    %v600 = vperm.slane %v598, 0
    %v610 = vunpack.c.l.b16 %v589
    %v611 = vunpack.c.l.b16 %v590
    %v612 = vunpack.c.l.b16 %v591
    %v613 = vunpack.c.l.b16 %v592
    %v614 = vunpack.c.l.b16 %v593
    %v615 = vunpack.c.l.b16 %v594
    %v616 = vunpack.c.l.b16 %v595
    %v617 = vunpack.c.l.b16 %v596
    %v618 = vpack.c.b16 %v611, %v610
    %v619 = vpack.c.b16 %v613, %v612
    %v620 = vpack.c.b16 %v615, %v614
    %v621 = vpack.c.b16 %v617, %v616
    %v627 = vsel %vm140, %v587, 0
    %629 = vmatpush.bf16.msra.mxu0 0
    %630 = vmatpush.bf16.msra.mxu0 0
    %631 = vmatpush.bf16.msra.mxu0 0
    %632 = vmatpush.bf16.msra.mxu0 0
    %633 = vmatpush.bf16.msra.mxu0 %v621
    %634 = vmatpush.bf16.msra.mxu0 %v620
    %635 = vmatpush.bf16.msra.mxu0 %v619
    %636 = vmatpush.bf16.msra.mxu0 %v618
    %637 = vmatmul.bf16.gmra.mxu0 %v627
    %v638 = vpop.f32.mrf.mxu0
    %v639 = vadd.f32 %v600, %v638
    %v640 = vpop.f32.mrf.mxu0
    %v641 = vadd.f32 %v600, %v640
    %642 = vdwg.mxu0
    %s643 = scalar_lea.vmem %s5, 6
    %v644 = vld [vmem:[%s643] sm:$0x1]
    %v646 = vperm.slane %v644, 0
    %v648 = vmul.f32 %v639, %v646
    %v649 = vmul.f32 %v641, %v646
    %s650 = scalar_lea.vmem %s6, 6
    %v651 = vld [vmem:[%s650] sm:$0x1]
    %v653 = vperm.slane %v651, 0
    %v655 = vadd.f32 %v648, %v653
    %v656 = vadd.f32 %v649, %v653
    %v657 = vmax.f32 %v655, 0.0
    %v658 = vmax.f32 %v656, 0.0
    %v659 = vpack.c.bf16 %v658, %v657
    %s660 = scalar_lea.vmem [#allocation5], 192
    %v661 = vld [vmem:[%s660] sm:$0xf]
    %v662 = vld [vmem:[%s660 + $0x4] sm:$0xf]
    %v663 = vld [vmem:[%s660 + $0x8] sm:$0xf]
    %v664 = vld [vmem:[%s660 + $0xc] sm:$0xf]
    %v665 = vld [vmem:[%s660 + $0x10] sm:$0xf]
    %v666 = vld [vmem:[%s660 + $0x14] sm:$0xf]
    %v667 = vld [vmem:[%s660 + $0x18] sm:$0xf]
    %v668 = vld [vmem:[%s660 + $0x1c] sm:$0xf]
    %s669 = scalar_lea.vmem %s4, 6
    %v670 = vld [vmem:[%s669] sm:$0x1]
    %v672 = vperm.slane %v670, 0
    %v682 = vunpack.c.l.b16 %v661
    %v683 = vunpack.c.l.b16 %v662
    %v684 = vunpack.c.l.b16 %v663
    %v685 = vunpack.c.l.b16 %v664
    %v686 = vunpack.c.l.b16 %v665
    %v687 = vunpack.c.l.b16 %v666
    %v688 = vunpack.c.l.b16 %v667
    %v689 = vunpack.c.l.b16 %v668
    %v690 = vpack.c.b16 %v683, %v682
    %v691 = vpack.c.b16 %v685, %v684
    %v692 = vpack.c.b16 %v687, %v686
    %v693 = vpack.c.b16 %v689, %v688
    %v699 = vsel %vm140, %v659, 0
    %701 = vmatpush.bf16.msra.mxu0 0
    %702 = vmatpush.bf16.msra.mxu0 0
    %703 = vmatpush.bf16.msra.mxu0 0
    %704 = vmatpush.bf16.msra.mxu0 0
    %705 = vmatpush.bf16.msra.mxu0 %v693
    %706 = vmatpush.bf16.msra.mxu0 %v692
    %707 = vmatpush.bf16.msra.mxu0 %v691
    %708 = vmatpush.bf16.msra.mxu0 %v690
    %709 = vmatmul.bf16.gmra.mxu0 %v699
    %v710 = vpop.f32.mrf.mxu0
    %v711 = vadd.f32 %v672, %v710
    %v712 = vpop.f32.mrf.mxu0
    %v713 = vadd.f32 %v672, %v712
    %714 = vdwg.mxu0
    %s715 = scalar_lea.vmem %s5, 7
    %v716 = vld [vmem:[%s715] sm:$0x1]
    %v718 = vperm.slane %v716, 0
    %v720 = vmul.f32 %v711, %v718
    %v721 = vmul.f32 %v713, %v718
    %s722 = scalar_lea.vmem %s6, 7
    %v723 = vld [vmem:[%s722] sm:$0x1]
    %v725 = vperm.slane %v723, 0
    %v727 = vadd.f32 %v720, %v725
    %v728 = vadd.f32 %v721, %v725
    %v729 = vmax.f32 %v727, 0.0
    %v730 = vmax.f32 %v728, 0.0
    %v731 = vpack.c.bf16 %v730, %v729
    %s732 = scalar_lea.vmem [#allocation5], 224
    %v733 = vld [vmem:[%s732] sm:$0xf]
    %v734 = vld [vmem:[%s732 + $0x4] sm:$0xf]
    %v735 = vld [vmem:[%s732 + $0x8] sm:$0xf]
    %v736 = vld [vmem:[%s732 + $0xc] sm:$0xf]
    %v737 = vld [vmem:[%s732 + $0x10] sm:$0xf]
    %v738 = vld [vmem:[%s732 + $0x14] sm:$0xf]
    %v739 = vld [vmem:[%s732 + $0x18] sm:$0xf]
    %v740 = vld [vmem:[%s732 + $0x1c] sm:$0xf]
    %s741 = scalar_lea.vmem %s4, 7
    %v742 = vld [vmem:[%s741] sm:$0x1]
    %v744 = vperm.slane %v742, 0
    %v754 = vunpack.c.l.b16 %v733
    %v755 = vunpack.c.l.b16 %v734
    %v756 = vunpack.c.l.b16 %v735
    %v757 = vunpack.c.l.b16 %v736
    %v758 = vunpack.c.l.b16 %v737
    %v759 = vunpack.c.l.b16 %v738
    %v760 = vunpack.c.l.b16 %v739
    %v761 = vunpack.c.l.b16 %v740
    %v762 = vpack.c.b16 %v755, %v754
    %v763 = vpack.c.b16 %v757, %v756
    %v764 = vpack.c.b16 %v759, %v758
    %v765 = vpack.c.b16 %v761, %v760
    %v771 = vsel %vm140, %v731, 0
    %773 = vmatpush.bf16.msra.mxu0 0
    %774 = vmatpush.bf16.msra.mxu0 0
    %775 = vmatpush.bf16.msra.mxu0 0
    %776 = vmatpush.bf16.msra.mxu0 0
    %777 = vmatpush.bf16.msra.mxu0 %v765
    %778 = vmatpush.bf16.msra.mxu0 %v764
    %779 = vmatpush.bf16.msra.mxu0 %v763
    %780 = vmatpush.bf16.msra.mxu0 %v762
    %781 = vmatmul.bf16.gmra.mxu0 %v771
    %v782 = vpop.f32.mrf.mxu0
    %v783 = vadd.f32 %v744, %v782
    %v784 = vpop.f32.mrf.mxu0
    %v785 = vadd.f32 %v744, %v784
    %786 = vdwg.mxu0
    %s787 = scalar_lea.vmem %s5, 8
    %v788 = vld [vmem:[%s787] sm:$0x1]
    %v790 = vperm.slane %v788, 0
    %v792 = vmul.f32 %v783, %v790
    %v793 = vmul.f32 %v785, %v790
    %s794 = scalar_lea.vmem %s6, 8
    %v795 = vld [vmem:[%s794] sm:$0x1]
    %v797 = vperm.slane %v795, 0
    %v799 = vadd.f32 %v792, %v797
    %v800 = vadd.f32 %v793, %v797
    %v801 = vmax.f32 %v799, 0.0
    %v802 = vmax.f32 %v800, 0.0
    %v803 = vpack.c.bf16 %v802, %v801
    %s804 = scalar_lea.vmem [#allocation5], 256
    %v805 = vld [vmem:[%s804] sm:$0xf]
    %v806 = vld [vmem:[%s804 + $0x4] sm:$0xf]
    %v807 = vld [vmem:[%s804 + $0x8] sm:$0xf]
    %v808 = vld [vmem:[%s804 + $0xc] sm:$0xf]
    %v809 = vld [vmem:[%s804 + $0x10] sm:$0xf]
    %v810 = vld [vmem:[%s804 + $0x14] sm:$0xf]
    %v811 = vld [vmem:[%s804 + $0x18] sm:$0xf]
    %v812 = vld [vmem:[%s804 + $0x1c] sm:$0xf]
    %s813 = scalar_lea.vmem %s4, 8
    %v814 = vld [vmem:[%s813] sm:$0x1]
    %v816 = vperm.slane %v814, 0
    %v826 = vunpack.c.l.b16 %v805
    %v827 = vunpack.c.l.b16 %v806
    %v828 = vunpack.c.l.b16 %v807
    %v829 = vunpack.c.l.b16 %v808
    %v830 = vunpack.c.l.b16 %v809
    %v831 = vunpack.c.l.b16 %v810
    %v832 = vunpack.c.l.b16 %v811
    %v833 = vunpack.c.l.b16 %v812
    %v834 = vpack.c.b16 %v827, %v826
    %v835 = vpack.c.b16 %v829, %v828
    %v836 = vpack.c.b16 %v831, %v830
    %v837 = vpack.c.b16 %v833, %v832
    %v843 = vsel %vm140, %v803, 0
    %845 = vmatpush.bf16.msra.mxu0 0
    %846 = vmatpush.bf16.msra.mxu0 0
    %847 = vmatpush.bf16.msra.mxu0 0
    %848 = vmatpush.bf16.msra.mxu0 0
    %849 = vmatpush.bf16.msra.mxu0 %v837
    %850 = vmatpush.bf16.msra.mxu0 %v836
    %851 = vmatpush.bf16.msra.mxu0 %v835
    %852 = vmatpush.bf16.msra.mxu0 %v834
    %853 = vmatmul.bf16.gmra.mxu0 %v843
    %v854 = vpop.f32.mrf.mxu0
    %v855 = vadd.f32 %v816, %v854
    %v856 = vpop.f32.mrf.mxu0
    %v857 = vadd.f32 %v816, %v856
    %858 = vdwg.mxu0
    %s859 = scalar_lea.vmem %s5, 9
    %v860 = vld [vmem:[%s859] sm:$0x1]
    %v862 = vperm.slane %v860, 0
    %v864 = vmul.f32 %v855, %v862
    %v865 = vmul.f32 %v857, %v862
    %s866 = scalar_lea.vmem %s6, 9
    %v867 = vld [vmem:[%s866] sm:$0x1]
    %v869 = vperm.slane %v867, 0
    %v871 = vadd.f32 %v864, %v869
    %v872 = vadd.f32 %v865, %v869
    %v873 = vmax.f32 %v871, 0.0
    %v874 = vmax.f32 %v872, 0.0
    %v875 = vpack.c.bf16 %v874, %v873
    %s876 = scalar_lea.vmem [#allocation5], 288
    %v877 = vld [vmem:[%s876] sm:$0xf]
    %v878 = vld [vmem:[%s876 + $0x4] sm:$0xf]
    %v879 = vld [vmem:[%s876 + $0x8] sm:$0xf]
    %v880 = vld [vmem:[%s876 + $0xc] sm:$0xf]
    %v881 = vld [vmem:[%s876 + $0x10] sm:$0xf]
    %v882 = vld [vmem:[%s876 + $0x14] sm:$0xf]
    %v883 = vld [vmem:[%s876 + $0x18] sm:$0xf]
    %v884 = vld [vmem:[%s876 + $0x1c] sm:$0xf]
    %s885 = scalar_lea.vmem %s4, 9
    %v886 = vld [vmem:[%s885] sm:$0x1]
    %v888 = vperm.slane %v886, 0
    %v898 = vunpack.c.l.b16 %v877
    %v899 = vunpack.c.l.b16 %v878
    %v900 = vunpack.c.l.b16 %v879
    %v901 = vunpack.c.l.b16 %v880
    %v902 = vunpack.c.l.b16 %v881
    %v903 = vunpack.c.l.b16 %v882
    %v904 = vunpack.c.l.b16 %v883
    %v905 = vunpack.c.l.b16 %v884
    %v906 = vpack.c.b16 %v899, %v898
    %v907 = vpack.c.b16 %v901, %v900
    %v908 = vpack.c.b16 %v903, %v902
    %v909 = vpack.c.b16 %v905, %v904
    %v915 = vsel %vm140, %v875, 0
    %917 = vmatpush.bf16.msra.mxu0 0
    %918 = vmatpush.bf16.msra.mxu0 0
    %919 = vmatpush.bf16.msra.mxu0 0
    %920 = vmatpush.bf16.msra.mxu0 0
    %921 = vmatpush.bf16.msra.mxu0 %v909
    %922 = vmatpush.bf16.msra.mxu0 %v908
    %923 = vmatpush.bf16.msra.mxu0 %v907
    %924 = vmatpush.bf16.msra.mxu0 %v906
    %925 = vmatmul.bf16.gmra.mxu0 %v915
    %v926 = vpop.f32.mrf.mxu0
    %v927 = vadd.f32 %v888, %v926
    %v928 = vpop.f32.mrf.mxu0
    %v929 = vadd.f32 %v888, %v928
    %930 = vdwg.mxu0
    %s931 = scalar_lea.vmem %s5, 10
    %v932 = vld [vmem:[%s931] sm:$0x1]
    %v934 = vperm.slane %v932, 0
    %v936 = vmul.f32 %v927, %v934
    %v937 = vmul.f32 %v929, %v934
    %s938 = scalar_lea.vmem %s6, 10
    %v939 = vld [vmem:[%s938] sm:$0x1]
    %v941 = vperm.slane %v939, 0
    %v943 = vadd.f32 %v936, %v941
    %v944 = vadd.f32 %v937, %v941
    %v945 = vmax.f32 %v943, 0.0
    %v946 = vmax.f32 %v944, 0.0
    %s947 = scalar_lea.vmem %s5, 11
    %v948 = vld [vmem:[%s947] sm:$0x1]
    %v950 = vperm.slane %v948, 0
    %v952 = vmul.f32 %v945, %v950
    %v953 = vmul.f32 %v946, %v950
    %s954 = scalar_lea.vmem %s6, 11
    %v955 = vld [vmem:[%s954] sm:$0x1]
    %v957 = vperm.slane %v955, 0
    %v959 = vadd.f32 %v952, %v957
    %v960 = vadd.f32 %v953, %v957
    %v961 = vmax.f32 %v959, 0.0
    %v962 = vmax.f32 %v960, 0.0
    %v963 = vpack.c.bf16 %v962, %v961
    %s964 = scalar_lea.vmem %s7, 64
    %v965 = vld [vmem:[%s964] sm:$0xf]
    %v966 = vld [vmem:[%s964 + $0x4] sm:$0xf]
    %v967 = vld [vmem:[%s964 + $0x8] sm:$0xf]
    %v968 = vld [vmem:[%s964 + $0xc] sm:$0xf]
    %v969 = vld [vmem:[%s964 + $0x10] sm:$0xf]
    %v970 = vld [vmem:[%s964 + $0x14] sm:$0xf]
    %v971 = vld [vmem:[%s964 + $0x18] sm:$0xf]
    %v972 = vld [vmem:[%s964 + $0x1c] sm:$0xf]
    %v981 = vunpack.c.l.b16 %v965
    %v982 = vunpack.c.l.b16 %v966
    %v983 = vunpack.c.l.b16 %v967
    %v984 = vunpack.c.l.b16 %v968
    %v985 = vunpack.c.l.b16 %v969
    %v986 = vunpack.c.l.b16 %v970
    %v987 = vunpack.c.l.b16 %v971
    %v988 = vunpack.c.l.b16 %v972
    %v989 = vpack.c.b16 %v982, %v981
    %v990 = vpack.c.b16 %v984, %v983
    %v991 = vpack.c.b16 %v986, %v985
    %v992 = vpack.c.b16 %v988, %v987
    %v998 = vsel %vm140, %v963, 0
    %1000 = vmatpush.bf16.msra.mxu0 0
    %1001 = vmatpush.bf16.msra.mxu0 0
    %1002 = vmatpush.bf16.msra.mxu0 0
    %1003 = vmatpush.bf16.msra.mxu0 0
    %1004 = vmatpush.bf16.msra.mxu0 %v992
    %1005 = vmatpush.bf16.msra.mxu0 %v991
    %1006 = vmatpush.bf16.msra.mxu0 %v990
    %1007 = vmatpush.bf16.msra.mxu0 %v989
    %1008 = vmatmul.bf16.gmra.mxu0 %v998
    %v1009 = vpop.f32.mrf.mxu0
    %v1010 = vadd.f32 0.0, %v1009
    %v1011 = vpop.f32.mrf.mxu0
    %v1012 = vadd.f32 0.0, %v1011
    %1013 = vdwg.mxu0
    %v1014 = vadd.f32 %v564, %v1010
    %v1015 = vadd.f32 %v566, %v1012
    %s1016 = sld [smem:[#allocation2 + $0x2]]
    %s1017 = sadd.f32 %s1016, 1.0
    %v1018 = vstv %s1017
    %v1019 = vmul.f32 %v1018, %v961
    %v1020 = vmul.f32 %v1018, %v962
    %1021 = vmatpush.bf16.msra.mxu0 0
    %1022 = vmatpush.bf16.msra.mxu0 0
    %1023 = vmatpush.bf16.msra.mxu0 0
    %1024 = vmatpush.bf16.msra.mxu0 0
    %1025 = vmatpush.bf16.msra.mxu0 0
    %1026 = vmatpush.bf16.msra.mxu0 0
    %1027 = vmatpush.bf16.msra.mxu0 0
    %1028 = vmatpush.bf16.msra.mxu0 %v963
    %1029 = vmatmul.bf16.gmra.mxu0 %v87
    %v1030 = vpop.f32.mrf.mxu0
    %v1031 = vadd.f32 %v1019, %v1030
    %v1032 = vpop.f32.mrf.mxu0
    %v1033 = vadd.f32 %v1020, %v1032
    %1034 = vdwg.mxu0
    %v1035 = vpack.c.bf16 %v1033, %v1031
    %s1036 = scalar_lea.vmem [#allocation5], 320
    %v1037 = vld [vmem:[%s1036] sm:$0xf]
    %v1038 = vld [vmem:[%s1036 + $0x4] sm:$0xf]
    %v1039 = vld [vmem:[%s1036 + $0x8] sm:$0xf]
    %v1040 = vld [vmem:[%s1036 + $0xc] sm:$0xf]
    %v1041 = vld [vmem:[%s1036 + $0x10] sm:$0xf]
    %v1042 = vld [vmem:[%s1036 + $0x14] sm:$0xf]
    %v1043 = vld [vmem:[%s1036 + $0x18] sm:$0xf]
    %v1044 = vld [vmem:[%s1036 + $0x1c] sm:$0xf]
    %s1045 = scalar_lea.vmem %s4, 10
    %v1046 = vld [vmem:[%s1045] sm:$0x1]
    %v1048 = vperm.slane %v1046, 0
    %v1058 = vunpack.c.l.b16 %v1037
    %v1059 = vunpack.c.l.b16 %v1038
    %v1060 = vunpack.c.l.b16 %v1039
    %v1061 = vunpack.c.l.b16 %v1040
    %v1062 = vunpack.c.l.b16 %v1041
    %v1063 = vunpack.c.l.b16 %v1042
    %v1064 = vunpack.c.l.b16 %v1043
    %v1065 = vunpack.c.l.b16 %v1044
    %v1066 = vpack.c.b16 %v1059, %v1058
    %v1067 = vpack.c.b16 %v1061, %v1060
    %v1068 = vpack.c.b16 %v1063, %v1062
    %v1069 = vpack.c.b16 %v1065, %v1064
    %v1075 = vsel %vm140, %v1035, 0
    %1077 = vmatpush.bf16.msra.mxu0 0
    %1078 = vmatpush.bf16.msra.mxu0 0
    %1079 = vmatpush.bf16.msra.mxu0 0
    %1080 = vmatpush.bf16.msra.mxu0 0
    %1081 = vmatpush.bf16.msra.mxu0 %v1069
    %1082 = vmatpush.bf16.msra.mxu0 %v1068
    %1083 = vmatpush.bf16.msra.mxu0 %v1067
    %1084 = vmatpush.bf16.msra.mxu0 %v1066
    %1085 = vmatmul.bf16.gmra.mxu0 %v1075
    %v1086 = vpop.f32.mrf.mxu0
    %v1087 = vadd.f32 %v1048, %v1086
    %v1088 = vpop.f32.mrf.mxu0
    %v1089 = vadd.f32 %v1048, %v1088
    %1090 = vdwg.mxu0
    %s1091 = scalar_lea.vmem %s5, 12
    %v1092 = vld [vmem:[%s1091] sm:$0x1]
    %v1094 = vperm.slane %v1092, 0
    %v1096 = vmul.f32 %v1087, %v1094
    %v1097 = vmul.f32 %v1089, %v1094
    %s1098 = scalar_lea.vmem %s6, 12
    %v1099 = vld [vmem:[%s1098] sm:$0x1]
    %v1101 = vperm.slane %v1099, 0
    %v1103 = vadd.f32 %v1096, %v1101
    %v1104 = vadd.f32 %v1097, %v1101
    %v1105 = vmax.f32 %v1103, 0.0
    %v1106 = vmax.f32 %v1104, 0.0
    %v1107 = vpack.c.bf16 %v1106, %v1105
    %s1108 = scalar_lea.vmem [#allocation5], 352
    %v1109 = vld [vmem:[%s1108] sm:$0xf]
    %v1110 = vld [vmem:[%s1108 + $0x4] sm:$0xf]
    %v1111 = vld [vmem:[%s1108 + $0x8] sm:$0xf]
    %v1112 = vld [vmem:[%s1108 + $0xc] sm:$0xf]
    %v1113 = vld [vmem:[%s1108 + $0x10] sm:$0xf]
    %v1114 = vld [vmem:[%s1108 + $0x14] sm:$0xf]
    %v1115 = vld [vmem:[%s1108 + $0x18] sm:$0xf]
    %v1116 = vld [vmem:[%s1108 + $0x1c] sm:$0xf]
    %s1117 = scalar_lea.vmem %s4, 11
    %v1118 = vld [vmem:[%s1117] sm:$0x1]
    %v1120 = vperm.slane %v1118, 0
    %v1130 = vunpack.c.l.b16 %v1109
    %v1131 = vunpack.c.l.b16 %v1110
    %v1132 = vunpack.c.l.b16 %v1111
    %v1133 = vunpack.c.l.b16 %v1112
    %v1134 = vunpack.c.l.b16 %v1113
    %v1135 = vunpack.c.l.b16 %v1114
    %v1136 = vunpack.c.l.b16 %v1115
    %v1137 = vunpack.c.l.b16 %v1116
    %v1138 = vpack.c.b16 %v1131, %v1130
    %v1139 = vpack.c.b16 %v1133, %v1132
    %v1140 = vpack.c.b16 %v1135, %v1134
    %v1141 = vpack.c.b16 %v1137, %v1136
    %v1147 = vsel %vm140, %v1107, 0
    %1149 = vmatpush.bf16.msra.mxu0 0
    %1150 = vmatpush.bf16.msra.mxu0 0
    %1151 = vmatpush.bf16.msra.mxu0 0
    %1152 = vmatpush.bf16.msra.mxu0 0
    %1153 = vmatpush.bf16.msra.mxu0 %v1141
    %1154 = vmatpush.bf16.msra.mxu0 %v1140
    %1155 = vmatpush.bf16.msra.mxu0 %v1139
    %1156 = vmatpush.bf16.msra.mxu0 %v1138
    %1157 = vmatmul.bf16.gmra.mxu0 %v1147
    %v1158 = vpop.f32.mrf.mxu0
    %v1159 = vadd.f32 %v1120, %v1158
    %v1160 = vpop.f32.mrf.mxu0
    %v1161 = vadd.f32 %v1120, %v1160
    %1162 = vdwg.mxu0
    %s1163 = scalar_lea.vmem %s5, 13
    %v1164 = vld [vmem:[%s1163] sm:$0x1]
    %v1166 = vperm.slane %v1164, 0
    %v1168 = vmul.f32 %v1159, %v1166
    %v1169 = vmul.f32 %v1161, %v1166
    %s1170 = scalar_lea.vmem %s6, 13
    %v1171 = vld [vmem:[%s1170] sm:$0x1]
    %v1173 = vperm.slane %v1171, 0
    %v1175 = vadd.f32 %v1168, %v1173
    %v1176 = vadd.f32 %v1169, %v1173
    %v1177 = vmax.f32 %v1175, 0.0
    %v1178 = vmax.f32 %v1176, 0.0
    %v1179 = vpack.c.bf16 %v1178, %v1177
    %s1180 = scalar_lea.vmem [#allocation5], 384
    %v1181 = vld [vmem:[%s1180] sm:$0xf]
    %v1182 = vld [vmem:[%s1180 + $0x4] sm:$0xf]
    %v1183 = vld [vmem:[%s1180 + $0x8] sm:$0xf]
    %v1184 = vld [vmem:[%s1180 + $0xc] sm:$0xf]
    %v1185 = vld [vmem:[%s1180 + $0x10] sm:$0xf]
    %v1186 = vld [vmem:[%s1180 + $0x14] sm:$0xf]
    %v1187 = vld [vmem:[%s1180 + $0x18] sm:$0xf]
    %v1188 = vld [vmem:[%s1180 + $0x1c] sm:$0xf]
    %s1189 = scalar_lea.vmem %s4, 12
    %v1190 = vld [vmem:[%s1189] sm:$0x1]
    %v1192 = vperm.slane %v1190, 0
    %v1202 = vunpack.c.l.b16 %v1181
    %v1203 = vunpack.c.l.b16 %v1182
    %v1204 = vunpack.c.l.b16 %v1183
    %v1205 = vunpack.c.l.b16 %v1184
    %v1206 = vunpack.c.l.b16 %v1185
    %v1207 = vunpack.c.l.b16 %v1186
    %v1208 = vunpack.c.l.b16 %v1187
    %v1209 = vunpack.c.l.b16 %v1188
    %v1210 = vpack.c.b16 %v1203, %v1202
    %v1211 = vpack.c.b16 %v1205, %v1204
    %v1212 = vpack.c.b16 %v1207, %v1206
    %v1213 = vpack.c.b16 %v1209, %v1208
    %v1219 = vsel %vm140, %v1179, 0
    %1221 = vmatpush.bf16.msra.mxu0 0
    %1222 = vmatpush.bf16.msra.mxu0 0
    %1223 = vmatpush.bf16.msra.mxu0 0
    %1224 = vmatpush.bf16.msra.mxu0 0
    %1225 = vmatpush.bf16.msra.mxu0 %v1213
    %1226 = vmatpush.bf16.msra.mxu0 %v1212
    %1227 = vmatpush.bf16.msra.mxu0 %v1211
    %1228 = vmatpush.bf16.msra.mxu0 %v1210
    %1229 = vmatmul.bf16.gmra.mxu0 %v1219
    %v1230 = vpop.f32.mrf.mxu0
    %v1231 = vadd.f32 %v1192, %v1230
    %v1232 = vpop.f32.mrf.mxu0
    %v1233 = vadd.f32 %v1192, %v1232
    %1234 = vdwg.mxu0
    %s1235 = scalar_lea.vmem %s5, 14
    %v1236 = vld [vmem:[%s1235] sm:$0x1]
    %v1238 = vperm.slane %v1236, 0
    %v1240 = vmul.f32 %v1231, %v1238
    %v1241 = vmul.f32 %v1233, %v1238
    %s1242 = scalar_lea.vmem %s6, 14
    %v1243 = vld [vmem:[%s1242] sm:$0x1]
    %v1245 = vperm.slane %v1243, 0
    %v1247 = vadd.f32 %v1240, %v1245
    %v1248 = vadd.f32 %v1241, %v1245
    %v1249 = vmax.f32 %v1247, 0.0
    %v1250 = vmax.f32 %v1248, 0.0
    %v1251 = vpack.c.bf16 %v1250, %v1249
    %s1252 = scalar_lea.vmem [#allocation5], 416
    %v1253 = vld [vmem:[%s1252] sm:$0xf]
    %v1254 = vld [vmem:[%s1252 + $0x4] sm:$0xf]
    %v1255 = vld [vmem:[%s1252 + $0x8] sm:$0xf]
    %v1256 = vld [vmem:[%s1252 + $0xc] sm:$0xf]
    %v1257 = vld [vmem:[%s1252 + $0x10] sm:$0xf]
    %v1258 = vld [vmem:[%s1252 + $0x14] sm:$0xf]
    %v1259 = vld [vmem:[%s1252 + $0x18] sm:$0xf]
    %v1260 = vld [vmem:[%s1252 + $0x1c] sm:$0xf]
    %s1261 = scalar_lea.vmem %s4, 13
    %v1262 = vld [vmem:[%s1261] sm:$0x1]
    %v1264 = vperm.slane %v1262, 0
    %v1274 = vunpack.c.l.b16 %v1253
    %v1275 = vunpack.c.l.b16 %v1254
    %v1276 = vunpack.c.l.b16 %v1255
    %v1277 = vunpack.c.l.b16 %v1256
    %v1278 = vunpack.c.l.b16 %v1257
    %v1279 = vunpack.c.l.b16 %v1258
    %v1280 = vunpack.c.l.b16 %v1259
    %v1281 = vunpack.c.l.b16 %v1260
    %v1282 = vpack.c.b16 %v1275, %v1274
    %v1283 = vpack.c.b16 %v1277, %v1276
    %v1284 = vpack.c.b16 %v1279, %v1278
    %v1285 = vpack.c.b16 %v1281, %v1280
    %v1291 = vsel %vm140, %v1251, 0
    %1293 = vmatpush.bf16.msra.mxu0 0
    %1294 = vmatpush.bf16.msra.mxu0 0
    %1295 = vmatpush.bf16.msra.mxu0 0
    %1296 = vmatpush.bf16.msra.mxu0 0
    %1297 = vmatpush.bf16.msra.mxu0 %v1285
    %1298 = vmatpush.bf16.msra.mxu0 %v1284
    %1299 = vmatpush.bf16.msra.mxu0 %v1283
    %1300 = vmatpush.bf16.msra.mxu0 %v1282
    %1301 = vmatmul.bf16.gmra.mxu0 %v1291
    %v1302 = vpop.f32.mrf.mxu0
    %v1303 = vadd.f32 %v1264, %v1302
    %v1304 = vpop.f32.mrf.mxu0
    %v1305 = vadd.f32 %v1264, %v1304
    %1306 = vdwg.mxu0
    %s1307 = scalar_lea.vmem %s5, 15
    %v1308 = vld [vmem:[%s1307] sm:$0x1]
    %v1310 = vperm.slane %v1308, 0
    %v1312 = vmul.f32 %v1303, %v1310
    %v1313 = vmul.f32 %v1305, %v1310
    %s1314 = scalar_lea.vmem %s6, 15
    %v1315 = vld [vmem:[%s1314] sm:$0x1]
    %v1317 = vperm.slane %v1315, 0
    %v1319 = vadd.f32 %v1312, %v1317
    %v1320 = vadd.f32 %v1313, %v1317
    %v1321 = vmax.f32 %v1319, 0.0
    %v1322 = vmax.f32 %v1320, 0.0
    %v1323 = vpack.c.bf16 %v1322, %v1321
    %s1324 = scalar_lea.vmem [#allocation5], 448
    %v1325 = vld [vmem:[%s1324] sm:$0xf]
    %v1326 = vld [vmem:[%s1324 + $0x4] sm:$0xf]
    %v1327 = vld [vmem:[%s1324 + $0x8] sm:$0xf]
    %v1328 = vld [vmem:[%s1324 + $0xc] sm:$0xf]
    %v1329 = vld [vmem:[%s1324 + $0x10] sm:$0xf]
    %v1330 = vld [vmem:[%s1324 + $0x14] sm:$0xf]
    %v1331 = vld [vmem:[%s1324 + $0x18] sm:$0xf]
    %v1332 = vld [vmem:[%s1324 + $0x1c] sm:$0xf]
    %s1333 = scalar_lea.vmem %s4, 14
    %v1334 = vld [vmem:[%s1333] sm:$0x1]
    %v1336 = vperm.slane %v1334, 0
    %v1346 = vunpack.c.l.b16 %v1325
    %v1347 = vunpack.c.l.b16 %v1326
    %v1348 = vunpack.c.l.b16 %v1327
    %v1349 = vunpack.c.l.b16 %v1328
    %v1350 = vunpack.c.l.b16 %v1329
    %v1351 = vunpack.c.l.b16 %v1330
    %v1352 = vunpack.c.l.b16 %v1331
    %v1353 = vunpack.c.l.b16 %v1332
    %v1354 = vpack.c.b16 %v1347, %v1346
    %v1355 = vpack.c.b16 %v1349, %v1348
    %v1356 = vpack.c.b16 %v1351, %v1350
    %v1357 = vpack.c.b16 %v1353, %v1352
    %v1363 = vsel %vm140, %v1323, 0
    %1365 = vmatpush.bf16.msra.mxu0 0
    %1366 = vmatpush.bf16.msra.mxu0 0
    %1367 = vmatpush.bf16.msra.mxu0 0
    %1368 = vmatpush.bf16.msra.mxu0 0
    %1369 = vmatpush.bf16.msra.mxu0 %v1357
    %1370 = vmatpush.bf16.msra.mxu0 %v1356
    %1371 = vmatpush.bf16.msra.mxu0 %v1355
    %1372 = vmatpush.bf16.msra.mxu0 %v1354
    %1373 = vmatmul.bf16.gmra.mxu0 %v1363
    %v1374 = vpop.f32.mrf.mxu0
    %v1375 = vadd.f32 %v1336, %v1374
    %v1376 = vpop.f32.mrf.mxu0
    %v1377 = vadd.f32 %v1336, %v1376
    %1378 = vdwg.mxu0
    %s1379 = scalar_lea.vmem %s5, 16
    %v1380 = vld [vmem:[%s1379] sm:$0x1]
    %v1382 = vperm.slane %v1380, 0
    %v1384 = vmul.f32 %v1375, %v1382
    %v1385 = vmul.f32 %v1377, %v1382
    %s1386 = scalar_lea.vmem %s6, 16
    %v1387 = vld [vmem:[%s1386] sm:$0x1]
    %v1389 = vperm.slane %v1387, 0
    %v1391 = vadd.f32 %v1384, %v1389
    %v1392 = vadd.f32 %v1385, %v1389
    %v1393 = vmax.f32 %v1391, 0.0
    %v1394 = vmax.f32 %v1392, 0.0
    %s1395 = scalar_lea.vmem %s5, 17
    %v1396 = vld [vmem:[%s1395] sm:$0x1]
    %v1398 = vperm.slane %v1396, 0
    %v1400 = vmul.f32 %v1393, %v1398
    %v1401 = vmul.f32 %v1394, %v1398
    %s1402 = scalar_lea.vmem %s6, 17
    %v1403 = vld [vmem:[%s1402] sm:$0x1]
    %v1405 = vperm.slane %v1403, 0
    %v1407 = vadd.f32 %v1400, %v1405
    %v1408 = vadd.f32 %v1401, %v1405
    %v1409 = vmax.f32 %v1407, 0.0
    %v1410 = vmax.f32 %v1408, 0.0
    %v1411 = vpack.c.bf16 %v1410, %v1409
    %s1412 = scalar_lea.vmem %s7, 96
    %v1413 = vld [vmem:[%s1412] sm:$0xf]
    %v1414 = vld [vmem:[%s1412 + $0x4] sm:$0xf]
    %v1415 = vld [vmem:[%s1412 + $0x8] sm:$0xf]
    %v1416 = vld [vmem:[%s1412 + $0xc] sm:$0xf]
    %v1417 = vld [vmem:[%s1412 + $0x10] sm:$0xf]
    %v1418 = vld [vmem:[%s1412 + $0x14] sm:$0xf]
    %v1419 = vld [vmem:[%s1412 + $0x18] sm:$0xf]
    %v1420 = vld [vmem:[%s1412 + $0x1c] sm:$0xf]
    %v1429 = vunpack.c.l.b16 %v1413
    %v1430 = vunpack.c.l.b16 %v1414
    %v1431 = vunpack.c.l.b16 %v1415
    %v1432 = vunpack.c.l.b16 %v1416
    %v1433 = vunpack.c.l.b16 %v1417
    %v1434 = vunpack.c.l.b16 %v1418
    %v1435 = vunpack.c.l.b16 %v1419
    %v1436 = vunpack.c.l.b16 %v1420
    %v1437 = vpack.c.b16 %v1430, %v1429
    %v1438 = vpack.c.b16 %v1432, %v1431
    %v1439 = vpack.c.b16 %v1434, %v1433
    %v1440 = vpack.c.b16 %v1436, %v1435
    %v1446 = vsel %vm140, %v1411, 0
    %1448 = vmatpush.bf16.msra.mxu0 0
    %1449 = vmatpush.bf16.msra.mxu0 0
    %1450 = vmatpush.bf16.msra.mxu0 0
    %1451 = vmatpush.bf16.msra.mxu0 0
    %1452 = vmatpush.bf16.msra.mxu0 %v1440
    %1453 = vmatpush.bf16.msra.mxu0 %v1439
    %1454 = vmatpush.bf16.msra.mxu0 %v1438
    %1455 = vmatpush.bf16.msra.mxu0 %v1437
    %1456 = vmatmul.bf16.gmra.mxu0 %v1446
    %v1457 = vpop.f32.mrf.mxu0
    %v1458 = vadd.f32 0.0, %v1457
    %v1459 = vpop.f32.mrf.mxu0
    %v1460 = vadd.f32 0.0, %v1459
    %1461 = vdwg.mxu0
    %v1462 = vadd.f32 %v1014, %v1458
    %v1463 = vadd.f32 %v1015, %v1460
    %s1464 = sld [smem:[#allocation2 + $0x3]]
    %s1465 = sadd.f32 %s1464, 1.0
    %v1466 = vstv %s1465
    %v1467 = vmul.f32 %v1466, %v1409
    %v1468 = vmul.f32 %v1466, %v1410
    %1469 = vmatpush.bf16.msra.mxu0 0
    %1470 = vmatpush.bf16.msra.mxu0 0
    %1471 = vmatpush.bf16.msra.mxu0 0
    %1472 = vmatpush.bf16.msra.mxu0 0
    %1473 = vmatpush.bf16.msra.mxu0 0
    %1474 = vmatpush.bf16.msra.mxu0 0
    %1475 = vmatpush.bf16.msra.mxu0 0
    %1476 = vmatpush.bf16.msra.mxu0 %v1411
    %1477 = vmatmul.bf16.gmra.mxu0 %v87
    %v1478 = vpop.f32.mrf.mxu0
    %v1479 = vadd.f32 %v1467, %v1478
    %v1480 = vpop.f32.mrf.mxu0
    %v1481 = vadd.f32 %v1468, %v1480
    %1482 = vdwg.mxu0
    %v1483 = vpack.c.bf16 %v1481, %v1479
    %s1484 = scalar_lea.vmem [#allocation5], 480
    %v1485 = vld [vmem:[%s1484] sm:$0xf]
    %v1486 = vld [vmem:[%s1484 + $0x4] sm:$0xf]
    %v1487 = vld [vmem:[%s1484 + $0x8] sm:$0xf]
    %v1488 = vld [vmem:[%s1484 + $0xc] sm:$0xf]
    %v1489 = vld [vmem:[%s1484 + $0x10] sm:$0xf]
    %v1490 = vld [vmem:[%s1484 + $0x14] sm:$0xf]
    %v1491 = vld [vmem:[%s1484 + $0x18] sm:$0xf]
    %v1492 = vld [vmem:[%s1484 + $0x1c] sm:$0xf]
    %s1493 = scalar_lea.vmem %s4, 15
    %v1494 = vld [vmem:[%s1493] sm:$0x1]
    %v1496 = vperm.slane %v1494, 0
    %v1506 = vunpack.c.l.b16 %v1485
    %v1507 = vunpack.c.l.b16 %v1486
    %v1508 = vunpack.c.l.b16 %v1487
    %v1509 = vunpack.c.l.b16 %v1488
    %v1510 = vunpack.c.l.b16 %v1489
    %v1511 = vunpack.c.l.b16 %v1490
    %v1512 = vunpack.c.l.b16 %v1491
    %v1513 = vunpack.c.l.b16 %v1492
    %v1514 = vpack.c.b16 %v1507, %v1506
    %v1515 = vpack.c.b16 %v1509, %v1508
    %v1516 = vpack.c.b16 %v1511, %v1510
    %v1517 = vpack.c.b16 %v1513, %v1512
    %v1523 = vsel %vm140, %v1483, 0
    %1525 = vmatpush.bf16.msra.mxu0 0
    %1526 = vmatpush.bf16.msra.mxu0 0
    %1527 = vmatpush.bf16.msra.mxu0 0
    %1528 = vmatpush.bf16.msra.mxu0 0
    %1529 = vmatpush.bf16.msra.mxu0 %v1517
    %1530 = vmatpush.bf16.msra.mxu0 %v1516
    %1531 = vmatpush.bf16.msra.mxu0 %v1515
    %1532 = vmatpush.bf16.msra.mxu0 %v1514
    %1533 = vmatmul.bf16.gmra.mxu0 %v1523
    %v1534 = vpop.f32.mrf.mxu0
    %v1535 = vadd.f32 %v1496, %v1534
    %v1536 = vpop.f32.mrf.mxu0
    %v1537 = vadd.f32 %v1496, %v1536
    %1538 = vdwg.mxu0
    %s1539 = scalar_lea.vmem %s5, 18
    %v1540 = vld [vmem:[%s1539] sm:$0x1]
    %v1542 = vperm.slane %v1540, 0
    %v1544 = vmul.f32 %v1535, %v1542
    %v1545 = vmul.f32 %v1537, %v1542
    %s1546 = scalar_lea.vmem %s6, 18
    %v1547 = vld [vmem:[%s1546] sm:$0x1]
    %v1549 = vperm.slane %v1547, 0
    %v1551 = vadd.f32 %v1544, %v1549
    %v1552 = vadd.f32 %v1545, %v1549
    %v1553 = vmax.f32 %v1551, 0.0
    %v1554 = vmax.f32 %v1552, 0.0
    %v1555 = vpack.c.bf16 %v1554, %v1553
    %s1556 = scalar_lea.vmem [#allocation5], 512
    %v1557 = vld [vmem:[%s1556] sm:$0xf]
    %v1558 = vld [vmem:[%s1556 + $0x4] sm:$0xf]
    %v1559 = vld [vmem:[%s1556 + $0x8] sm:$0xf]
    %v1560 = vld [vmem:[%s1556 + $0xc] sm:$0xf]
    %v1561 = vld [vmem:[%s1556 + $0x10] sm:$0xf]
    %v1562 = vld [vmem:[%s1556 + $0x14] sm:$0xf]
    %v1563 = vld [vmem:[%s1556 + $0x18] sm:$0xf]
    %v1564 = vld [vmem:[%s1556 + $0x1c] sm:$0xf]
    %s1565 = scalar_lea.vmem %s4, 16
    %v1566 = vld [vmem:[%s1565] sm:$0x1]
    %v1568 = vperm.slane %v1566, 0
    %v1578 = vunpack.c.l.b16 %v1557
    %v1579 = vunpack.c.l.b16 %v1558
    %v1580 = vunpack.c.l.b16 %v1559
    %v1581 = vunpack.c.l.b16 %v1560
    %v1582 = vunpack.c.l.b16 %v1561
    %v1583 = vunpack.c.l.b16 %v1562
    %v1584 = vunpack.c.l.b16 %v1563
    %v1585 = vunpack.c.l.b16 %v1564
    %v1586 = vpack.c.b16 %v1579, %v1578
    %v1587 = vpack.c.b16 %v1581, %v1580
    %v1588 = vpack.c.b16 %v1583, %v1582
    %v1589 = vpack.c.b16 %v1585, %v1584
    %v1595 = vsel %vm140, %v1555, 0
    %1597 = vmatpush.bf16.msra.mxu0 0
    %1598 = vmatpush.bf16.msra.mxu0 0
    %1599 = vmatpush.bf16.msra.mxu0 0
    %1600 = vmatpush.bf16.msra.mxu0 0
    %1601 = vmatpush.bf16.msra.mxu0 %v1589
    %1602 = vmatpush.bf16.msra.mxu0 %v1588
    %1603 = vmatpush.bf16.msra.mxu0 %v1587
    %1604 = vmatpush.bf16.msra.mxu0 %v1586
    %1605 = vmatmul.bf16.gmra.mxu0 %v1595
    %v1606 = vpop.f32.mrf.mxu0
    %v1607 = vadd.f32 %v1568, %v1606
    %v1608 = vpop.f32.mrf.mxu0
    %v1609 = vadd.f32 %v1568, %v1608
    %1610 = vdwg.mxu0
    %s1611 = scalar_lea.vmem %s5, 19
    %v1612 = vld [vmem:[%s1611] sm:$0x1]
    %v1614 = vperm.slane %v1612, 0
    %v1616 = vmul.f32 %v1607, %v1614
    %v1617 = vmul.f32 %v1609, %v1614
    %s1618 = scalar_lea.vmem %s6, 19
    %v1619 = vld [vmem:[%s1618] sm:$0x1]
    %v1621 = vperm.slane %v1619, 0
    %v1623 = vadd.f32 %v1616, %v1621
    %v1624 = vadd.f32 %v1617, %v1621
    %v1625 = vmax.f32 %v1623, 0.0
    %v1626 = vmax.f32 %v1624, 0.0
    %v1627 = vpack.c.bf16 %v1626, %v1625
    %s1628 = scalar_lea.vmem [#allocation5], 544
    %v1629 = vld [vmem:[%s1628] sm:$0xf]
    %v1630 = vld [vmem:[%s1628 + $0x4] sm:$0xf]
    %v1631 = vld [vmem:[%s1628 + $0x8] sm:$0xf]
    %v1632 = vld [vmem:[%s1628 + $0xc] sm:$0xf]
    %v1633 = vld [vmem:[%s1628 + $0x10] sm:$0xf]
    %v1634 = vld [vmem:[%s1628 + $0x14] sm:$0xf]
    %v1635 = vld [vmem:[%s1628 + $0x18] sm:$0xf]
    %v1636 = vld [vmem:[%s1628 + $0x1c] sm:$0xf]
    %s1637 = scalar_lea.vmem %s4, 17
    %v1638 = vld [vmem:[%s1637] sm:$0x1]
    %v1640 = vperm.slane %v1638, 0
    %v1650 = vunpack.c.l.b16 %v1629
    %v1651 = vunpack.c.l.b16 %v1630
    %v1652 = vunpack.c.l.b16 %v1631
    %v1653 = vunpack.c.l.b16 %v1632
    %v1654 = vunpack.c.l.b16 %v1633
    %v1655 = vunpack.c.l.b16 %v1634
    %v1656 = vunpack.c.l.b16 %v1635
    %v1657 = vunpack.c.l.b16 %v1636
    %v1658 = vpack.c.b16 %v1651, %v1650
    %v1659 = vpack.c.b16 %v1653, %v1652
    %v1660 = vpack.c.b16 %v1655, %v1654
    %v1661 = vpack.c.b16 %v1657, %v1656
    %v1667 = vsel %vm140, %v1627, 0
    %1669 = vmatpush.bf16.msra.mxu0 0
    %1670 = vmatpush.bf16.msra.mxu0 0
    %1671 = vmatpush.bf16.msra.mxu0 0
    %1672 = vmatpush.bf16.msra.mxu0 0
    %1673 = vmatpush.bf16.msra.mxu0 %v1661
    %1674 = vmatpush.bf16.msra.mxu0 %v1660
    %1675 = vmatpush.bf16.msra.mxu0 %v1659
    %1676 = vmatpush.bf16.msra.mxu0 %v1658
    %1677 = vmatmul.bf16.gmra.mxu0 %v1667
    %v1678 = vpop.f32.mrf.mxu0
    %v1679 = vadd.f32 %v1640, %v1678
    %v1680 = vpop.f32.mrf.mxu0
    %v1681 = vadd.f32 %v1640, %v1680
    %1682 = vdwg.mxu0
    %s1683 = scalar_lea.vmem %s5, 20
    %v1684 = vld [vmem:[%s1683] sm:$0x1]
    %v1686 = vperm.slane %v1684, 0
    %v1688 = vmul.f32 %v1679, %v1686
    %v1689 = vmul.f32 %v1681, %v1686
    %s1690 = scalar_lea.vmem %s6, 20
    %v1691 = vld [vmem:[%s1690] sm:$0x1]
    %v1693 = vperm.slane %v1691, 0
    %v1695 = vadd.f32 %v1688, %v1693
    %v1696 = vadd.f32 %v1689, %v1693
    %v1697 = vmax.f32 %v1695, 0.0
    %v1698 = vmax.f32 %v1696, 0.0
    %v1699 = vpack.c.bf16 %v1698, %v1697
    %s1700 = scalar_lea.vmem [#allocation5], 576
    %v1701 = vld [vmem:[%s1700] sm:$0xf]
    %v1702 = vld [vmem:[%s1700 + $0x4] sm:$0xf]
    %v1703 = vld [vmem:[%s1700 + $0x8] sm:$0xf]
    %v1704 = vld [vmem:[%s1700 + $0xc] sm:$0xf]
    %v1705 = vld [vmem:[%s1700 + $0x10] sm:$0xf]
    %v1706 = vld [vmem:[%s1700 + $0x14] sm:$0xf]
    %v1707 = vld [vmem:[%s1700 + $0x18] sm:$0xf]
    %v1708 = vld [vmem:[%s1700 + $0x1c] sm:$0xf]
    %s1709 = scalar_lea.vmem %s4, 18
    %v1710 = vld [vmem:[%s1709] sm:$0x1]
    %v1712 = vperm.slane %v1710, 0
    %v1722 = vunpack.c.l.b16 %v1701
    %v1723 = vunpack.c.l.b16 %v1702
    %v1724 = vunpack.c.l.b16 %v1703
    %v1725 = vunpack.c.l.b16 %v1704
    %v1726 = vunpack.c.l.b16 %v1705
    %v1727 = vunpack.c.l.b16 %v1706
    %v1728 = vunpack.c.l.b16 %v1707
    %v1729 = vunpack.c.l.b16 %v1708
    %v1730 = vpack.c.b16 %v1723, %v1722
    %v1731 = vpack.c.b16 %v1725, %v1724
    %v1732 = vpack.c.b16 %v1727, %v1726
    %v1733 = vpack.c.b16 %v1729, %v1728
    %v1739 = vsel %vm140, %v1699, 0
    %1741 = vmatpush.bf16.msra.mxu0 0
    %1742 = vmatpush.bf16.msra.mxu0 0
    %1743 = vmatpush.bf16.msra.mxu0 0
    %1744 = vmatpush.bf16.msra.mxu0 0
    %1745 = vmatpush.bf16.msra.mxu0 %v1733
    %1746 = vmatpush.bf16.msra.mxu0 %v1732
    %1747 = vmatpush.bf16.msra.mxu0 %v1731
    %1748 = vmatpush.bf16.msra.mxu0 %v1730
    %1749 = vmatmul.bf16.gmra.mxu0 %v1739
    %v1750 = vpop.f32.mrf.mxu0
    %v1751 = vadd.f32 %v1712, %v1750
    %v1752 = vpop.f32.mrf.mxu0
    %v1753 = vadd.f32 %v1712, %v1752
    %1754 = vdwg.mxu0
    %s1755 = scalar_lea.vmem %s5, 21
    %v1756 = vld [vmem:[%s1755] sm:$0x1]
    %v1758 = vperm.slane %v1756, 0
    %v1760 = vmul.f32 %v1751, %v1758
    %v1761 = vmul.f32 %v1753, %v1758
    %s1762 = scalar_lea.vmem %s6, 21
    %v1763 = vld [vmem:[%s1762] sm:$0x1]
    %v1765 = vperm.slane %v1763, 0
    %v1767 = vadd.f32 %v1760, %v1765
    %v1768 = vadd.f32 %v1761, %v1765
    %v1769 = vmax.f32 %v1767, 0.0
    %v1770 = vmax.f32 %v1768, 0.0
    %v1771 = vpack.c.bf16 %v1770, %v1769
    %s1772 = scalar_lea.vmem [#allocation5], 608
    %v1773 = vld [vmem:[%s1772] sm:$0xf]
    %v1774 = vld [vmem:[%s1772 + $0x4] sm:$0xf]
    %v1775 = vld [vmem:[%s1772 + $0x8] sm:$0xf]
    %v1776 = vld [vmem:[%s1772 + $0xc] sm:$0xf]
    %v1777 = vld [vmem:[%s1772 + $0x10] sm:$0xf]
    %v1778 = vld [vmem:[%s1772 + $0x14] sm:$0xf]
    %v1779 = vld [vmem:[%s1772 + $0x18] sm:$0xf]
    %v1780 = vld [vmem:[%s1772 + $0x1c] sm:$0xf]
    %s1781 = scalar_lea.vmem %s4, 19
    %v1782 = vld [vmem:[%s1781] sm:$0x1]
    %v1784 = vperm.slane %v1782, 0
    %v1794 = vunpack.c.l.b16 %v1773
    %v1795 = vunpack.c.l.b16 %v1774
    %v1796 = vunpack.c.l.b16 %v1775
    %v1797 = vunpack.c.l.b16 %v1776
    %v1798 = vunpack.c.l.b16 %v1777
    %v1799 = vunpack.c.l.b16 %v1778
    %v1800 = vunpack.c.l.b16 %v1779
    %v1801 = vunpack.c.l.b16 %v1780
    %v1802 = vpack.c.b16 %v1795, %v1794
    %v1803 = vpack.c.b16 %v1797, %v1796
    %v1804 = vpack.c.b16 %v1799, %v1798
    %v1805 = vpack.c.b16 %v1801, %v1800
    %v1811 = vsel %vm140, %v1771, 0
    %1813 = vmatpush.bf16.msra.mxu0 0
    %1814 = vmatpush.bf16.msra.mxu0 0
    %1815 = vmatpush.bf16.msra.mxu0 0
    %1816 = vmatpush.bf16.msra.mxu0 0
    %1817 = vmatpush.bf16.msra.mxu0 %v1805
    %1818 = vmatpush.bf16.msra.mxu0 %v1804
    %1819 = vmatpush.bf16.msra.mxu0 %v1803
    %1820 = vmatpush.bf16.msra.mxu0 %v1802
    %1821 = vmatmul.bf16.gmra.mxu0 %v1811
    %v1822 = vpop.f32.mrf.mxu0
    %v1823 = vadd.f32 %v1784, %v1822
    %v1824 = vpop.f32.mrf.mxu0
    %v1825 = vadd.f32 %v1784, %v1824
    %1826 = vdwg.mxu0
    %s1827 = scalar_lea.vmem %s5, 22
    %v1828 = vld [vmem:[%s1827] sm:$0x1]
    %v1830 = vperm.slane %v1828, 0
    %v1832 = vmul.f32 %v1823, %v1830
    %v1833 = vmul.f32 %v1825, %v1830
    %s1834 = scalar_lea.vmem %s6, 22
    %v1835 = vld [vmem:[%s1834] sm:$0x1]
    %v1837 = vperm.slane %v1835, 0
    %v1839 = vadd.f32 %v1832, %v1837
    %v1840 = vadd.f32 %v1833, %v1837
    %v1841 = vmax.f32 %v1839, 0.0
    %v1842 = vmax.f32 %v1840, 0.0
    %s1843 = scalar_lea.vmem %s5, 23
    %v1844 = vld [vmem:[%s1843] sm:$0x1]
    %v1846 = vperm.slane %v1844, 0
    %v1848 = vmul.f32 %v1841, %v1846
    %v1849 = vmul.f32 %v1842, %v1846
    %s1850 = scalar_lea.vmem %s6, 23
    %v1851 = vld [vmem:[%s1850] sm:$0x1]
    %v1853 = vperm.slane %v1851, 0
    %v1855 = vadd.f32 %v1848, %v1853
    %v1856 = vadd.f32 %v1849, %v1853
    %v1857 = vmax.f32 %v1855, 0.0
    %v1858 = vmax.f32 %v1856, 0.0
    %v1859 = vpack.c.bf16 %v1858, %v1857
    %s1860 = scalar_lea.vmem %s7, 128
    %v1861 = vld [vmem:[%s1860] sm:$0xf]
    %v1862 = vld [vmem:[%s1860 + $0x4] sm:$0xf]
    %v1863 = vld [vmem:[%s1860 + $0x8] sm:$0xf]
    %v1864 = vld [vmem:[%s1860 + $0xc] sm:$0xf]
    %v1865 = vld [vmem:[%s1860 + $0x10] sm:$0xf]
    %v1866 = vld [vmem:[%s1860 + $0x14] sm:$0xf]
    %v1867 = vld [vmem:[%s1860 + $0x18] sm:$0xf]
    %v1868 = vld [vmem:[%s1860 + $0x1c] sm:$0xf]
    %v1877 = vunpack.c.l.b16 %v1861
    %v1878 = vunpack.c.l.b16 %v1862
    %v1879 = vunpack.c.l.b16 %v1863
    %v1880 = vunpack.c.l.b16 %v1864
    %v1881 = vunpack.c.l.b16 %v1865
    %v1882 = vunpack.c.l.b16 %v1866
    %v1883 = vunpack.c.l.b16 %v1867
    %v1884 = vunpack.c.l.b16 %v1868
    %v1885 = vpack.c.b16 %v1878, %v1877
    %v1886 = vpack.c.b16 %v1880, %v1879
    %v1887 = vpack.c.b16 %v1882, %v1881
    %v1888 = vpack.c.b16 %v1884, %v1883
    %v1894 = vsel %vm140, %v1859, 0
    %1896 = vmatpush.bf16.msra.mxu0 0
    %1897 = vmatpush.bf16.msra.mxu0 0
    %1898 = vmatpush.bf16.msra.mxu0 0
    %1899 = vmatpush.bf16.msra.mxu0 0
    %1900 = vmatpush.bf16.msra.mxu0 %v1888
    %1901 = vmatpush.bf16.msra.mxu0 %v1887
    %1902 = vmatpush.bf16.msra.mxu0 %v1886
    %1903 = vmatpush.bf16.msra.mxu0 %v1885
    %1904 = vmatmul.bf16.gmra.mxu0 %v1894
    %v1905 = vpop.f32.mrf.mxu0
    %v1906 = vadd.f32 0.0, %v1905
    %v1907 = vpop.f32.mrf.mxu0
    %v1908 = vadd.f32 0.0, %v1907
    %1909 = vdwg.mxu0
    %v1910 = vadd.f32 %v1462, %v1906
    %v1911 = vadd.f32 %v1463, %v1908
    %s1912 = sld [smem:[#allocation2 + $0x4]]
    %s1913 = sadd.f32 %s1912, 1.0
    %v1914 = vstv %s1913
    %v1915 = vmul.f32 %v1914, %v1857
    %v1916 = vmul.f32 %v1914, %v1858
    %1917 = vmatpush.bf16.msra.mxu0 0
    %1918 = vmatpush.bf16.msra.mxu0 0
    %1919 = vmatpush.bf16.msra.mxu0 0
    %1920 = vmatpush.bf16.msra.mxu0 0
    %1921 = vmatpush.bf16.msra.mxu0 0
    %1922 = vmatpush.bf16.msra.mxu0 0
    %1923 = vmatpush.bf16.msra.mxu0 0
    %1924 = vmatpush.bf16.msra.mxu0 %v1859
    %1925 = vmatmul.bf16.gmra.mxu0 %v87
    %v1926 = vpop.f32.mrf.mxu0
    %v1927 = vadd.f32 %v1915, %v1926
    %v1928 = vpop.f32.mrf.mxu0
    %v1929 = vadd.f32 %v1916, %v1928
    %1930 = vdwg.mxu0
    %v1931 = vpack.c.bf16 %v1929, %v1927
    %s1932 = scalar_lea.vmem [#allocation5], 640
    %v1933 = vld [vmem:[%s1932] sm:$0xf]
    %v1934 = vld [vmem:[%s1932 + $0x4] sm:$0xf]
    %v1935 = vld [vmem:[%s1932 + $0x8] sm:$0xf]
    %v1936 = vld [vmem:[%s1932 + $0xc] sm:$0xf]
    %v1937 = vld [vmem:[%s1932 + $0x10] sm:$0xf]
    %v1938 = vld [vmem:[%s1932 + $0x14] sm:$0xf]
    %v1939 = vld [vmem:[%s1932 + $0x18] sm:$0xf]
    %v1940 = vld [vmem:[%s1932 + $0x1c] sm:$0xf]
    %s1941 = scalar_lea.vmem %s4, 20
    %v1942 = vld [vmem:[%s1941] sm:$0x1]
    %v1944 = vperm.slane %v1942, 0
    %v1954 = vunpack.c.l.b16 %v1933
    %v1955 = vunpack.c.l.b16 %v1934
    %v1956 = vunpack.c.l.b16 %v1935
    %v1957 = vunpack.c.l.b16 %v1936
    %v1958 = vunpack.c.l.b16 %v1937
    %v1959 = vunpack.c.l.b16 %v1938
    %v1960 = vunpack.c.l.b16 %v1939
    %v1961 = vunpack.c.l.b16 %v1940
    %v1962 = vpack.c.b16 %v1955, %v1954
    %v1963 = vpack.c.b16 %v1957, %v1956
    %v1964 = vpack.c.b16 %v1959, %v1958
    %v1965 = vpack.c.b16 %v1961, %v1960
    %v1971 = vsel %vm140, %v1931, 0
    %1973 = vmatpush.bf16.msra.mxu0 0
    %1974 = vmatpush.bf16.msra.mxu0 0
    %1975 = vmatpush.bf16.msra.mxu0 0
    %1976 = vmatpush.bf16.msra.mxu0 0
    %1977 = vmatpush.bf16.msra.mxu0 %v1965
    %1978 = vmatpush.bf16.msra.mxu0 %v1964
    %1979 = vmatpush.bf16.msra.mxu0 %v1963
    %1980 = vmatpush.bf16.msra.mxu0 %v1962
    %1981 = vmatmul.bf16.gmra.mxu0 %v1971
    %v1982 = vpop.f32.mrf.mxu0
    %v1983 = vadd.f32 %v1944, %v1982
    %v1984 = vpop.f32.mrf.mxu0
    %v1985 = vadd.f32 %v1944, %v1984
    %1986 = vdwg.mxu0
    %s1987 = scalar_lea.vmem %s5, 24
    %v1988 = vld [vmem:[%s1987] sm:$0x1]
    %v1990 = vperm.slane %v1988, 0
    %v1992 = vmul.f32 %v1983, %v1990
    %v1993 = vmul.f32 %v1985, %v1990
    %s1994 = scalar_lea.vmem %s6, 24
    %v1995 = vld [vmem:[%s1994] sm:$0x1]
    %v1997 = vperm.slane %v1995, 0
    %v1999 = vadd.f32 %v1992, %v1997
    %v2000 = vadd.f32 %v1993, %v1997
    %v2001 = vmax.f32 %v1999, 0.0
    %v2002 = vmax.f32 %v2000, 0.0
    %v2003 = vpack.c.bf16 %v2002, %v2001
    %s2004 = scalar_lea.vmem [#allocation5], 672
    %v2005 = vld [vmem:[%s2004] sm:$0xf]
    %v2006 = vld [vmem:[%s2004 + $0x4] sm:$0xf]
    %v2007 = vld [vmem:[%s2004 + $0x8] sm:$0xf]
    %v2008 = vld [vmem:[%s2004 + $0xc] sm:$0xf]
    %v2009 = vld [vmem:[%s2004 + $0x10] sm:$0xf]
    %v2010 = vld [vmem:[%s2004 + $0x14] sm:$0xf]
    %v2011 = vld [vmem:[%s2004 + $0x18] sm:$0xf]
    %v2012 = vld [vmem:[%s2004 + $0x1c] sm:$0xf]
    %s2013 = scalar_lea.vmem %s4, 21
    %v2014 = vld [vmem:[%s2013] sm:$0x1]
    %v2016 = vperm.slane %v2014, 0
    %v2026 = vunpack.c.l.b16 %v2005
    %v2027 = vunpack.c.l.b16 %v2006
    %v2028 = vunpack.c.l.b16 %v2007
    %v2029 = vunpack.c.l.b16 %v2008
    %v2030 = vunpack.c.l.b16 %v2009
    %v2031 = vunpack.c.l.b16 %v2010
    %v2032 = vunpack.c.l.b16 %v2011
    %v2033 = vunpack.c.l.b16 %v2012
    %v2034 = vpack.c.b16 %v2027, %v2026
    %v2035 = vpack.c.b16 %v2029, %v2028
    %v2036 = vpack.c.b16 %v2031, %v2030
    %v2037 = vpack.c.b16 %v2033, %v2032
    %v2043 = vsel %vm140, %v2003, 0
    %2045 = vmatpush.bf16.msra.mxu0 0
    %2046 = vmatpush.bf16.msra.mxu0 0
    %2047 = vmatpush.bf16.msra.mxu0 0
    %2048 = vmatpush.bf16.msra.mxu0 0
    %2049 = vmatpush.bf16.msra.mxu0 %v2037
    %2050 = vmatpush.bf16.msra.mxu0 %v2036
    %2051 = vmatpush.bf16.msra.mxu0 %v2035
    %2052 = vmatpush.bf16.msra.mxu0 %v2034
    %2053 = vmatmul.bf16.gmra.mxu0 %v2043
    %v2054 = vpop.f32.mrf.mxu0
    %v2055 = vadd.f32 %v2016, %v2054
    %v2056 = vpop.f32.mrf.mxu0
    %v2057 = vadd.f32 %v2016, %v2056
    %2058 = vdwg.mxu0
    %s2059 = scalar_lea.vmem %s5, 25
    %v2060 = vld [vmem:[%s2059] sm:$0x1]
    %v2062 = vperm.slane %v2060, 0
    %v2064 = vmul.f32 %v2055, %v2062
    %v2065 = vmul.f32 %v2057, %v2062
    %s2066 = scalar_lea.vmem %s6, 25
    %v2067 = vld [vmem:[%s2066] sm:$0x1]
    %v2069 = vperm.slane %v2067, 0
    %v2071 = vadd.f32 %v2064, %v2069
    %v2072 = vadd.f32 %v2065, %v2069
    %v2073 = vmax.f32 %v2071, 0.0
    %v2074 = vmax.f32 %v2072, 0.0
    %v2075 = vpack.c.bf16 %v2074, %v2073
    %s2076 = scalar_lea.vmem [#allocation5], 704
    %v2077 = vld [vmem:[%s2076] sm:$0xf]
    %v2078 = vld [vmem:[%s2076 + $0x4] sm:$0xf]
    %v2079 = vld [vmem:[%s2076 + $0x8] sm:$0xf]
    %v2080 = vld [vmem:[%s2076 + $0xc] sm:$0xf]
    %v2081 = vld [vmem:[%s2076 + $0x10] sm:$0xf]
    %v2082 = vld [vmem:[%s2076 + $0x14] sm:$0xf]
    %v2083 = vld [vmem:[%s2076 + $0x18] sm:$0xf]
    %v2084 = vld [vmem:[%s2076 + $0x1c] sm:$0xf]
    %s2085 = scalar_lea.vmem %s4, 22
    %v2086 = vld [vmem:[%s2085] sm:$0x1]
    %v2088 = vperm.slane %v2086, 0
    %v2098 = vunpack.c.l.b16 %v2077
    %v2099 = vunpack.c.l.b16 %v2078
    %v2100 = vunpack.c.l.b16 %v2079
    %v2101 = vunpack.c.l.b16 %v2080
    %v2102 = vunpack.c.l.b16 %v2081
    %v2103 = vunpack.c.l.b16 %v2082
    %v2104 = vunpack.c.l.b16 %v2083
    %v2105 = vunpack.c.l.b16 %v2084
    %v2106 = vpack.c.b16 %v2099, %v2098
    %v2107 = vpack.c.b16 %v2101, %v2100
    %v2108 = vpack.c.b16 %v2103, %v2102
    %v2109 = vpack.c.b16 %v2105, %v2104
    %v2115 = vsel %vm140, %v2075, 0
    %2117 = vmatpush.bf16.msra.mxu0 0
    %2118 = vmatpush.bf16.msra.mxu0 0
    %2119 = vmatpush.bf16.msra.mxu0 0
    %2120 = vmatpush.bf16.msra.mxu0 0
    %2121 = vmatpush.bf16.msra.mxu0 %v2109
    %2122 = vmatpush.bf16.msra.mxu0 %v2108
    %2123 = vmatpush.bf16.msra.mxu0 %v2107
    %2124 = vmatpush.bf16.msra.mxu0 %v2106
    %2125 = vmatmul.bf16.gmra.mxu0 %v2115
    %v2126 = vpop.f32.mrf.mxu0
    %v2127 = vadd.f32 %v2088, %v2126
    %v2128 = vpop.f32.mrf.mxu0
    %v2129 = vadd.f32 %v2088, %v2128
    %2130 = vdwg.mxu0
    %s2131 = scalar_lea.vmem %s5, 26
    %v2132 = vld [vmem:[%s2131] sm:$0x1]
    %v2134 = vperm.slane %v2132, 0
    %v2136 = vmul.f32 %v2127, %v2134
    %v2137 = vmul.f32 %v2129, %v2134
    %s2138 = scalar_lea.vmem %s6, 26
    %v2139 = vld [vmem:[%s2138] sm:$0x1]
    %v2141 = vperm.slane %v2139, 0
    %v2143 = vadd.f32 %v2136, %v2141
    %v2144 = vadd.f32 %v2137, %v2141
    %v2145 = vmax.f32 %v2143, 0.0
    %v2146 = vmax.f32 %v2144, 0.0
    %v2147 = vpack.c.bf16 %v2146, %v2145
    %s2148 = scalar_lea.vmem [#allocation5], 736
    %v2149 = vld [vmem:[%s2148] sm:$0xf]
    %v2150 = vld [vmem:[%s2148 + $0x4] sm:$0xf]
    %v2151 = vld [vmem:[%s2148 + $0x8] sm:$0xf]
    %v2152 = vld [vmem:[%s2148 + $0xc] sm:$0xf]
    %v2153 = vld [vmem:[%s2148 + $0x10] sm:$0xf]
    %v2154 = vld [vmem:[%s2148 + $0x14] sm:$0xf]
    %v2155 = vld [vmem:[%s2148 + $0x18] sm:$0xf]
    %v2156 = vld [vmem:[%s2148 + $0x1c] sm:$0xf]
    %s2157 = scalar_lea.vmem %s4, 23
    %v2158 = vld [vmem:[%s2157] sm:$0x1]
    %v2160 = vperm.slane %v2158, 0
    %v2170 = vunpack.c.l.b16 %v2149
    %v2171 = vunpack.c.l.b16 %v2150
    %v2172 = vunpack.c.l.b16 %v2151
    %v2173 = vunpack.c.l.b16 %v2152
    %v2174 = vunpack.c.l.b16 %v2153
    %v2175 = vunpack.c.l.b16 %v2154
    %v2176 = vunpack.c.l.b16 %v2155
    %v2177 = vunpack.c.l.b16 %v2156
    %v2178 = vpack.c.b16 %v2171, %v2170
    %v2179 = vpack.c.b16 %v2173, %v2172
    %v2180 = vpack.c.b16 %v2175, %v2174
    %v2181 = vpack.c.b16 %v2177, %v2176
    %v2187 = vsel %vm140, %v2147, 0
    %2189 = vmatpush.bf16.msra.mxu0 0
    %2190 = vmatpush.bf16.msra.mxu0 0
    %2191 = vmatpush.bf16.msra.mxu0 0
    %2192 = vmatpush.bf16.msra.mxu0 0
    %2193 = vmatpush.bf16.msra.mxu0 %v2181
    %2194 = vmatpush.bf16.msra.mxu0 %v2180
    %2195 = vmatpush.bf16.msra.mxu0 %v2179
    %2196 = vmatpush.bf16.msra.mxu0 %v2178
    %2197 = vmatmul.bf16.gmra.mxu0 %v2187
    %v2198 = vpop.f32.mrf.mxu0
    %v2199 = vadd.f32 %v2160, %v2198
    %v2200 = vpop.f32.mrf.mxu0
    %v2201 = vadd.f32 %v2160, %v2200
    %2202 = vdwg.mxu0
    %s2203 = scalar_lea.vmem %s5, 27
    %v2204 = vld [vmem:[%s2203] sm:$0x1]
    %v2206 = vperm.slane %v2204, 0
    %v2208 = vmul.f32 %v2199, %v2206
    %v2209 = vmul.f32 %v2201, %v2206
    %s2210 = scalar_lea.vmem %s6, 27
    %v2211 = vld [vmem:[%s2210] sm:$0x1]
    %v2213 = vperm.slane %v2211, 0
    %v2215 = vadd.f32 %v2208, %v2213
    %v2216 = vadd.f32 %v2209, %v2213
    %v2217 = vmax.f32 %v2215, 0.0
    %v2218 = vmax.f32 %v2216, 0.0
    %v2219 = vpack.c.bf16 %v2218, %v2217
    %s2220 = scalar_lea.vmem [#allocation5], 768
    %v2221 = vld [vmem:[%s2220] sm:$0xf]
    %v2222 = vld [vmem:[%s2220 + $0x4] sm:$0xf]
    %v2223 = vld [vmem:[%s2220 + $0x8] sm:$0xf]
    %v2224 = vld [vmem:[%s2220 + $0xc] sm:$0xf]
    %v2225 = vld [vmem:[%s2220 + $0x10] sm:$0xf]
    %v2226 = vld [vmem:[%s2220 + $0x14] sm:$0xf]
    %v2227 = vld [vmem:[%s2220 + $0x18] sm:$0xf]
    %v2228 = vld [vmem:[%s2220 + $0x1c] sm:$0xf]
    %s2229 = scalar_lea.vmem %s4, 24
    %v2230 = vld [vmem:[%s2229] sm:$0x1]
    %v2232 = vperm.slane %v2230, 0
    %v2242 = vunpack.c.l.b16 %v2221
    %v2243 = vunpack.c.l.b16 %v2222
    %v2244 = vunpack.c.l.b16 %v2223
    %v2245 = vunpack.c.l.b16 %v2224
    %v2246 = vunpack.c.l.b16 %v2225
    %v2247 = vunpack.c.l.b16 %v2226
    %v2248 = vunpack.c.l.b16 %v2227
    %v2249 = vunpack.c.l.b16 %v2228
    %v2250 = vpack.c.b16 %v2243, %v2242
    %v2251 = vpack.c.b16 %v2245, %v2244
    %v2252 = vpack.c.b16 %v2247, %v2246
    %v2253 = vpack.c.b16 %v2249, %v2248
    %v2259 = vsel %vm140, %v2219, 0
    %2261 = vmatpush.bf16.msra.mxu0 0
    %2262 = vmatpush.bf16.msra.mxu0 0
    %2263 = vmatpush.bf16.msra.mxu0 0
    %2264 = vmatpush.bf16.msra.mxu0 0
    %2265 = vmatpush.bf16.msra.mxu0 %v2253
    %2266 = vmatpush.bf16.msra.mxu0 %v2252
    %2267 = vmatpush.bf16.msra.mxu0 %v2251
    %2268 = vmatpush.bf16.msra.mxu0 %v2250
    %2269 = vmatmul.bf16.gmra.mxu0 %v2259
    %v2270 = vpop.f32.mrf.mxu0
    %v2271 = vadd.f32 %v2232, %v2270
    %v2272 = vpop.f32.mrf.mxu0
    %v2273 = vadd.f32 %v2232, %v2272
    %2274 = vdwg.mxu0
    %s2275 = scalar_lea.vmem %s5, 28
    %v2276 = vld [vmem:[%s2275] sm:$0x1]
    %v2278 = vperm.slane %v2276, 0
    %v2280 = vmul.f32 %v2271, %v2278
    %v2281 = vmul.f32 %v2273, %v2278
    %s2282 = scalar_lea.vmem %s6, 28
    %v2283 = vld [vmem:[%s2282] sm:$0x1]
    %v2285 = vperm.slane %v2283, 0
    %v2287 = vadd.f32 %v2280, %v2285
    %v2288 = vadd.f32 %v2281, %v2285
    %v2289 = vmax.f32 %v2287, 0.0
    %v2290 = vmax.f32 %v2288, 0.0
    %s2291 = scalar_lea.vmem %s5, 29
    %v2292 = vld [vmem:[%s2291] sm:$0x1]
    %v2294 = vperm.slane %v2292, 0
    %v2296 = vmul.f32 %v2289, %v2294
    %v2297 = vmul.f32 %v2290, %v2294
    %s2298 = scalar_lea.vmem %s6, 29
    %v2299 = vld [vmem:[%s2298] sm:$0x1]
    %v2301 = vperm.slane %v2299, 0
    %v2303 = vadd.f32 %v2296, %v2301
    %v2304 = vadd.f32 %v2297, %v2301
    %v2305 = vmax.f32 %v2303, 0.0
    %v2306 = vmax.f32 %v2304, 0.0
    %v2307 = vpack.c.bf16 %v2306, %v2305
    %s2308 = scalar_lea.vmem %s7, 160
    %v2309 = vld [vmem:[%s2308] sm:$0xf]
    %v2310 = vld [vmem:[%s2308 + $0x4] sm:$0xf]
    %v2311 = vld [vmem:[%s2308 + $0x8] sm:$0xf]
    %v2312 = vld [vmem:[%s2308 + $0xc] sm:$0xf]
    %v2313 = vld [vmem:[%s2308 + $0x10] sm:$0xf]
    %v2314 = vld [vmem:[%s2308 + $0x14] sm:$0xf]
    %v2315 = vld [vmem:[%s2308 + $0x18] sm:$0xf]
    %v2316 = vld [vmem:[%s2308 + $0x1c] sm:$0xf]
    %v2325 = vunpack.c.l.b16 %v2309
    %v2326 = vunpack.c.l.b16 %v2310
    %v2327 = vunpack.c.l.b16 %v2311
    %v2328 = vunpack.c.l.b16 %v2312
    %v2329 = vunpack.c.l.b16 %v2313
    %v2330 = vunpack.c.l.b16 %v2314
    %v2331 = vunpack.c.l.b16 %v2315
    %v2332 = vunpack.c.l.b16 %v2316
    %v2333 = vpack.c.b16 %v2326, %v2325
    %v2334 = vpack.c.b16 %v2328, %v2327
    %v2335 = vpack.c.b16 %v2330, %v2329
    %v2336 = vpack.c.b16 %v2332, %v2331
    %v2342 = vsel %vm140, %v2307, 0
    %2344 = vmatpush.bf16.msra.mxu0 0
    %2345 = vmatpush.bf16.msra.mxu0 0
    %2346 = vmatpush.bf16.msra.mxu0 0
    %2347 = vmatpush.bf16.msra.mxu0 0
    %2348 = vmatpush.bf16.msra.mxu0 %v2336
    %2349 = vmatpush.bf16.msra.mxu0 %v2335
    %2350 = vmatpush.bf16.msra.mxu0 %v2334
    %2351 = vmatpush.bf16.msra.mxu0 %v2333
    %2352 = vmatmul.bf16.gmra.mxu0 %v2342
    %v2353 = vpop.f32.mrf.mxu0
    %v2354 = vadd.f32 0.0, %v2353
    %v2355 = vpop.f32.mrf.mxu0
    %v2356 = vadd.f32 0.0, %v2355
    %2357 = vdwg.mxu0
    %v2358 = vadd.f32 %v1910, %v2354
    %v2359 = vadd.f32 %v1911, %v2356
    %s2360 = sld [smem:[#allocation2 + $0x5]]
    %s2361 = sadd.f32 %s2360, 1.0
    %v2362 = vstv %s2361
    %v2363 = vmul.f32 %v2362, %v2305
    %v2364 = vmul.f32 %v2362, %v2306
    %2365 = vmatpush.bf16.msra.mxu0 0
    %2366 = vmatpush.bf16.msra.mxu0 0
    %2367 = vmatpush.bf16.msra.mxu0 0
    %2368 = vmatpush.bf16.msra.mxu0 0
    %2369 = vmatpush.bf16.msra.mxu0 0
    %2370 = vmatpush.bf16.msra.mxu0 0
    %2371 = vmatpush.bf16.msra.mxu0 0
    %2372 = vmatpush.bf16.msra.mxu0 %v2307
    %2373 = vmatmul.bf16.gmra.mxu0 %v87
    %v2374 = vpop.f32.mrf.mxu0
    %v2375 = vadd.f32 %v2363, %v2374
    %v2376 = vpop.f32.mrf.mxu0
    %v2377 = vadd.f32 %v2364, %v2376
    %2378 = vdwg.mxu0
    %v2379 = vpack.c.bf16 %v2377, %v2375
    %s2380 = scalar_lea.vmem [#allocation5], 800
    %v2381 = vld [vmem:[%s2380] sm:$0xf]
    %v2382 = vld [vmem:[%s2380 + $0x4] sm:$0xf]
    %v2383 = vld [vmem:[%s2380 + $0x8] sm:$0xf]
    %v2384 = vld [vmem:[%s2380 + $0xc] sm:$0xf]
    %v2385 = vld [vmem:[%s2380 + $0x10] sm:$0xf]
    %v2386 = vld [vmem:[%s2380 + $0x14] sm:$0xf]
    %v2387 = vld [vmem:[%s2380 + $0x18] sm:$0xf]
    %v2388 = vld [vmem:[%s2380 + $0x1c] sm:$0xf]
    %s2389 = scalar_lea.vmem %s4, 25
    %v2390 = vld [vmem:[%s2389] sm:$0x1]
    %v2392 = vperm.slane %v2390, 0
    %v2402 = vunpack.c.l.b16 %v2381
    %v2403 = vunpack.c.l.b16 %v2382
    %v2404 = vunpack.c.l.b16 %v2383
    %v2405 = vunpack.c.l.b16 %v2384
    %v2406 = vunpack.c.l.b16 %v2385
    %v2407 = vunpack.c.l.b16 %v2386
    %v2408 = vunpack.c.l.b16 %v2387
    %v2409 = vunpack.c.l.b16 %v2388
    %v2410 = vpack.c.b16 %v2403, %v2402
    %v2411 = vpack.c.b16 %v2405, %v2404
    %v2412 = vpack.c.b16 %v2407, %v2406
    %v2413 = vpack.c.b16 %v2409, %v2408
    %v2419 = vsel %vm140, %v2379, 0
    %2421 = vmatpush.bf16.msra.mxu0 0
    %2422 = vmatpush.bf16.msra.mxu0 0
    %2423 = vmatpush.bf16.msra.mxu0 0
    %2424 = vmatpush.bf16.msra.mxu0 0
    %2425 = vmatpush.bf16.msra.mxu0 %v2413
    %2426 = vmatpush.bf16.msra.mxu0 %v2412
    %2427 = vmatpush.bf16.msra.mxu0 %v2411
    %2428 = vmatpush.bf16.msra.mxu0 %v2410
    %2429 = vmatmul.bf16.gmra.mxu0 %v2419
    %v2430 = vpop.f32.mrf.mxu0
    %v2431 = vadd.f32 %v2392, %v2430
    %v2432 = vpop.f32.mrf.mxu0
    %v2433 = vadd.f32 %v2392, %v2432
    %2434 = vdwg.mxu0
    %s2435 = scalar_lea.vmem %s5, 30
    %v2436 = vld [vmem:[%s2435] sm:$0x1]
    %v2438 = vperm.slane %v2436, 0
    %v2440 = vmul.f32 %v2431, %v2438
    %v2441 = vmul.f32 %v2433, %v2438
    %s2442 = scalar_lea.vmem %s6, 30
    %v2443 = vld [vmem:[%s2442] sm:$0x1]
    %v2445 = vperm.slane %v2443, 0
    %v2447 = vadd.f32 %v2440, %v2445
    %v2448 = vadd.f32 %v2441, %v2445
    %v2449 = vmax.f32 %v2447, 0.0
    %v2450 = vmax.f32 %v2448, 0.0
    %v2451 = vpack.c.bf16 %v2450, %v2449
    %s2452 = scalar_lea.vmem [#allocation5], 832
    %v2453 = vld [vmem:[%s2452] sm:$0xf]
    %v2454 = vld [vmem:[%s2452 + $0x4] sm:$0xf]
    %v2455 = vld [vmem:[%s2452 + $0x8] sm:$0xf]
    %v2456 = vld [vmem:[%s2452 + $0xc] sm:$0xf]
    %v2457 = vld [vmem:[%s2452 + $0x10] sm:$0xf]
    %v2458 = vld [vmem:[%s2452 + $0x14] sm:$0xf]
    %v2459 = vld [vmem:[%s2452 + $0x18] sm:$0xf]
    %v2460 = vld [vmem:[%s2452 + $0x1c] sm:$0xf]
    %s2461 = scalar_lea.vmem %s4, 26
    %v2462 = vld [vmem:[%s2461] sm:$0x1]
    %v2464 = vperm.slane %v2462, 0
    %v2474 = vunpack.c.l.b16 %v2453
    %v2475 = vunpack.c.l.b16 %v2454
    %v2476 = vunpack.c.l.b16 %v2455
    %v2477 = vunpack.c.l.b16 %v2456
    %v2478 = vunpack.c.l.b16 %v2457
    %v2479 = vunpack.c.l.b16 %v2458
    %v2480 = vunpack.c.l.b16 %v2459
    %v2481 = vunpack.c.l.b16 %v2460
    %v2482 = vpack.c.b16 %v2475, %v2474
    %v2483 = vpack.c.b16 %v2477, %v2476
    %v2484 = vpack.c.b16 %v2479, %v2478
    %v2485 = vpack.c.b16 %v2481, %v2480
    %v2491 = vsel %vm140, %v2451, 0
    %2493 = vmatpush.bf16.msra.mxu0 0
    %2494 = vmatpush.bf16.msra.mxu0 0
    %2495 = vmatpush.bf16.msra.mxu0 0
    %2496 = vmatpush.bf16.msra.mxu0 0
    %2497 = vmatpush.bf16.msra.mxu0 %v2485
    %2498 = vmatpush.bf16.msra.mxu0 %v2484
    %2499 = vmatpush.bf16.msra.mxu0 %v2483
    %2500 = vmatpush.bf16.msra.mxu0 %v2482
    %2501 = vmatmul.bf16.gmra.mxu0 %v2491
    %v2502 = vpop.f32.mrf.mxu0
    %v2503 = vadd.f32 %v2464, %v2502
    %v2504 = vpop.f32.mrf.mxu0
    %v2505 = vadd.f32 %v2464, %v2504
    %2506 = vdwg.mxu0
    %s2507 = scalar_lea.vmem %s5, 31
    %v2508 = vld [vmem:[%s2507] sm:$0x1]
    %v2510 = vperm.slane %v2508, 0
    %v2512 = vmul.f32 %v2503, %v2510
    %v2513 = vmul.f32 %v2505, %v2510
    %s2514 = scalar_lea.vmem %s6, 31
    %v2515 = vld [vmem:[%s2514] sm:$0x1]
    %v2517 = vperm.slane %v2515, 0
    %v2519 = vadd.f32 %v2512, %v2517
    %v2520 = vadd.f32 %v2513, %v2517
    %v2521 = vmax.f32 %v2519, 0.0
    %v2522 = vmax.f32 %v2520, 0.0
    %v2523 = vpack.c.bf16 %v2522, %v2521
    %s2524 = scalar_lea.vmem [#allocation5], 864
    %v2525 = vld [vmem:[%s2524] sm:$0xf]
    %v2526 = vld [vmem:[%s2524 + $0x4] sm:$0xf]
    %v2527 = vld [vmem:[%s2524 + $0x8] sm:$0xf]
    %v2528 = vld [vmem:[%s2524 + $0xc] sm:$0xf]
    %v2529 = vld [vmem:[%s2524 + $0x10] sm:$0xf]
    %v2530 = vld [vmem:[%s2524 + $0x14] sm:$0xf]
    %v2531 = vld [vmem:[%s2524 + $0x18] sm:$0xf]
    %v2532 = vld [vmem:[%s2524 + $0x1c] sm:$0xf]
    %s2533 = scalar_lea.vmem %s4, 27
    %v2534 = vld [vmem:[%s2533] sm:$0x1]
    %v2536 = vperm.slane %v2534, 0
    %v2546 = vunpack.c.l.b16 %v2525
    %v2547 = vunpack.c.l.b16 %v2526
    %v2548 = vunpack.c.l.b16 %v2527
    %v2549 = vunpack.c.l.b16 %v2528
    %v2550 = vunpack.c.l.b16 %v2529
    %v2551 = vunpack.c.l.b16 %v2530
    %v2552 = vunpack.c.l.b16 %v2531
    %v2553 = vunpack.c.l.b16 %v2532
    %v2554 = vpack.c.b16 %v2547, %v2546
    %v2555 = vpack.c.b16 %v2549, %v2548
    %v2556 = vpack.c.b16 %v2551, %v2550
    %v2557 = vpack.c.b16 %v2553, %v2552
    %v2563 = vsel %vm140, %v2523, 0
    %2565 = vmatpush.bf16.msra.mxu0 0
    %2566 = vmatpush.bf16.msra.mxu0 0
    %2567 = vmatpush.bf16.msra.mxu0 0
    %2568 = vmatpush.bf16.msra.mxu0 0
    %2569 = vmatpush.bf16.msra.mxu0 %v2557
    %2570 = vmatpush.bf16.msra.mxu0 %v2556
    %2571 = vmatpush.bf16.msra.mxu0 %v2555
    %2572 = vmatpush.bf16.msra.mxu0 %v2554
    %2573 = vmatmul.bf16.gmra.mxu0 %v2563
    %v2574 = vpop.f32.mrf.mxu0
    %v2575 = vadd.f32 %v2536, %v2574
    %v2576 = vpop.f32.mrf.mxu0
    %v2577 = vadd.f32 %v2536, %v2576
    %2578 = vdwg.mxu0
    %s2579 = scalar_lea.vmem %s5, 32
    %v2580 = vld [vmem:[%s2579] sm:$0x1]
    %v2582 = vperm.slane %v2580, 0
    %v2584 = vmul.f32 %v2575, %v2582
    %v2585 = vmul.f32 %v2577, %v2582
    %s2586 = scalar_lea.vmem %s6, 32
    %v2587 = vld [vmem:[%s2586] sm:$0x1]
    %v2589 = vperm.slane %v2587, 0
    %v2591 = vadd.f32 %v2584, %v2589
    %v2592 = vadd.f32 %v2585, %v2589
    %v2593 = vmax.f32 %v2591, 0.0
    %v2594 = vmax.f32 %v2592, 0.0
    %v2595 = vpack.c.bf16 %v2594, %v2593
    %s2596 = scalar_lea.vmem [#allocation5], 896
    %v2597 = vld [vmem:[%s2596] sm:$0xf]
    %v2598 = vld [vmem:[%s2596 + $0x4] sm:$0xf]
    %v2599 = vld [vmem:[%s2596 + $0x8] sm:$0xf]
    %v2600 = vld [vmem:[%s2596 + $0xc] sm:$0xf]
    %v2601 = vld [vmem:[%s2596 + $0x10] sm:$0xf]
    %v2602 = vld [vmem:[%s2596 + $0x14] sm:$0xf]
    %v2603 = vld [vmem:[%s2596 + $0x18] sm:$0xf]
    %v2604 = vld [vmem:[%s2596 + $0x1c] sm:$0xf]
    %s2605 = scalar_lea.vmem %s4, 28
    %v2606 = vld [vmem:[%s2605] sm:$0x1]
    %v2608 = vperm.slane %v2606, 0
    %v2618 = vunpack.c.l.b16 %v2597
    %v2619 = vunpack.c.l.b16 %v2598
    %v2620 = vunpack.c.l.b16 %v2599
    %v2621 = vunpack.c.l.b16 %v2600
    %v2622 = vunpack.c.l.b16 %v2601
    %v2623 = vunpack.c.l.b16 %v2602
    %v2624 = vunpack.c.l.b16 %v2603
    %v2625 = vunpack.c.l.b16 %v2604
    %v2626 = vpack.c.b16 %v2619, %v2618
    %v2627 = vpack.c.b16 %v2621, %v2620
    %v2628 = vpack.c.b16 %v2623, %v2622
    %v2629 = vpack.c.b16 %v2625, %v2624
    %v2635 = vsel %vm140, %v2595, 0
    %2637 = vmatpush.bf16.msra.mxu0 0
    %2638 = vmatpush.bf16.msra.mxu0 0
    %2639 = vmatpush.bf16.msra.mxu0 0
    %2640 = vmatpush.bf16.msra.mxu0 0
    %2641 = vmatpush.bf16.msra.mxu0 %v2629
    %2642 = vmatpush.bf16.msra.mxu0 %v2628
    %2643 = vmatpush.bf16.msra.mxu0 %v2627
    %2644 = vmatpush.bf16.msra.mxu0 %v2626
    %2645 = vmatmul.bf16.gmra.mxu0 %v2635
    %v2646 = vpop.f32.mrf.mxu0
    %v2647 = vadd.f32 %v2608, %v2646
    %v2648 = vpop.f32.mrf.mxu0
    %v2649 = vadd.f32 %v2608, %v2648
    %2650 = vdwg.mxu0
    %s2651 = scalar_lea.vmem %s5, 33
    %v2652 = vld [vmem:[%s2651] sm:$0x1]
    %v2654 = vperm.slane %v2652, 0
    %v2656 = vmul.f32 %v2647, %v2654
    %v2657 = vmul.f32 %v2649, %v2654
    %s2658 = scalar_lea.vmem %s6, 33
    %v2659 = vld [vmem:[%s2658] sm:$0x1]
    %v2661 = vperm.slane %v2659, 0
    %v2663 = vadd.f32 %v2656, %v2661
    %v2664 = vadd.f32 %v2657, %v2661
    %v2665 = vmax.f32 %v2663, 0.0
    %v2666 = vmax.f32 %v2664, 0.0
    %v2667 = vpack.c.bf16 %v2666, %v2665
    %s2668 = scalar_lea.vmem [#allocation5], 928
    %v2669 = vld [vmem:[%s2668] sm:$0xf]
    %v2670 = vld [vmem:[%s2668 + $0x4] sm:$0xf]
    %v2671 = vld [vmem:[%s2668 + $0x8] sm:$0xf]
    %v2672 = vld [vmem:[%s2668 + $0xc] sm:$0xf]
    %v2673 = vld [vmem:[%s2668 + $0x10] sm:$0xf]
    %v2674 = vld [vmem:[%s2668 + $0x14] sm:$0xf]
    %v2675 = vld [vmem:[%s2668 + $0x18] sm:$0xf]
    %v2676 = vld [vmem:[%s2668 + $0x1c] sm:$0xf]
    %s2677 = scalar_lea.vmem %s4, 29
    %v2678 = vld [vmem:[%s2677] sm:$0x1]
    %v2680 = vperm.slane %v2678, 0
    %v2690 = vunpack.c.l.b16 %v2669
    %v2691 = vunpack.c.l.b16 %v2670
    %v2692 = vunpack.c.l.b16 %v2671
    %v2693 = vunpack.c.l.b16 %v2672
    %v2694 = vunpack.c.l.b16 %v2673
    %v2695 = vunpack.c.l.b16 %v2674
    %v2696 = vunpack.c.l.b16 %v2675
    %v2697 = vunpack.c.l.b16 %v2676
    %v2698 = vpack.c.b16 %v2691, %v2690
    %v2699 = vpack.c.b16 %v2693, %v2692
    %v2700 = vpack.c.b16 %v2695, %v2694
    %v2701 = vpack.c.b16 %v2697, %v2696
    %v2707 = vsel %vm140, %v2667, 0
    %2709 = vmatpush.bf16.msra.mxu0 0
    %2710 = vmatpush.bf16.msra.mxu0 0
    %2711 = vmatpush.bf16.msra.mxu0 0
    %2712 = vmatpush.bf16.msra.mxu0 0
    %2713 = vmatpush.bf16.msra.mxu0 %v2701
    %2714 = vmatpush.bf16.msra.mxu0 %v2700
    %2715 = vmatpush.bf16.msra.mxu0 %v2699
    %2716 = vmatpush.bf16.msra.mxu0 %v2698
    %2717 = vmatmul.bf16.gmra.mxu0 %v2707
    %v2718 = vpop.f32.mrf.mxu0
    %v2719 = vadd.f32 %v2680, %v2718
    %v2720 = vpop.f32.mrf.mxu0
    %v2721 = vadd.f32 %v2680, %v2720
    %2722 = vdwg.mxu0
    %s2723 = scalar_lea.vmem %s5, 34
    %v2724 = vld [vmem:[%s2723] sm:$0x1]
    %v2726 = vperm.slane %v2724, 0
    %v2728 = vmul.f32 %v2719, %v2726
    %v2729 = vmul.f32 %v2721, %v2726
    %s2730 = scalar_lea.vmem %s6, 34
    %v2731 = vld [vmem:[%s2730] sm:$0x1]
    %v2733 = vperm.slane %v2731, 0
    %v2735 = vadd.f32 %v2728, %v2733
    %v2736 = vadd.f32 %v2729, %v2733
    %v2737 = vmax.f32 %v2735, 0.0
    %v2738 = vmax.f32 %v2736, 0.0
    %s2739 = scalar_lea.vmem %s5, 35
    %v2740 = vld [vmem:[%s2739] sm:$0x1]
    %v2742 = vperm.slane %v2740, 0
    %v2744 = vmul.f32 %v2737, %v2742
    %v2745 = vmul.f32 %v2738, %v2742
    %s2746 = scalar_lea.vmem %s6, 35
    %v2747 = vld [vmem:[%s2746] sm:$0x1]
    %v2749 = vperm.slane %v2747, 0
    %v2751 = vadd.f32 %v2744, %v2749
    %v2752 = vadd.f32 %v2745, %v2749
    %v2753 = vmax.f32 %v2751, 0.0
    %v2754 = vmax.f32 %v2752, 0.0
    %v2755 = vpack.c.bf16 %v2754, %v2753
    %s2756 = scalar_lea.vmem %s7, 192
    %v2757 = vld [vmem:[%s2756] sm:$0xf]
    %v2758 = vld [vmem:[%s2756 + $0x4] sm:$0xf]
    %v2759 = vld [vmem:[%s2756 + $0x8] sm:$0xf]
    %v2760 = vld [vmem:[%s2756 + $0xc] sm:$0xf]
    %v2761 = vld [vmem:[%s2756 + $0x10] sm:$0xf]
    %v2762 = vld [vmem:[%s2756 + $0x14] sm:$0xf]
    %v2763 = vld [vmem:[%s2756 + $0x18] sm:$0xf]
    %v2764 = vld [vmem:[%s2756 + $0x1c] sm:$0xf]
    %v2773 = vunpack.c.l.b16 %v2757
    %v2774 = vunpack.c.l.b16 %v2758
    %v2775 = vunpack.c.l.b16 %v2759
    %v2776 = vunpack.c.l.b16 %v2760
    %v2777 = vunpack.c.l.b16 %v2761
    %v2778 = vunpack.c.l.b16 %v2762
    %v2779 = vunpack.c.l.b16 %v2763
    %v2780 = vunpack.c.l.b16 %v2764
    %v2781 = vpack.c.b16 %v2774, %v2773
    %v2782 = vpack.c.b16 %v2776, %v2775
    %v2783 = vpack.c.b16 %v2778, %v2777
    %v2784 = vpack.c.b16 %v2780, %v2779
    %v2790 = vsel %vm140, %v2755, 0
    %2792 = vmatpush.bf16.msra.mxu0 0
    %2793 = vmatpush.bf16.msra.mxu0 0
    %2794 = vmatpush.bf16.msra.mxu0 0
    %2795 = vmatpush.bf16.msra.mxu0 0
    %2796 = vmatpush.bf16.msra.mxu0 %v2784
    %2797 = vmatpush.bf16.msra.mxu0 %v2783
    %2798 = vmatpush.bf16.msra.mxu0 %v2782
    %2799 = vmatpush.bf16.msra.mxu0 %v2781
    %2800 = vmatmul.bf16.gmra.mxu0 %v2790
    %v2801 = vpop.f32.mrf.mxu0
    %v2802 = vadd.f32 0.0, %v2801
    %v2803 = vpop.f32.mrf.mxu0
    %v2804 = vadd.f32 0.0, %v2803
    %2805 = vdwg.mxu0
    %v2806 = vadd.f32 %v2358, %v2802
    %v2807 = vadd.f32 %v2359, %v2804
    %s2808 = sld [smem:[#allocation2 + $0x6]]
    %s2809 = sadd.f32 %s2808, 1.0
    %v2810 = vstv %s2809
    %v2811 = vmul.f32 %v2810, %v2753
    %v2812 = vmul.f32 %v2810, %v2754
    %2813 = vmatpush.bf16.msra.mxu0 0
    %2814 = vmatpush.bf16.msra.mxu0 0
    %2815 = vmatpush.bf16.msra.mxu0 0
    %2816 = vmatpush.bf16.msra.mxu0 0
    %2817 = vmatpush.bf16.msra.mxu0 0
    %2818 = vmatpush.bf16.msra.mxu0 0
    %2819 = vmatpush.bf16.msra.mxu0 0
    %2820 = vmatpush.bf16.msra.mxu0 %v2755
    %2821 = vmatmul.bf16.gmra.mxu0 %v87
    %v2822 = vpop.f32.mrf.mxu0
    %v2823 = vadd.f32 %v2811, %v2822
    %v2824 = vpop.f32.mrf.mxu0
    %v2825 = vadd.f32 %v2812, %v2824
    %2826 = vdwg.mxu0
    %v2827 = vpack.c.bf16 %v2825, %v2823
    %s2828 = scalar_lea.vmem [#allocation5], 960
    %v2829 = vld [vmem:[%s2828] sm:$0xf]
    %v2830 = vld [vmem:[%s2828 + $0x4] sm:$0xf]
    %v2831 = vld [vmem:[%s2828 + $0x8] sm:$0xf]
    %v2832 = vld [vmem:[%s2828 + $0xc] sm:$0xf]
    %v2833 = vld [vmem:[%s2828 + $0x10] sm:$0xf]
    %v2834 = vld [vmem:[%s2828 + $0x14] sm:$0xf]
    %v2835 = vld [vmem:[%s2828 + $0x18] sm:$0xf]
    %v2836 = vld [vmem:[%s2828 + $0x1c] sm:$0xf]
    %s2837 = scalar_lea.vmem %s4, 30
    %v2838 = vld [vmem:[%s2837] sm:$0x1]
    %v2840 = vperm.slane %v2838, 0
    %v2850 = vunpack.c.l.b16 %v2829
    %v2851 = vunpack.c.l.b16 %v2830
    %v2852 = vunpack.c.l.b16 %v2831
    %v2853 = vunpack.c.l.b16 %v2832
    %v2854 = vunpack.c.l.b16 %v2833
    %v2855 = vunpack.c.l.b16 %v2834
    %v2856 = vunpack.c.l.b16 %v2835
    %v2857 = vunpack.c.l.b16 %v2836
    %v2858 = vpack.c.b16 %v2851, %v2850
    %v2859 = vpack.c.b16 %v2853, %v2852
    %v2860 = vpack.c.b16 %v2855, %v2854
    %v2861 = vpack.c.b16 %v2857, %v2856
    %v2867 = vsel %vm140, %v2827, 0
    %2869 = vmatpush.bf16.msra.mxu0 0
    %2870 = vmatpush.bf16.msra.mxu0 0
    %2871 = vmatpush.bf16.msra.mxu0 0
    %2872 = vmatpush.bf16.msra.mxu0 0
    %2873 = vmatpush.bf16.msra.mxu0 %v2861
    %2874 = vmatpush.bf16.msra.mxu0 %v2860
    %2875 = vmatpush.bf16.msra.mxu0 %v2859
    %2876 = vmatpush.bf16.msra.mxu0 %v2858
    %2877 = vmatmul.bf16.gmra.mxu0 %v2867
    %v2878 = vpop.f32.mrf.mxu0
    %v2879 = vadd.f32 %v2840, %v2878
    %v2880 = vpop.f32.mrf.mxu0
    %v2881 = vadd.f32 %v2840, %v2880
    %2882 = vdwg.mxu0
    %s2883 = scalar_lea.vmem %s5, 36
    %v2884 = vld [vmem:[%s2883] sm:$0x1]
    %v2886 = vperm.slane %v2884, 0
    %v2888 = vmul.f32 %v2879, %v2886
    %v2889 = vmul.f32 %v2881, %v2886
    %s2890 = scalar_lea.vmem %s6, 36
    %v2891 = vld [vmem:[%s2890] sm:$0x1]
    %v2893 = vperm.slane %v2891, 0
    %v2895 = vadd.f32 %v2888, %v2893
    %v2896 = vadd.f32 %v2889, %v2893
    %v2897 = vmax.f32 %v2895, 0.0
    %v2898 = vmax.f32 %v2896, 0.0
    %v2899 = vpack.c.bf16 %v2898, %v2897
    %s2900 = scalar_lea.vmem [#allocation5], 992
    %v2901 = vld [vmem:[%s2900] sm:$0xf]
    %v2902 = vld [vmem:[%s2900 + $0x4] sm:$0xf]
    %v2903 = vld [vmem:[%s2900 + $0x8] sm:$0xf]
    %v2904 = vld [vmem:[%s2900 + $0xc] sm:$0xf]
    %v2905 = vld [vmem:[%s2900 + $0x10] sm:$0xf]
    %v2906 = vld [vmem:[%s2900 + $0x14] sm:$0xf]
    %v2907 = vld [vmem:[%s2900 + $0x18] sm:$0xf]
    %v2908 = vld [vmem:[%s2900 + $0x1c] sm:$0xf]
    %s2909 = scalar_lea.vmem %s4, 31
    %v2910 = vld [vmem:[%s2909] sm:$0x1]
    %v2912 = vperm.slane %v2910, 0
    %v2922 = vunpack.c.l.b16 %v2901
    %v2923 = vunpack.c.l.b16 %v2902
    %v2924 = vunpack.c.l.b16 %v2903
    %v2925 = vunpack.c.l.b16 %v2904
    %v2926 = vunpack.c.l.b16 %v2905
    %v2927 = vunpack.c.l.b16 %v2906
    %v2928 = vunpack.c.l.b16 %v2907
    %v2929 = vunpack.c.l.b16 %v2908
    %v2930 = vpack.c.b16 %v2923, %v2922
    %v2931 = vpack.c.b16 %v2925, %v2924
    %v2932 = vpack.c.b16 %v2927, %v2926
    %v2933 = vpack.c.b16 %v2929, %v2928
    %v2939 = vsel %vm140, %v2899, 0
    %2941 = vmatpush.bf16.msra.mxu0 0
    %2942 = vmatpush.bf16.msra.mxu0 0
    %2943 = vmatpush.bf16.msra.mxu0 0
    %2944 = vmatpush.bf16.msra.mxu0 0
    %2945 = vmatpush.bf16.msra.mxu0 %v2933
    %2946 = vmatpush.bf16.msra.mxu0 %v2932
    %2947 = vmatpush.bf16.msra.mxu0 %v2931
    %2948 = vmatpush.bf16.msra.mxu0 %v2930
    %2949 = vmatmul.bf16.gmra.mxu0 %v2939
    %v2950 = vpop.f32.mrf.mxu0
    %v2951 = vadd.f32 %v2912, %v2950
    %v2952 = vpop.f32.mrf.mxu0
    %v2953 = vadd.f32 %v2912, %v2952
    %2954 = vdwg.mxu0
    %s2955 = scalar_lea.vmem %s5, 37
    %v2956 = vld [vmem:[%s2955] sm:$0x1]
    %v2958 = vperm.slane %v2956, 0
    %v2960 = vmul.f32 %v2951, %v2958
    %v2961 = vmul.f32 %v2953, %v2958
    %s2962 = scalar_lea.vmem %s6, 37
    %v2963 = vld [vmem:[%s2962] sm:$0x1]
    %v2965 = vperm.slane %v2963, 0
    %v2967 = vadd.f32 %v2960, %v2965
    %v2968 = vadd.f32 %v2961, %v2965
    %v2969 = vmax.f32 %v2967, 0.0
    %v2970 = vmax.f32 %v2968, 0.0
    %v2971 = vpack.c.bf16 %v2970, %v2969
    %s2972 = scalar_lea.vmem [#allocation5], 1024
    %v2973 = vld [vmem:[%s2972] sm:$0xf]
    %v2974 = vld [vmem:[%s2972 + $0x4] sm:$0xf]
    %v2975 = vld [vmem:[%s2972 + $0x8] sm:$0xf]
    %v2976 = vld [vmem:[%s2972 + $0xc] sm:$0xf]
    %v2977 = vld [vmem:[%s2972 + $0x10] sm:$0xf]
    %v2978 = vld [vmem:[%s2972 + $0x14] sm:$0xf]
    %v2979 = vld [vmem:[%s2972 + $0x18] sm:$0xf]
    %v2980 = vld [vmem:[%s2972 + $0x1c] sm:$0xf]
    %s2981 = scalar_lea.vmem %s4, 32
    %v2982 = vld [vmem:[%s2981] sm:$0x1]
    %v2984 = vperm.slane %v2982, 0
    %v2994 = vunpack.c.l.b16 %v2973
    %v2995 = vunpack.c.l.b16 %v2974
    %v2996 = vunpack.c.l.b16 %v2975
    %v2997 = vunpack.c.l.b16 %v2976
    %v2998 = vunpack.c.l.b16 %v2977
    %v2999 = vunpack.c.l.b16 %v2978
    %v3000 = vunpack.c.l.b16 %v2979
    %v3001 = vunpack.c.l.b16 %v2980
    %v3002 = vpack.c.b16 %v2995, %v2994
    %v3003 = vpack.c.b16 %v2997, %v2996
    %v3004 = vpack.c.b16 %v2999, %v2998
    %v3005 = vpack.c.b16 %v3001, %v3000
    %v3011 = vsel %vm140, %v2971, 0
    %3013 = vmatpush.bf16.msra.mxu0 0
    %3014 = vmatpush.bf16.msra.mxu0 0
    %3015 = vmatpush.bf16.msra.mxu0 0
    %3016 = vmatpush.bf16.msra.mxu0 0
    %3017 = vmatpush.bf16.msra.mxu0 %v3005
    %3018 = vmatpush.bf16.msra.mxu0 %v3004
    %3019 = vmatpush.bf16.msra.mxu0 %v3003
    %3020 = vmatpush.bf16.msra.mxu0 %v3002
    %3021 = vmatmul.bf16.gmra.mxu0 %v3011
    %v3022 = vpop.f32.mrf.mxu0
    %v3023 = vadd.f32 %v2984, %v3022
    %v3024 = vpop.f32.mrf.mxu0
    %v3025 = vadd.f32 %v2984, %v3024
    %3026 = vdwg.mxu0
    %s3027 = scalar_lea.vmem %s5, 38
    %v3028 = vld [vmem:[%s3027] sm:$0x1]
    %v3030 = vperm.slane %v3028, 0
    %v3032 = vmul.f32 %v3023, %v3030
    %v3033 = vmul.f32 %v3025, %v3030
    %s3034 = scalar_lea.vmem %s6, 38
    %v3035 = vld [vmem:[%s3034] sm:$0x1]
    %v3037 = vperm.slane %v3035, 0
    %v3039 = vadd.f32 %v3032, %v3037
    %v3040 = vadd.f32 %v3033, %v3037
    %v3041 = vmax.f32 %v3039, 0.0
    %v3042 = vmax.f32 %v3040, 0.0
    %v3043 = vpack.c.bf16 %v3042, %v3041
    %s3044 = scalar_lea.vmem [#allocation5], 1056
    %v3045 = vld [vmem:[%s3044] sm:$0xf]
    %v3046 = vld [vmem:[%s3044 + $0x4] sm:$0xf]
    %v3047 = vld [vmem:[%s3044 + $0x8] sm:$0xf]
    %v3048 = vld [vmem:[%s3044 + $0xc] sm:$0xf]
    %v3049 = vld [vmem:[%s3044 + $0x10] sm:$0xf]
    %v3050 = vld [vmem:[%s3044 + $0x14] sm:$0xf]
    %v3051 = vld [vmem:[%s3044 + $0x18] sm:$0xf]
    %v3052 = vld [vmem:[%s3044 + $0x1c] sm:$0xf]
    %s3053 = scalar_lea.vmem %s4, 33
    %v3054 = vld [vmem:[%s3053] sm:$0x1]
    %v3056 = vperm.slane %v3054, 0
    %v3066 = vunpack.c.l.b16 %v3045
    %v3067 = vunpack.c.l.b16 %v3046
    %v3068 = vunpack.c.l.b16 %v3047
    %v3069 = vunpack.c.l.b16 %v3048
    %v3070 = vunpack.c.l.b16 %v3049
    %v3071 = vunpack.c.l.b16 %v3050
    %v3072 = vunpack.c.l.b16 %v3051
    %v3073 = vunpack.c.l.b16 %v3052
    %v3074 = vpack.c.b16 %v3067, %v3066
    %v3075 = vpack.c.b16 %v3069, %v3068
    %v3076 = vpack.c.b16 %v3071, %v3070
    %v3077 = vpack.c.b16 %v3073, %v3072
    %v3083 = vsel %vm140, %v3043, 0
    %3085 = vmatpush.bf16.msra.mxu0 0
    %3086 = vmatpush.bf16.msra.mxu0 0
    %3087 = vmatpush.bf16.msra.mxu0 0
    %3088 = vmatpush.bf16.msra.mxu0 0
    %3089 = vmatpush.bf16.msra.mxu0 %v3077
    %3090 = vmatpush.bf16.msra.mxu0 %v3076
    %3091 = vmatpush.bf16.msra.mxu0 %v3075
    %3092 = vmatpush.bf16.msra.mxu0 %v3074
    %3093 = vmatmul.bf16.gmra.mxu0 %v3083
    %v3094 = vpop.f32.mrf.mxu0
    %v3095 = vadd.f32 %v3056, %v3094
    %v3096 = vpop.f32.mrf.mxu0
    %v3097 = vadd.f32 %v3056, %v3096
    %3098 = vdwg.mxu0
    %s3099 = scalar_lea.vmem %s5, 39
    %v3100 = vld [vmem:[%s3099] sm:$0x1]
    %v3102 = vperm.slane %v3100, 0
    %v3104 = vmul.f32 %v3095, %v3102
    %v3105 = vmul.f32 %v3097, %v3102
    %s3106 = scalar_lea.vmem %s6, 39
    %v3107 = vld [vmem:[%s3106] sm:$0x1]
    %v3109 = vperm.slane %v3107, 0
    %v3111 = vadd.f32 %v3104, %v3109
    %v3112 = vadd.f32 %v3105, %v3109
    %v3113 = vmax.f32 %v3111, 0.0
    %v3114 = vmax.f32 %v3112, 0.0
    %v3115 = vpack.c.bf16 %v3114, %v3113
    %s3116 = scalar_lea.vmem [#allocation5], 1088
    %v3117 = vld [vmem:[%s3116] sm:$0xf]
    %v3118 = vld [vmem:[%s3116 + $0x4] sm:$0xf]
    %v3119 = vld [vmem:[%s3116 + $0x8] sm:$0xf]
    %v3120 = vld [vmem:[%s3116 + $0xc] sm:$0xf]
    %v3121 = vld [vmem:[%s3116 + $0x10] sm:$0xf]
    %v3122 = vld [vmem:[%s3116 + $0x14] sm:$0xf]
    %v3123 = vld [vmem:[%s3116 + $0x18] sm:$0xf]
    %v3124 = vld [vmem:[%s3116 + $0x1c] sm:$0xf]
    %s3125 = scalar_lea.vmem %s4, 34
    %v3126 = vld [vmem:[%s3125] sm:$0x1]
    %v3128 = vperm.slane %v3126, 0
    %v3138 = vunpack.c.l.b16 %v3117
    %v3139 = vunpack.c.l.b16 %v3118
    %v3140 = vunpack.c.l.b16 %v3119
    %v3141 = vunpack.c.l.b16 %v3120
    %v3142 = vunpack.c.l.b16 %v3121
    %v3143 = vunpack.c.l.b16 %v3122
    %v3144 = vunpack.c.l.b16 %v3123
    %v3145 = vunpack.c.l.b16 %v3124
    %v3146 = vpack.c.b16 %v3139, %v3138
    %v3147 = vpack.c.b16 %v3141, %v3140
    %v3148 = vpack.c.b16 %v3143, %v3142
    %v3149 = vpack.c.b16 %v3145, %v3144
    %v3155 = vsel %vm140, %v3115, 0
    %3157 = vmatpush.bf16.msra.mxu0 0
    %3158 = vmatpush.bf16.msra.mxu0 0
    %3159 = vmatpush.bf16.msra.mxu0 0
    %3160 = vmatpush.bf16.msra.mxu0 0
    %3161 = vmatpush.bf16.msra.mxu0 %v3149
    %3162 = vmatpush.bf16.msra.mxu0 %v3148
    %3163 = vmatpush.bf16.msra.mxu0 %v3147
    %3164 = vmatpush.bf16.msra.mxu0 %v3146
    %3165 = vmatmul.bf16.gmra.mxu0 %v3155
    %v3166 = vpop.f32.mrf.mxu0
    %v3167 = vadd.f32 %v3128, %v3166
    %v3168 = vpop.f32.mrf.mxu0
    %v3169 = vadd.f32 %v3128, %v3168
    %3170 = vdwg.mxu0
    %s3171 = scalar_lea.vmem %s5, 40
    %v3172 = vld [vmem:[%s3171] sm:$0x1]
    %v3174 = vperm.slane %v3172, 0
    %v3176 = vmul.f32 %v3167, %v3174
    %v3177 = vmul.f32 %v3169, %v3174
    %s3178 = scalar_lea.vmem %s6, 40
    %v3179 = vld [vmem:[%s3178] sm:$0x1]
    %v3181 = vperm.slane %v3179, 0
    %v3183 = vadd.f32 %v3176, %v3181
    %v3184 = vadd.f32 %v3177, %v3181
    %v3185 = vmax.f32 %v3183, 0.0
    %v3186 = vmax.f32 %v3184, 0.0
    %s3187 = scalar_lea.vmem %s5, 41
    %v3188 = vld [vmem:[%s3187] sm:$0x1]
    %v3190 = vperm.slane %v3188, 0
    %v3192 = vmul.f32 %v3185, %v3190
    %v3193 = vmul.f32 %v3186, %v3190
    %s3194 = scalar_lea.vmem %s6, 41
    %v3195 = vld [vmem:[%s3194] sm:$0x1]
    %v3197 = vperm.slane %v3195, 0
    %v3199 = vadd.f32 %v3192, %v3197
    %v3200 = vadd.f32 %v3193, %v3197
    %v3201 = vmax.f32 %v3199, 0.0
    %v3202 = vmax.f32 %v3200, 0.0
    %v3203 = vpack.c.bf16 %v3202, %v3201
    %s3204 = scalar_lea.vmem %s7, 224
    %v3205 = vld [vmem:[%s3204] sm:$0xf]
    %v3206 = vld [vmem:[%s3204 + $0x4] sm:$0xf]
    %v3207 = vld [vmem:[%s3204 + $0x8] sm:$0xf]
    %v3208 = vld [vmem:[%s3204 + $0xc] sm:$0xf]
    %v3209 = vld [vmem:[%s3204 + $0x10] sm:$0xf]
    %v3210 = vld [vmem:[%s3204 + $0x14] sm:$0xf]
    %v3211 = vld [vmem:[%s3204 + $0x18] sm:$0xf]
    %v3212 = vld [vmem:[%s3204 + $0x1c] sm:$0xf]
    %v3221 = vunpack.c.l.b16 %v3205
    %v3222 = vunpack.c.l.b16 %v3206
    %v3223 = vunpack.c.l.b16 %v3207
    %v3224 = vunpack.c.l.b16 %v3208
    %v3225 = vunpack.c.l.b16 %v3209
    %v3226 = vunpack.c.l.b16 %v3210
    %v3227 = vunpack.c.l.b16 %v3211
    %v3228 = vunpack.c.l.b16 %v3212
    %v3229 = vpack.c.b16 %v3222, %v3221
    %v3230 = vpack.c.b16 %v3224, %v3223
    %v3231 = vpack.c.b16 %v3226, %v3225
    %v3232 = vpack.c.b16 %v3228, %v3227
    %v3238 = vsel %vm140, %v3203, 0
    %3240 = vmatpush.bf16.msra.mxu0 0
    %3241 = vmatpush.bf16.msra.mxu0 0
    %3242 = vmatpush.bf16.msra.mxu0 0
    %3243 = vmatpush.bf16.msra.mxu0 0
    %3244 = vmatpush.bf16.msra.mxu0 %v3232
    %3245 = vmatpush.bf16.msra.mxu0 %v3231
    %3246 = vmatpush.bf16.msra.mxu0 %v3230
    %3247 = vmatpush.bf16.msra.mxu0 %v3229
    %3248 = vmatmul.bf16.gmra.mxu0 %v3238
    %v3249 = vpop.f32.mrf.mxu0
    %v3250 = vadd.f32 0.0, %v3249
    %v3251 = vpop.f32.mrf.mxu0
    %v3252 = vadd.f32 0.0, %v3251
    %3253 = vdwg.mxu0
    %v3254 = vadd.f32 %v2806, %v3250
    %v3255 = vadd.f32 %v2807, %v3252
    %s3256 = sld [smem:[#allocation2 + $0x7]]
    %s3257 = sadd.f32 %s3256, 1.0
    %v3258 = vstv %s3257
    %v3259 = vmul.f32 %v3258, %v3201
    %v3260 = vmul.f32 %v3258, %v3202
    %3261 = vmatpush.bf16.msra.mxu0 0
    %3262 = vmatpush.bf16.msra.mxu0 0
    %3263 = vmatpush.bf16.msra.mxu0 0
    %3264 = vmatpush.bf16.msra.mxu0 0
    %3265 = vmatpush.bf16.msra.mxu0 0
    %3266 = vmatpush.bf16.msra.mxu0 0
    %3267 = vmatpush.bf16.msra.mxu0 0
    %3268 = vmatpush.bf16.msra.mxu0 %v3203
    %3269 = vmatmul.bf16.gmra.mxu0 %v87
    %v3270 = vpop.f32.mrf.mxu0
    %v3271 = vadd.f32 %v3259, %v3270
    %v3272 = vpop.f32.mrf.mxu0
    %v3273 = vadd.f32 %v3260, %v3272
    %3274 = vdwg.mxu0
    %v3275 = vpack.c.bf16 %v3273, %v3271
    %s3276 = scalar_lea.vmem [#allocation5], 1120
    %v3277 = vld [vmem:[%s3276] sm:$0xf]
    %v3278 = vld [vmem:[%s3276 + $0x4] sm:$0xf]
    %v3279 = vld [vmem:[%s3276 + $0x8] sm:$0xf]
    %v3280 = vld [vmem:[%s3276 + $0xc] sm:$0xf]
    %v3281 = vld [vmem:[%s3276 + $0x10] sm:$0xf]
    %v3282 = vld [vmem:[%s3276 + $0x14] sm:$0xf]
    %v3283 = vld [vmem:[%s3276 + $0x18] sm:$0xf]
    %v3284 = vld [vmem:[%s3276 + $0x1c] sm:$0xf]
    %s3285 = scalar_lea.vmem %s4, 35
    %v3286 = vld [vmem:[%s3285] sm:$0x1]
    %v3288 = vperm.slane %v3286, 0
    %v3298 = vunpack.c.l.b16 %v3277
    %v3299 = vunpack.c.l.b16 %v3278
    %v3300 = vunpack.c.l.b16 %v3279
    %v3301 = vunpack.c.l.b16 %v3280
    %v3302 = vunpack.c.l.b16 %v3281
    %v3303 = vunpack.c.l.b16 %v3282
    %v3304 = vunpack.c.l.b16 %v3283
    %v3305 = vunpack.c.l.b16 %v3284
    %v3306 = vpack.c.b16 %v3299, %v3298
    %v3307 = vpack.c.b16 %v3301, %v3300
    %v3308 = vpack.c.b16 %v3303, %v3302
    %v3309 = vpack.c.b16 %v3305, %v3304
    %v3315 = vsel %vm140, %v3275, 0
    %3317 = vmatpush.bf16.msra.mxu0 0
    %3318 = vmatpush.bf16.msra.mxu0 0
    %3319 = vmatpush.bf16.msra.mxu0 0
    %3320 = vmatpush.bf16.msra.mxu0 0
    %3321 = vmatpush.bf16.msra.mxu0 %v3309
    %3322 = vmatpush.bf16.msra.mxu0 %v3308
    %3323 = vmatpush.bf16.msra.mxu0 %v3307
    %3324 = vmatpush.bf16.msra.mxu0 %v3306
    %3325 = vmatmul.bf16.gmra.mxu0 %v3315
    %v3326 = vpop.f32.mrf.mxu0
    %v3327 = vadd.f32 %v3288, %v3326
    %v3328 = vpop.f32.mrf.mxu0
    %v3329 = vadd.f32 %v3288, %v3328
    %3330 = vdwg.mxu0
    %s3331 = scalar_lea.vmem %s5, 42
    %v3332 = vld [vmem:[%s3331] sm:$0x1]
    %v3334 = vperm.slane %v3332, 0
    %v3336 = vmul.f32 %v3327, %v3334
    %v3337 = vmul.f32 %v3329, %v3334
    %s3338 = scalar_lea.vmem %s6, 42
    %v3339 = vld [vmem:[%s3338] sm:$0x1]
    %v3341 = vperm.slane %v3339, 0
    %v3343 = vadd.f32 %v3336, %v3341
    %v3344 = vadd.f32 %v3337, %v3341
    %v3345 = vmax.f32 %v3343, 0.0
    %v3346 = vmax.f32 %v3344, 0.0
    %v3347 = vpack.c.bf16 %v3346, %v3345
    %s3348 = scalar_lea.vmem [#allocation5], 1152
    %v3349 = vld [vmem:[%s3348] sm:$0xf]
    %v3350 = vld [vmem:[%s3348 + $0x4] sm:$0xf]
    %v3351 = vld [vmem:[%s3348 + $0x8] sm:$0xf]
    %v3352 = vld [vmem:[%s3348 + $0xc] sm:$0xf]
    %v3353 = vld [vmem:[%s3348 + $0x10] sm:$0xf]
    %v3354 = vld [vmem:[%s3348 + $0x14] sm:$0xf]
    %v3355 = vld [vmem:[%s3348 + $0x18] sm:$0xf]
    %v3356 = vld [vmem:[%s3348 + $0x1c] sm:$0xf]
    %s3357 = scalar_lea.vmem %s4, 36
    %v3358 = vld [vmem:[%s3357] sm:$0x1]
    %v3360 = vperm.slane %v3358, 0
    %v3370 = vunpack.c.l.b16 %v3349
    %v3371 = vunpack.c.l.b16 %v3350
    %v3372 = vunpack.c.l.b16 %v3351
    %v3373 = vunpack.c.l.b16 %v3352
    %v3374 = vunpack.c.l.b16 %v3353
    %v3375 = vunpack.c.l.b16 %v3354
    %v3376 = vunpack.c.l.b16 %v3355
    %v3377 = vunpack.c.l.b16 %v3356
    %v3378 = vpack.c.b16 %v3371, %v3370
    %v3379 = vpack.c.b16 %v3373, %v3372
    %v3380 = vpack.c.b16 %v3375, %v3374
    %v3381 = vpack.c.b16 %v3377, %v3376
    %v3387 = vsel %vm140, %v3347, 0
    %3389 = vmatpush.bf16.msra.mxu0 0
    %3390 = vmatpush.bf16.msra.mxu0 0
    %3391 = vmatpush.bf16.msra.mxu0 0
    %3392 = vmatpush.bf16.msra.mxu0 0
    %3393 = vmatpush.bf16.msra.mxu0 %v3381
    %3394 = vmatpush.bf16.msra.mxu0 %v3380
    %3395 = vmatpush.bf16.msra.mxu0 %v3379
    %3396 = vmatpush.bf16.msra.mxu0 %v3378
    %3397 = vmatmul.bf16.gmra.mxu0 %v3387
    %v3398 = vpop.f32.mrf.mxu0
    %v3399 = vadd.f32 %v3360, %v3398
    %v3400 = vpop.f32.mrf.mxu0
    %v3401 = vadd.f32 %v3360, %v3400
    %3402 = vdwg.mxu0
    %s3403 = scalar_lea.vmem %s5, 43
    %v3404 = vld [vmem:[%s3403] sm:$0x1]
    %v3406 = vperm.slane %v3404, 0
    %v3408 = vmul.f32 %v3399, %v3406
    %v3409 = vmul.f32 %v3401, %v3406
    %s3410 = scalar_lea.vmem %s6, 43
    %v3411 = vld [vmem:[%s3410] sm:$0x1]
    %v3413 = vperm.slane %v3411, 0
    %v3415 = vadd.f32 %v3408, %v3413
    %v3416 = vadd.f32 %v3409, %v3413
    %v3417 = vmax.f32 %v3415, 0.0
    %v3418 = vmax.f32 %v3416, 0.0
    %v3419 = vpack.c.bf16 %v3418, %v3417
    %s3420 = scalar_lea.vmem [#allocation5], 1184
    %v3421 = vld [vmem:[%s3420] sm:$0xf]
    %v3422 = vld [vmem:[%s3420 + $0x4] sm:$0xf]
    %v3423 = vld [vmem:[%s3420 + $0x8] sm:$0xf]
    %v3424 = vld [vmem:[%s3420 + $0xc] sm:$0xf]
    %v3425 = vld [vmem:[%s3420 + $0x10] sm:$0xf]
    %v3426 = vld [vmem:[%s3420 + $0x14] sm:$0xf]
    %v3427 = vld [vmem:[%s3420 + $0x18] sm:$0xf]
    %v3428 = vld [vmem:[%s3420 + $0x1c] sm:$0xf]
    %s3429 = scalar_lea.vmem %s4, 37
    %v3430 = vld [vmem:[%s3429] sm:$0x1]
    %v3432 = vperm.slane %v3430, 0
    %v3442 = vunpack.c.l.b16 %v3421
    %v3443 = vunpack.c.l.b16 %v3422
    %v3444 = vunpack.c.l.b16 %v3423
    %v3445 = vunpack.c.l.b16 %v3424
    %v3446 = vunpack.c.l.b16 %v3425
    %v3447 = vunpack.c.l.b16 %v3426
    %v3448 = vunpack.c.l.b16 %v3427
    %v3449 = vunpack.c.l.b16 %v3428
    %v3450 = vpack.c.b16 %v3443, %v3442
    %v3451 = vpack.c.b16 %v3445, %v3444
    %v3452 = vpack.c.b16 %v3447, %v3446
    %v3453 = vpack.c.b16 %v3449, %v3448
    %v3459 = vsel %vm140, %v3419, 0
    %3461 = vmatpush.bf16.msra.mxu0 0
    %3462 = vmatpush.bf16.msra.mxu0 0
    %3463 = vmatpush.bf16.msra.mxu0 0
    %3464 = vmatpush.bf16.msra.mxu0 0
    %3465 = vmatpush.bf16.msra.mxu0 %v3453
    %3466 = vmatpush.bf16.msra.mxu0 %v3452
    %3467 = vmatpush.bf16.msra.mxu0 %v3451
    %3468 = vmatpush.bf16.msra.mxu0 %v3450
    %3469 = vmatmul.bf16.gmra.mxu0 %v3459
    %v3470 = vpop.f32.mrf.mxu0
    %v3471 = vadd.f32 %v3432, %v3470
    %v3472 = vpop.f32.mrf.mxu0
    %v3473 = vadd.f32 %v3432, %v3472
    %3474 = vdwg.mxu0
    %s3475 = scalar_lea.vmem %s5, 44
    %v3476 = vld [vmem:[%s3475] sm:$0x1]
    %v3478 = vperm.slane %v3476, 0
    %v3480 = vmul.f32 %v3471, %v3478
    %v3481 = vmul.f32 %v3473, %v3478
    %s3482 = scalar_lea.vmem %s6, 44
    %v3483 = vld [vmem:[%s3482] sm:$0x1]
    %v3485 = vperm.slane %v3483, 0
    %v3487 = vadd.f32 %v3480, %v3485
    %v3488 = vadd.f32 %v3481, %v3485
    %v3489 = vmax.f32 %v3487, 0.0
    %v3490 = vmax.f32 %v3488, 0.0
    %v3491 = vpack.c.bf16 %v3490, %v3489
    %s3492 = scalar_lea.vmem [#allocation5], 1216
    %v3493 = vld [vmem:[%s3492] sm:$0xf]
    %v3494 = vld [vmem:[%s3492 + $0x4] sm:$0xf]
    %v3495 = vld [vmem:[%s3492 + $0x8] sm:$0xf]
    %v3496 = vld [vmem:[%s3492 + $0xc] sm:$0xf]
    %v3497 = vld [vmem:[%s3492 + $0x10] sm:$0xf]
    %v3498 = vld [vmem:[%s3492 + $0x14] sm:$0xf]
    %v3499 = vld [vmem:[%s3492 + $0x18] sm:$0xf]
    %v3500 = vld [vmem:[%s3492 + $0x1c] sm:$0xf]
    %s3501 = scalar_lea.vmem %s4, 38
    %v3502 = vld [vmem:[%s3501] sm:$0x1]
    %v3504 = vperm.slane %v3502, 0
    %v3514 = vunpack.c.l.b16 %v3493
    %v3515 = vunpack.c.l.b16 %v3494
    %v3516 = vunpack.c.l.b16 %v3495
    %v3517 = vunpack.c.l.b16 %v3496
    %v3518 = vunpack.c.l.b16 %v3497
    %v3519 = vunpack.c.l.b16 %v3498
    %v3520 = vunpack.c.l.b16 %v3499
    %v3521 = vunpack.c.l.b16 %v3500
    %v3522 = vpack.c.b16 %v3515, %v3514
    %v3523 = vpack.c.b16 %v3517, %v3516
    %v3524 = vpack.c.b16 %v3519, %v3518
    %v3525 = vpack.c.b16 %v3521, %v3520
    %v3531 = vsel %vm140, %v3491, 0
    %3533 = vmatpush.bf16.msra.mxu0 0
    %3534 = vmatpush.bf16.msra.mxu0 0
    %3535 = vmatpush.bf16.msra.mxu0 0
    %3536 = vmatpush.bf16.msra.mxu0 0
    %3537 = vmatpush.bf16.msra.mxu0 %v3525
    %3538 = vmatpush.bf16.msra.mxu0 %v3524
    %3539 = vmatpush.bf16.msra.mxu0 %v3523
    %3540 = vmatpush.bf16.msra.mxu0 %v3522
    %3541 = vmatmul.bf16.gmra.mxu0 %v3531
    %v3542 = vpop.f32.mrf.mxu0
    %v3543 = vadd.f32 %v3504, %v3542
    %v3544 = vpop.f32.mrf.mxu0
    %v3545 = vadd.f32 %v3504, %v3544
    %3546 = vdwg.mxu0
    %s3547 = scalar_lea.vmem %s5, 45
    %v3548 = vld [vmem:[%s3547] sm:$0x1]
    %v3550 = vperm.slane %v3548, 0
    %v3552 = vmul.f32 %v3543, %v3550
    %v3553 = vmul.f32 %v3545, %v3550
    %s3554 = scalar_lea.vmem %s6, 45
    %v3555 = vld [vmem:[%s3554] sm:$0x1]
    %v3557 = vperm.slane %v3555, 0
    %v3559 = vadd.f32 %v3552, %v3557
    %v3560 = vadd.f32 %v3553, %v3557
    %v3561 = vmax.f32 %v3559, 0.0
    %v3562 = vmax.f32 %v3560, 0.0
    %v3563 = vpack.c.bf16 %v3562, %v3561
    %s3564 = scalar_lea.vmem [#allocation5], 1248
    %v3565 = vld [vmem:[%s3564] sm:$0xf]
    %v3566 = vld [vmem:[%s3564 + $0x4] sm:$0xf]
    %v3567 = vld [vmem:[%s3564 + $0x8] sm:$0xf]
    %v3568 = vld [vmem:[%s3564 + $0xc] sm:$0xf]
    %v3569 = vld [vmem:[%s3564 + $0x10] sm:$0xf]
    %v3570 = vld [vmem:[%s3564 + $0x14] sm:$0xf]
    %v3571 = vld [vmem:[%s3564 + $0x18] sm:$0xf]
    %v3572 = vld [vmem:[%s3564 + $0x1c] sm:$0xf]
    %s3573 = scalar_lea.vmem %s4, 39
    %v3574 = vld [vmem:[%s3573] sm:$0x1]
    %v3576 = vperm.slane %v3574, 0
    %v3586 = vunpack.c.l.b16 %v3565
    %v3587 = vunpack.c.l.b16 %v3566
    %v3588 = vunpack.c.l.b16 %v3567
    %v3589 = vunpack.c.l.b16 %v3568
    %v3590 = vunpack.c.l.b16 %v3569
    %v3591 = vunpack.c.l.b16 %v3570
    %v3592 = vunpack.c.l.b16 %v3571
    %v3593 = vunpack.c.l.b16 %v3572
    %v3594 = vpack.c.b16 %v3587, %v3586
    %v3595 = vpack.c.b16 %v3589, %v3588
    %v3596 = vpack.c.b16 %v3591, %v3590
    %v3597 = vpack.c.b16 %v3593, %v3592
    %v3603 = vsel %vm140, %v3563, 0
    %3605 = vmatpush.bf16.msra.mxu0 0
    %3606 = vmatpush.bf16.msra.mxu0 0
    %3607 = vmatpush.bf16.msra.mxu0 0
    %3608 = vmatpush.bf16.msra.mxu0 0
    %3609 = vmatpush.bf16.msra.mxu0 %v3597
    %3610 = vmatpush.bf16.msra.mxu0 %v3596
    %3611 = vmatpush.bf16.msra.mxu0 %v3595
    %3612 = vmatpush.bf16.msra.mxu0 %v3594
    %3613 = vmatmul.bf16.gmra.mxu0 %v3603
    %v3614 = vpop.f32.mrf.mxu0
    %v3615 = vadd.f32 %v3576, %v3614
    %v3616 = vpop.f32.mrf.mxu0
    %v3617 = vadd.f32 %v3576, %v3616
    %3618 = vdwg.mxu0
    %s3619 = scalar_lea.vmem %s5, 46
    %v3620 = vld [vmem:[%s3619] sm:$0x1]
    %v3622 = vperm.slane %v3620, 0
    %v3624 = vmul.f32 %v3615, %v3622
    %v3625 = vmul.f32 %v3617, %v3622
    %s3626 = scalar_lea.vmem %s6, 46
    %v3627 = vld [vmem:[%s3626] sm:$0x1]
    %v3629 = vperm.slane %v3627, 0
    %v3631 = vadd.f32 %v3624, %v3629
    %v3632 = vadd.f32 %v3625, %v3629
    %v3633 = vmax.f32 %v3631, 0.0
    %v3634 = vmax.f32 %v3632, 0.0
    %s3635 = scalar_lea.vmem %s5, 47
    %v3636 = vld [vmem:[%s3635] sm:$0x1]
    %v3638 = vperm.slane %v3636, 0
    %v3640 = vmul.f32 %v3633, %v3638
    %v3641 = vmul.f32 %v3634, %v3638
    %s3642 = scalar_lea.vmem %s6, 47
    %v3643 = vld [vmem:[%s3642] sm:$0x1]
    %v3645 = vperm.slane %v3643, 0
    %v3647 = vadd.f32 %v3640, %v3645
    %v3648 = vadd.f32 %v3641, %v3645
    %v3649 = vmax.f32 %v3647, 0.0
    %v3650 = vmax.f32 %v3648, 0.0
    %v3651 = vpack.c.bf16 %v3650, %v3649
    %s3652 = scalar_lea.vmem %s7, 256
    %v3653 = vld [vmem:[%s3652] sm:$0xf]
    %v3654 = vld [vmem:[%s3652 + $0x4] sm:$0xf]
    %v3655 = vld [vmem:[%s3652 + $0x8] sm:$0xf]
    %v3656 = vld [vmem:[%s3652 + $0xc] sm:$0xf]
    %v3657 = vld [vmem:[%s3652 + $0x10] sm:$0xf]
    %v3658 = vld [vmem:[%s3652 + $0x14] sm:$0xf]
    %v3659 = vld [vmem:[%s3652 + $0x18] sm:$0xf]
    %v3660 = vld [vmem:[%s3652 + $0x1c] sm:$0xf]
    %v3669 = vunpack.c.l.b16 %v3653
    %v3670 = vunpack.c.l.b16 %v3654
    %v3671 = vunpack.c.l.b16 %v3655
    %v3672 = vunpack.c.l.b16 %v3656
    %v3673 = vunpack.c.l.b16 %v3657
    %v3674 = vunpack.c.l.b16 %v3658
    %v3675 = vunpack.c.l.b16 %v3659
    %v3676 = vunpack.c.l.b16 %v3660
    %v3677 = vpack.c.b16 %v3670, %v3669
    %v3678 = vpack.c.b16 %v3672, %v3671
    %v3679 = vpack.c.b16 %v3674, %v3673
    %v3680 = vpack.c.b16 %v3676, %v3675
    %v3686 = vsel %vm140, %v3651, 0
    %3688 = vmatpush.bf16.msra.mxu0 0
    %3689 = vmatpush.bf16.msra.mxu0 0
    %3690 = vmatpush.bf16.msra.mxu0 0
    %3691 = vmatpush.bf16.msra.mxu0 0
    %3692 = vmatpush.bf16.msra.mxu0 %v3680
    %3693 = vmatpush.bf16.msra.mxu0 %v3679
    %3694 = vmatpush.bf16.msra.mxu0 %v3678
    %3695 = vmatpush.bf16.msra.mxu0 %v3677
    %3696 = vmatmul.bf16.gmra.mxu0 %v3686
    %v3697 = vpop.f32.mrf.mxu0
    %v3698 = vadd.f32 0.0, %v3697
    %v3699 = vpop.f32.mrf.mxu0
    %v3700 = vadd.f32 0.0, %v3699
    %3701 = vdwg.mxu0
    %v3702 = vadd.f32 %v3254, %v3698
    %v3703 = vadd.f32 %v3255, %v3700
    %s3704 = sld [smem:[#allocation2 + $0x8]]
    %s3705 = sadd.f32 %s3704, 1.0
    %v3706 = vstv %s3705
    %v3707 = vmul.f32 %v3706, %v3649
    %v3708 = vmul.f32 %v3706, %v3650
    %3709 = vmatpush.bf16.msra.mxu0 0
    %3710 = vmatpush.bf16.msra.mxu0 0
    %3711 = vmatpush.bf16.msra.mxu0 0
    %3712 = vmatpush.bf16.msra.mxu0 0
    %3713 = vmatpush.bf16.msra.mxu0 0
    %3714 = vmatpush.bf16.msra.mxu0 0
    %3715 = vmatpush.bf16.msra.mxu0 0
    %3716 = vmatpush.bf16.msra.mxu0 %v3651
    %3717 = vmatmul.bf16.gmra.mxu0 %v87
    %v3718 = vpop.f32.mrf.mxu0
    %v3719 = vadd.f32 %v3707, %v3718
    %v3720 = vpop.f32.mrf.mxu0
    %v3721 = vadd.f32 %v3708, %v3720
    %3722 = vdwg.mxu0
    %v3723 = vpack.c.bf16 %v3721, %v3719
    %s3724 = scalar_lea.vmem [#allocation5], 1280
    %v3725 = vld [vmem:[%s3724] sm:$0xf]
    %v3726 = vld [vmem:[%s3724 + $0x4] sm:$0xf]
    %v3727 = vld [vmem:[%s3724 + $0x8] sm:$0xf]
    %v3728 = vld [vmem:[%s3724 + $0xc] sm:$0xf]
    %v3729 = vld [vmem:[%s3724 + $0x10] sm:$0xf]
    %v3730 = vld [vmem:[%s3724 + $0x14] sm:$0xf]
    %v3731 = vld [vmem:[%s3724 + $0x18] sm:$0xf]
    %v3732 = vld [vmem:[%s3724 + $0x1c] sm:$0xf]
    %s3733 = scalar_lea.vmem %s4, 40
    %v3734 = vld [vmem:[%s3733] sm:$0x1]
    %v3736 = vperm.slane %v3734, 0
    %v3746 = vunpack.c.l.b16 %v3725
    %v3747 = vunpack.c.l.b16 %v3726
    %v3748 = vunpack.c.l.b16 %v3727
    %v3749 = vunpack.c.l.b16 %v3728
    %v3750 = vunpack.c.l.b16 %v3729
    %v3751 = vunpack.c.l.b16 %v3730
    %v3752 = vunpack.c.l.b16 %v3731
    %v3753 = vunpack.c.l.b16 %v3732
    %v3754 = vpack.c.b16 %v3747, %v3746
    %v3755 = vpack.c.b16 %v3749, %v3748
    %v3756 = vpack.c.b16 %v3751, %v3750
    %v3757 = vpack.c.b16 %v3753, %v3752
    %v3763 = vsel %vm140, %v3723, 0
    %3765 = vmatpush.bf16.msra.mxu0 0
    %3766 = vmatpush.bf16.msra.mxu0 0
    %3767 = vmatpush.bf16.msra.mxu0 0
    %3768 = vmatpush.bf16.msra.mxu0 0
    %3769 = vmatpush.bf16.msra.mxu0 %v3757
    %3770 = vmatpush.bf16.msra.mxu0 %v3756
    %3771 = vmatpush.bf16.msra.mxu0 %v3755
    %3772 = vmatpush.bf16.msra.mxu0 %v3754
    %3773 = vmatmul.bf16.gmra.mxu0 %v3763
    %v3774 = vpop.f32.mrf.mxu0
    %v3775 = vadd.f32 %v3736, %v3774
    %v3776 = vpop.f32.mrf.mxu0
    %v3777 = vadd.f32 %v3736, %v3776
    %3778 = vdwg.mxu0
    %s3779 = scalar_lea.vmem %s5, 48
    %v3780 = vld [vmem:[%s3779] sm:$0x1]
    %v3782 = vperm.slane %v3780, 0
    %v3784 = vmul.f32 %v3775, %v3782
    %v3785 = vmul.f32 %v3777, %v3782
    %s3786 = scalar_lea.vmem %s6, 48
    %v3787 = vld [vmem:[%s3786] sm:$0x1]
    %v3789 = vperm.slane %v3787, 0
    %v3791 = vadd.f32 %v3784, %v3789
    %v3792 = vadd.f32 %v3785, %v3789
    %v3793 = vmax.f32 %v3791, 0.0
    %v3794 = vmax.f32 %v3792, 0.0
    %v3795 = vpack.c.bf16 %v3794, %v3793
    %s3796 = scalar_lea.vmem [#allocation5], 1312
    %v3797 = vld [vmem:[%s3796] sm:$0xf]
    %v3798 = vld [vmem:[%s3796 + $0x4] sm:$0xf]
    %v3799 = vld [vmem:[%s3796 + $0x8] sm:$0xf]
    %v3800 = vld [vmem:[%s3796 + $0xc] sm:$0xf]
    %v3801 = vld [vmem:[%s3796 + $0x10] sm:$0xf]
    %v3802 = vld [vmem:[%s3796 + $0x14] sm:$0xf]
    %v3803 = vld [vmem:[%s3796 + $0x18] sm:$0xf]
    %v3804 = vld [vmem:[%s3796 + $0x1c] sm:$0xf]
    %s3805 = scalar_lea.vmem %s4, 41
    %v3806 = vld [vmem:[%s3805] sm:$0x1]
    %v3808 = vperm.slane %v3806, 0
    %v3818 = vunpack.c.l.b16 %v3797
    %v3819 = vunpack.c.l.b16 %v3798
    %v3820 = vunpack.c.l.b16 %v3799
    %v3821 = vunpack.c.l.b16 %v3800
    %v3822 = vunpack.c.l.b16 %v3801
    %v3823 = vunpack.c.l.b16 %v3802
    %v3824 = vunpack.c.l.b16 %v3803
    %v3825 = vunpack.c.l.b16 %v3804
    %v3826 = vpack.c.b16 %v3819, %v3818
    %v3827 = vpack.c.b16 %v3821, %v3820
    %v3828 = vpack.c.b16 %v3823, %v3822
    %v3829 = vpack.c.b16 %v3825, %v3824
    %v3835 = vsel %vm140, %v3795, 0
    %3837 = vmatpush.bf16.msra.mxu0 0
    %3838 = vmatpush.bf16.msra.mxu0 0
    %3839 = vmatpush.bf16.msra.mxu0 0
    %3840 = vmatpush.bf16.msra.mxu0 0
    %3841 = vmatpush.bf16.msra.mxu0 %v3829
    %3842 = vmatpush.bf16.msra.mxu0 %v3828
    %3843 = vmatpush.bf16.msra.mxu0 %v3827
    %3844 = vmatpush.bf16.msra.mxu0 %v3826
    %3845 = vmatmul.bf16.gmra.mxu0 %v3835
    %v3846 = vpop.f32.mrf.mxu0
    %v3847 = vadd.f32 %v3808, %v3846
    %v3848 = vpop.f32.mrf.mxu0
    %v3849 = vadd.f32 %v3808, %v3848
    %3850 = vdwg.mxu0
    %s3851 = scalar_lea.vmem %s5, 49
    %v3852 = vld [vmem:[%s3851] sm:$0x1]
    %v3854 = vperm.slane %v3852, 0
    %v3856 = vmul.f32 %v3847, %v3854
    %v3857 = vmul.f32 %v3849, %v3854
    %s3858 = scalar_lea.vmem %s6, 49
    %v3859 = vld [vmem:[%s3858] sm:$0x1]
    %v3861 = vperm.slane %v3859, 0
    %v3863 = vadd.f32 %v3856, %v3861
    %v3864 = vadd.f32 %v3857, %v3861
    %v3865 = vmax.f32 %v3863, 0.0
    %v3866 = vmax.f32 %v3864, 0.0
    %v3867 = vpack.c.bf16 %v3866, %v3865
    %s3868 = scalar_lea.vmem [#allocation5], 1344
    %v3869 = vld [vmem:[%s3868] sm:$0xf]
    %v3870 = vld [vmem:[%s3868 + $0x4] sm:$0xf]
    %v3871 = vld [vmem:[%s3868 + $0x8] sm:$0xf]
    %v3872 = vld [vmem:[%s3868 + $0xc] sm:$0xf]
    %v3873 = vld [vmem:[%s3868 + $0x10] sm:$0xf]
    %v3874 = vld [vmem:[%s3868 + $0x14] sm:$0xf]
    %v3875 = vld [vmem:[%s3868 + $0x18] sm:$0xf]
    %v3876 = vld [vmem:[%s3868 + $0x1c] sm:$0xf]
    %s3877 = scalar_lea.vmem %s4, 42
    %v3878 = vld [vmem:[%s3877] sm:$0x1]
    %v3880 = vperm.slane %v3878, 0
    %v3890 = vunpack.c.l.b16 %v3869
    %v3891 = vunpack.c.l.b16 %v3870
    %v3892 = vunpack.c.l.b16 %v3871
    %v3893 = vunpack.c.l.b16 %v3872
    %v3894 = vunpack.c.l.b16 %v3873
    %v3895 = vunpack.c.l.b16 %v3874
    %v3896 = vunpack.c.l.b16 %v3875
    %v3897 = vunpack.c.l.b16 %v3876
    %v3898 = vpack.c.b16 %v3891, %v3890
    %v3899 = vpack.c.b16 %v3893, %v3892
    %v3900 = vpack.c.b16 %v3895, %v3894
    %v3901 = vpack.c.b16 %v3897, %v3896
    %v3907 = vsel %vm140, %v3867, 0
    %3909 = vmatpush.bf16.msra.mxu0 0
    %3910 = vmatpush.bf16.msra.mxu0 0
    %3911 = vmatpush.bf16.msra.mxu0 0
    %3912 = vmatpush.bf16.msra.mxu0 0
    %3913 = vmatpush.bf16.msra.mxu0 %v3901
    %3914 = vmatpush.bf16.msra.mxu0 %v3900
    %3915 = vmatpush.bf16.msra.mxu0 %v3899
    %3916 = vmatpush.bf16.msra.mxu0 %v3898
    %3917 = vmatmul.bf16.gmra.mxu0 %v3907
    %v3918 = vpop.f32.mrf.mxu0
    %v3919 = vadd.f32 %v3880, %v3918
    %v3920 = vpop.f32.mrf.mxu0
    %v3921 = vadd.f32 %v3880, %v3920
    %3922 = vdwg.mxu0
    %s3923 = scalar_lea.vmem %s5, 50
    %v3924 = vld [vmem:[%s3923] sm:$0x1]
    %v3926 = vperm.slane %v3924, 0
    %v3928 = vmul.f32 %v3919, %v3926
    %v3929 = vmul.f32 %v3921, %v3926
    %s3930 = scalar_lea.vmem %s6, 50
    %v3931 = vld [vmem:[%s3930] sm:$0x1]
    %v3933 = vperm.slane %v3931, 0
    %v3935 = vadd.f32 %v3928, %v3933
    %v3936 = vadd.f32 %v3929, %v3933
    %v3937 = vmax.f32 %v3935, 0.0
    %v3938 = vmax.f32 %v3936, 0.0
    %v3939 = vpack.c.bf16 %v3938, %v3937
    %s3940 = scalar_lea.vmem [#allocation5], 1376
    %v3941 = vld [vmem:[%s3940] sm:$0xf]
    %v3942 = vld [vmem:[%s3940 + $0x4] sm:$0xf]
    %v3943 = vld [vmem:[%s3940 + $0x8] sm:$0xf]
    %v3944 = vld [vmem:[%s3940 + $0xc] sm:$0xf]
    %v3945 = vld [vmem:[%s3940 + $0x10] sm:$0xf]
    %v3946 = vld [vmem:[%s3940 + $0x14] sm:$0xf]
    %v3947 = vld [vmem:[%s3940 + $0x18] sm:$0xf]
    %v3948 = vld [vmem:[%s3940 + $0x1c] sm:$0xf]
    %s3949 = scalar_lea.vmem %s4, 43
    %v3950 = vld [vmem:[%s3949] sm:$0x1]
    %v3952 = vperm.slane %v3950, 0
    %v3962 = vunpack.c.l.b16 %v3941
    %v3963 = vunpack.c.l.b16 %v3942
    %v3964 = vunpack.c.l.b16 %v3943
    %v3965 = vunpack.c.l.b16 %v3944
    %v3966 = vunpack.c.l.b16 %v3945
    %v3967 = vunpack.c.l.b16 %v3946
    %v3968 = vunpack.c.l.b16 %v3947
    %v3969 = vunpack.c.l.b16 %v3948
    %v3970 = vpack.c.b16 %v3963, %v3962
    %v3971 = vpack.c.b16 %v3965, %v3964
    %v3972 = vpack.c.b16 %v3967, %v3966
    %v3973 = vpack.c.b16 %v3969, %v3968
    %v3979 = vsel %vm140, %v3939, 0
    %3981 = vmatpush.bf16.msra.mxu0 0
    %3982 = vmatpush.bf16.msra.mxu0 0
    %3983 = vmatpush.bf16.msra.mxu0 0
    %3984 = vmatpush.bf16.msra.mxu0 0
    %3985 = vmatpush.bf16.msra.mxu0 %v3973
    %3986 = vmatpush.bf16.msra.mxu0 %v3972
    %3987 = vmatpush.bf16.msra.mxu0 %v3971
    %3988 = vmatpush.bf16.msra.mxu0 %v3970
    %3989 = vmatmul.bf16.gmra.mxu0 %v3979
    %v3990 = vpop.f32.mrf.mxu0
    %v3991 = vadd.f32 %v3952, %v3990
    %v3992 = vpop.f32.mrf.mxu0
    %v3993 = vadd.f32 %v3952, %v3992
    %3994 = vdwg.mxu0
    %s3995 = scalar_lea.vmem %s5, 51
    %v3996 = vld [vmem:[%s3995] sm:$0x1]
    %v3998 = vperm.slane %v3996, 0
    %v4000 = vmul.f32 %v3991, %v3998
    %v4001 = vmul.f32 %v3993, %v3998
    %s4002 = scalar_lea.vmem %s6, 51
    %v4003 = vld [vmem:[%s4002] sm:$0x1]
    %v4005 = vperm.slane %v4003, 0
    %v4007 = vadd.f32 %v4000, %v4005
    %v4008 = vadd.f32 %v4001, %v4005
    %v4009 = vmax.f32 %v4007, 0.0
    %v4010 = vmax.f32 %v4008, 0.0
    %v4011 = vpack.c.bf16 %v4010, %v4009
    %s4012 = scalar_lea.vmem [#allocation5], 1408
    %v4013 = vld [vmem:[%s4012] sm:$0xf]
    %v4014 = vld [vmem:[%s4012 + $0x4] sm:$0xf]
    %v4015 = vld [vmem:[%s4012 + $0x8] sm:$0xf]
    %v4016 = vld [vmem:[%s4012 + $0xc] sm:$0xf]
    %v4017 = vld [vmem:[%s4012 + $0x10] sm:$0xf]
    %v4018 = vld [vmem:[%s4012 + $0x14] sm:$0xf]
    %v4019 = vld [vmem:[%s4012 + $0x18] sm:$0xf]
    %v4020 = vld [vmem:[%s4012 + $0x1c] sm:$0xf]
    %s4021 = scalar_lea.vmem %s4, 44
    %v4022 = vld [vmem:[%s4021] sm:$0x1]
    %v4024 = vperm.slane %v4022, 0
    %v4034 = vunpack.c.l.b16 %v4013
    %v4035 = vunpack.c.l.b16 %v4014
    %v4036 = vunpack.c.l.b16 %v4015
    %v4037 = vunpack.c.l.b16 %v4016
    %v4038 = vunpack.c.l.b16 %v4017
    %v4039 = vunpack.c.l.b16 %v4018
    %v4040 = vunpack.c.l.b16 %v4019
    %v4041 = vunpack.c.l.b16 %v4020
    %v4042 = vpack.c.b16 %v4035, %v4034
    %v4043 = vpack.c.b16 %v4037, %v4036
    %v4044 = vpack.c.b16 %v4039, %v4038
    %v4045 = vpack.c.b16 %v4041, %v4040
    %v4051 = vsel %vm140, %v4011, 0
    %4053 = vmatpush.bf16.msra.mxu0 0
    %4054 = vmatpush.bf16.msra.mxu0 0
    %4055 = vmatpush.bf16.msra.mxu0 0
    %4056 = vmatpush.bf16.msra.mxu0 0
    %4057 = vmatpush.bf16.msra.mxu0 %v4045
    %4058 = vmatpush.bf16.msra.mxu0 %v4044
    %4059 = vmatpush.bf16.msra.mxu0 %v4043
    %4060 = vmatpush.bf16.msra.mxu0 %v4042
    %4061 = vmatmul.bf16.gmra.mxu0 %v4051
    %v4062 = vpop.f32.mrf.mxu0
    %v4063 = vadd.f32 %v4024, %v4062
    %v4064 = vpop.f32.mrf.mxu0
    %v4065 = vadd.f32 %v4024, %v4064
    %4066 = vdwg.mxu0
    %s4067 = scalar_lea.vmem %s5, 52
    %v4068 = vld [vmem:[%s4067] sm:$0x1]
    %v4070 = vperm.slane %v4068, 0
    %v4072 = vmul.f32 %v4063, %v4070
    %v4073 = vmul.f32 %v4065, %v4070
    %s4074 = scalar_lea.vmem %s6, 52
    %v4075 = vld [vmem:[%s4074] sm:$0x1]
    %v4077 = vperm.slane %v4075, 0
    %v4079 = vadd.f32 %v4072, %v4077
    %v4080 = vadd.f32 %v4073, %v4077
    %v4081 = vmax.f32 %v4079, 0.0
    %v4082 = vmax.f32 %v4080, 0.0
    %s4083 = scalar_lea.vmem %s5, 53
    %v4084 = vld [vmem:[%s4083] sm:$0x1]
    %v4086 = vperm.slane %v4084, 0
    %v4088 = vmul.f32 %v4081, %v4086
    %v4089 = vmul.f32 %v4082, %v4086
    %s4090 = scalar_lea.vmem %s6, 53
    %v4091 = vld [vmem:[%s4090] sm:$0x1]
    %v4093 = vperm.slane %v4091, 0
    %v4095 = vadd.f32 %v4088, %v4093
    %v4096 = vadd.f32 %v4089, %v4093
    %v4097 = vmax.f32 %v4095, 0.0
    %v4098 = vmax.f32 %v4096, 0.0
    %v4099 = vpack.c.bf16 %v4098, %v4097
    %s4100 = scalar_lea.vmem %s7, 288
    %v4101 = vld [vmem:[%s4100] sm:$0xf]
    %v4102 = vld [vmem:[%s4100 + $0x4] sm:$0xf]
    %v4103 = vld [vmem:[%s4100 + $0x8] sm:$0xf]
    %v4104 = vld [vmem:[%s4100 + $0xc] sm:$0xf]
    %v4105 = vld [vmem:[%s4100 + $0x10] sm:$0xf]
    %v4106 = vld [vmem:[%s4100 + $0x14] sm:$0xf]
    %v4107 = vld [vmem:[%s4100 + $0x18] sm:$0xf]
    %v4108 = vld [vmem:[%s4100 + $0x1c] sm:$0xf]
    %v4117 = vunpack.c.l.b16 %v4101
    %v4118 = vunpack.c.l.b16 %v4102
    %v4119 = vunpack.c.l.b16 %v4103
    %v4120 = vunpack.c.l.b16 %v4104
    %v4121 = vunpack.c.l.b16 %v4105
    %v4122 = vunpack.c.l.b16 %v4106
    %v4123 = vunpack.c.l.b16 %v4107
    %v4124 = vunpack.c.l.b16 %v4108
    %v4125 = vpack.c.b16 %v4118, %v4117
    %v4126 = vpack.c.b16 %v4120, %v4119
    %v4127 = vpack.c.b16 %v4122, %v4121
    %v4128 = vpack.c.b16 %v4124, %v4123
    %v4134 = vsel %vm140, %v4099, 0
    %4136 = vmatpush.bf16.msra.mxu0 0
    %4137 = vmatpush.bf16.msra.mxu0 0
    %4138 = vmatpush.bf16.msra.mxu0 0
    %4139 = vmatpush.bf16.msra.mxu0 0
    %4140 = vmatpush.bf16.msra.mxu0 %v4128
    %4141 = vmatpush.bf16.msra.mxu0 %v4127
    %4142 = vmatpush.bf16.msra.mxu0 %v4126
    %4143 = vmatpush.bf16.msra.mxu0 %v4125
    %4144 = vmatmul.bf16.gmra.mxu0 %v4134
    %v4145 = vpop.f32.mrf.mxu0
    %v4146 = vadd.f32 0.0, %v4145
    %v4147 = vpop.f32.mrf.mxu0
    %v4148 = vadd.f32 0.0, %v4147
    %4149 = vdwg.mxu0
    %v4150 = vadd.f32 %v3702, %v4146
    %v4151 = vadd.f32 %v3703, %v4148
    %v4152 = vld [vmem:[%s8] sm:$0x1]
    %v4154 = vperm.slane %v4152, 0
    %v4156 = vadd.f32 %v4150, %v4154
    %v4157 = vadd.f32 %v4151, %v4154
    %vm4158 = vcmask 15360
    %4159 = vst.msk [vmem:[%s9] sm:$0xff] %vm4158, %v4156
    %4160 = vst.msk [vmem:[%s9 + $0x8] sm:$0xff] %vm4158, %v4157
    // Predicated region
    $region46: #{gin_forward.1} parent=1 // pred_check
      _
    $region47: #{gin_forward.1} parent=1 // pred_check_branch
      %4162 = sbr.rel (0) target = $region49
    $region48: #{gin_forward.1} parent=1 // pred_region
      _
    $region49: #{gin_forward.1} parent=1 // pred_fallthru
      _
    // Predicated region
    $region50: #{gin_forward.1} parent=1 // pred_check
      _
    $region51: #{gin_forward.1} parent=1 // pred_check_branch
      %4164 = sbr.rel (0) target = $region53
    $region52: #{gin_forward.1} parent=1 // pred_region
      _
    $region53: #{gin_forward.1} parent=1 // pred_fallthru
      _
    %4165 = vsyncpa [#allocation3], 1
    %4166 = vsyncpa [#allocation4], 1

</llo_original>
